<compile_context>
chip_gen: v7x
topology: tpu7x:2x2x1
jax: 0.10.0
libtpu: 0.0.40
codegen_flags: <defaults>
</compile_context>

<pallas_src>
import jax
import jax.numpy as jnp
from jax.experimental import pallas as pl
from jax.experimental.pallas import tpu as pltpu


def bilstm_kernel(lens_ref, x_ref, wihf_ref, wihb_ref, whhf_ref, whhb_ref,
                  bf_ref, bb_ref, woutf_ref, woutb_ref, bout_ref, out_ref):
    T, Bb, D = x_ref.shape
    H = whhf_ref.shape[0]

    # Weights / biases / lengths loaded once; resident across the unroll.
    wihf = wihf_ref[...]                 # (D, 4H) bf16
    wihb = wihb_ref[...]
    whhf = whhf_ref[...]                 # (H, 4H) bf16
    whhb = whhb_ref[...]
    bf = bf_ref[...]                     # (1, 4H) f32
    bb = bb_ref[...]
    lens = lens_ref[...]                 # (Bb, 1) int32
    cdt = whhf.dtype

    h_f = jnp.zeros((Bb, H), jnp.float32)
    c_f = jnp.zeros((Bb, H), jnp.float32)
    h_b = jnp.zeros((Bb, H), jnp.float32)
    c_b = jnp.zeros((Bb, H), jnp.float32)
    fw_sel = jnp.zeros((Bb, H), jnp.float32)   # fw hidden at t = len-1

    def sigmoid(z):
        # single EUP op (tanh) + cheap VPU, instead of exp + reciprocal
        return 0.5 * jnp.tanh(0.5 * z) + 0.5

    def cell(gates, c_prev):             # PyTorch gate order [i, f, g, o]
        i_g = sigmoid(gates[:, 0 * H:1 * H])
        f_g = sigmoid(gates[:, 1 * H:2 * H])
        g_g = jnp.tanh(gates[:, 2 * H:3 * H])
        o_g = sigmoid(gates[:, 3 * H:4 * H])
        c_new = f_g * c_prev + i_g * g_g
        h_new = o_g * jnp.tanh(c_new)
        return h_new, c_new

    # TODO(synk): for T >> 16 replace the full Python unroll with
    # lax.fori_loop(..., unroll=2..4) to bound vreg live ranges.
    for t in range(T):                   # T static & small -> full unroll
        tt = T - 1 - t
        # Independent per-step input projections (MXU work that overlaps the
        # previous step's EUP/VPU gate math and this step's recurrent dots).
        gx_f = jnp.dot(x_ref[t], wihf, preferred_element_type=jnp.float32)
        gx_b = jnp.dot(x_ref[tt], wihb, preferred_element_type=jnp.float32)
        # Per-direction recurrent dots (no zero-padded block-diagonal matmul).
        g_f = gx_f + bf + jnp.dot(h_f.astype(cdt), whhf,
                                  preferred_element_type=jnp.float32)
        g_b = gx_b + bb + jnp.dot(h_b.astype(cdt), whhb,
                                  preferred_element_type=jnp.float32)
        # TODO(synk): on v6e/v7x the gate nonlinearities could run in bf16
        # (native bf16 EUP/VPU, ~2x) — kept f32 here for v5e + accuracy.
        h_f, c_f = cell(g_f, c_f)
        h_b, c_b = cell(g_b, c_b)
        fw_sel = jnp.where(lens == t + 1, h_f, fw_sel)     # bi_fetch (fw side)

    # bw representation = backward hidden at original t=0 == final h_b.
    # Padded logit lanes carry a -1e30 bias -> softmax assigns them ~0.
    logits = (jnp.dot(fw_sel.astype(cdt), woutf_ref[...],
                      preferred_element_type=jnp.float32)
              + jnp.dot(h_b.astype(cdt), woutb_ref[...],
                        preferred_element_type=jnp.float32)
              + bout_ref[...])
    out_ref[...] = jax.nn.softmax(logits, axis=-1)


def bilstm_forward(sen_batch, sen_lengths, params, *,
                   compute_dtype=jnp.bfloat16, batch_block=8):
    emb = params["emb"]
    x = jnp.take(emb, sen_batch, axis=0)                     # (B, T, D)
    B, T, D = x.shape
    H = params["w_hh_f"].shape[1]
    O = params["w_out"].shape[0]
    Op = ((O + 127) // 128) * 128                            # lane-dense logits

    # Pad batch to a multiple of the batch block (>= 8-sublane tile).
    # Padded rows get lens=1 and are sliced off after the call.
    Bp = ((B + batch_block - 1) // batch_block) * batch_block
    x = jnp.pad(x, ((0, Bp - B), (0, 0), (0, 0)))
    lens = jnp.pad(sen_lengths.astype(jnp.int32), (0, Bp - B),
                   constant_values=1).reshape(Bp, 1)

    x_tm = jnp.transpose(x, (1, 0, 2)).astype(compute_dtype)  # (T, Bp, D)

    # Per-direction weights, gate order [i, f, g, o].
    wih_f = params["w_ih_f"].T.astype(compute_dtype)          # (D, 4H)
    wih_b = params["w_ih_b"].T.astype(compute_dtype)
    whh_f = params["w_hh_f"].T.astype(compute_dtype)          # (H, 4H)
    whh_b = params["w_hh_b"].T.astype(compute_dtype)
    b_f = (params["b_ih_f"] + params["b_hh_f"]).reshape(1, 4 * H).astype(jnp.float32)
    b_b = (params["b_ih_b"] + params["b_hh_b"]).reshape(1, 4 * H).astype(jnp.float32)

    # Output weights split fw/bw and lane-padded to Op; padded lanes get a
    # huge negative bias so the in-kernel softmax ignores them.
    wout_f = jnp.zeros((H, Op), jnp.float32).at[:, :O].set(
        params["w_out"][:, :H].T).astype(compute_dtype)
    wout_b = jnp.zeros((H, Op), jnp.float32).at[:, :O].set(
        params["w_out"][:, H:].T).astype(compute_dtype)
    bout = jnp.full((1, Op), -1e30, jnp.float32).at[0, :O].set(
        params["b_out"].astype(jnp.float32))

    grid = (Bp // batch_block,)
    full = lambda a: pl.BlockSpec(a.shape, lambda b, _nd=a.ndim: (0,) * _nd)

    # TODO(synk): at production sizes re-derive vmem_limit_bytes and, for very
    # long T, stream x over a T grid axis instead of a whole-T batch block.
    out = pl.pallas_call(
        bilstm_kernel,
        out_shape=jax.ShapeDtypeStruct((Bp, Op), jnp.float32),
        grid=grid,
        in_specs=[
            pl.BlockSpec((batch_block, 1), lambda b: (b, 0)),        # lens
            pl.BlockSpec((T, batch_block, D), lambda b: (0, b, 0)),  # x (time-major)
            full(wih_f), full(wih_b), full(whh_f), full(whh_b),
            full(b_f), full(b_b), full(wout_f), full(wout_b), full(bout),
        ],
        out_specs=pl.BlockSpec((batch_block, Op), lambda b: (b, 0)),
        compiler_params=pltpu.CompilerParams(
            dimension_semantics=("parallel",),      # feeds v7x's 2nd TC
            vmem_limit_bytes=32 * 1024 * 1024),
    )(lens, x_tm, wih_f, wih_b, whh_f, whh_b, b_f, b_b,
      wout_f, wout_b, bout)
    return out[:B, :O]


def bilstm_reference(sen_batch, sen_lengths, params):
    """Pure-JAX f32 reference mirroring the PyTorch forward."""
    emb = params["emb"]
    x = jnp.take(emb, sen_batch, axis=0)          # (B, T, D)
    B, T, D = x.shape
    H = params["w_hh_f"].shape[1]

    def run_dir(xs, wih, whh, b_ih, b_hh):
        def step(carry, xt):
            h, c = carry
            gates = xt @ wih.T + h @ whh.T + b_ih + b_hh
            i = jax.nn.sigmoid(gates[:, :H])
            f = jax.nn.sigmoid(gates[:, H:2 * H])
            g = jnp.tanh(gates[:, 2 * H:3 * H])
            o = jax.nn.sigmoid(gates[:, 3 * H:])
            c = f * c + i * g
            h = o * jnp.tanh(c)
            return (h, c), h
        init = (jnp.zeros((B, H), jnp.float32), jnp.zeros((B, H), jnp.float32))
        _, hs = jax.lax.scan(step, init, xs)       # (T, B, H)
        return hs

    x_t = jnp.transpose(x, (1, 0, 2))
    fw = run_dir(x_t, params["w_ih_f"], params["w_hh_f"],
                 params["b_ih_f"], params["b_hh_f"])
    bw = run_dir(x_t[::-1], params["w_ih_b"], params["w_hh_b"],
                 params["b_ih_b"], params["b_hh_b"])[::-1]
    fw = jnp.transpose(fw, (1, 0, 2))              # (B, T, H)
    bw = jnp.transpose(bw, (1, 0, 2))
    fw_sel = fw[jnp.arange(B), sen_lengths - 1]    # (B, H)
    bw_sel = bw[:, 0]                              # (B, H)
    rep = jnp.concatenate([fw_sel, bw_sel], axis=1)
    logits = rep @ params["w_out"].T + params["b_out"]
    return jax.nn.softmax(logits, axis=-1)


if __name__ == "__main__":
    key = jax.random.PRNGKey(0)
    vocab, input_dim, hidden_dim, output_dim = 20, 16, 32, 4
    max_len, batch = 8, 2
    # num_layers = 1
    # TODO(synk): num_layers > 1 (stacked BiLSTM) and inter-layer dropout are not implemented.

    ks = jax.random.split(key, 14)
    kH = 1.0 / float(hidden_dim) ** 0.5
    kL = 1.0 / float(2 * hidden_dim) ** 0.5
    u = lambda kk, shape, b: jax.random.uniform(kk, shape, jnp.float32, -b, b)

    params = dict(
        emb=jax.random.normal(ks[0], (vocab, input_dim), jnp.float32),
        w_ih_f=u(ks[1], (4 * hidden_dim, input_dim), kH),
        w_hh_f=u(ks[2], (4 * hidden_dim, hidden_dim), kH),
        b_ih_f=u(ks[3], (4 * hidden_dim,), kH),
        b_hh_f=u(ks[4], (4 * hidden_dim,), kH),
        w_ih_b=u(ks[5], (4 * hidden_dim, input_dim), kH),
        w_hh_b=u(ks[6], (4 * hidden_dim, hidden_dim), kH),
        b_ih_b=u(ks[7], (4 * hidden_dim,), kH),
        b_hh_b=u(ks[8], (4 * hidden_dim,), kH),
        w_out=u(ks[9], (output_dim, 2 * hidden_dim), kL),
        b_out=u(ks[10], (output_dim,), kL),
    )

    sen_batch = jax.random.randint(ks[11], (batch, max_len), 1, vocab)
    sen_lengths = jnp.array([5, 8], dtype=jnp.int32)

    out = jax.block_until_ready(bilstm_forward(sen_batch, sen_lengths, params))
    ref = jax.block_until_ready(bilstm_reference(sen_batch, sen_lengths, params))

    assert out.shape == (batch, output_dim)
    assert bool(jnp.allclose(out, ref, atol=1e-2, rtol=1e-2)), (out, ref)
    print("KERNEL_OK")
</pallas_src>

<mosaic_0001>
module attributes {stable_mosaic.version = 11 : i64} {
  func.func @bilstm_kernel(%arg0: i32, %arg1: memref<8x1xi32, #tpu.memory_space<vmem>>, %arg2: memref<8x8x16xbf16, #tpu.memory_space<vmem>>, %arg3: memref<16x128xbf16, #tpu.memory_space<vmem>>, %arg4: memref<16x128xbf16, #tpu.memory_space<vmem>>, %arg5: memref<32x128xbf16, #tpu.memory_space<vmem>>, %arg6: memref<32x128xbf16, #tpu.memory_space<vmem>>, %arg7: memref<1x128xf32, #tpu.memory_space<vmem>>, %arg8: memref<1x128xf32, #tpu.memory_space<vmem>>, %arg9: memref<32x128xbf16, #tpu.memory_space<vmem>>, %arg10: memref<32x128xbf16, #tpu.memory_space<vmem>>, %arg11: memref<1x128xf32, #tpu.memory_space<vmem>>, %arg12: memref<8x128xf32, #tpu.memory_space<vmem>>) attributes {dimension_semantics = [#tpu.dimension_semantics<parallel>], iteration_bounds = array<i64: 1>, scalar_prefetch = 0 : i64, scratch_operands = 0 : i64, tpu.core_type = #tpu.core_type<tc>, window_params = [{transform_indices = @transform_0, window_bounds = array<i64: 8, 1>}, {transform_indices = @transform_1, window_bounds = array<i64: 8, 8, 16>}, {pipeline_mode = #tpu.pipeline_mode<synchronous>, transform_indices = @transform_2, window_bounds = array<i64: 16, 128>}, {pipeline_mode = #tpu.pipeline_mode<synchronous>, transform_indices = @transform_3, window_bounds = array<i64: 16, 128>}, {pipeline_mode = #tpu.pipeline_mode<synchronous>, transform_indices = @transform_4, window_bounds = array<i64: 32, 128>}, {pipeline_mode = #tpu.pipeline_mode<synchronous>, transform_indices = @transform_5, window_bounds = array<i64: 32, 128>}, {pipeline_mode = #tpu.pipeline_mode<synchronous>, transform_indices = @transform_6, window_bounds = array<i64: 1, 128>}, {pipeline_mode = #tpu.pipeline_mode<synchronous>, transform_indices = @transform_7, window_bounds = array<i64: 1, 128>}, {pipeline_mode = #tpu.pipeline_mode<synchronous>, transform_indices = @transform_8, window_bounds = array<i64: 32, 128>}, {pipeline_mode = #tpu.pipeline_mode<synchronous>, transform_indices = @transform_9, window_bounds = array<i64: 32, 128>}, {pipeline_mode = #tpu.pipeline_mode<synchronous>, transform_indices = @transform_10, window_bounds = array<i64: 1, 128>}, {transform_indices = @transform_11, window_bounds = array<i64: 8, 128>}]} {
    %c0 = arith.constant 0 : index
    %c0_0 = arith.constant 0 : index
    %0 = vector.load %arg3[%c0, %c0_0] : memref<16x128xbf16, #tpu.memory_space<vmem>>, vector<16x128xbf16>
    %c0_1 = arith.constant 0 : index
    %c0_2 = arith.constant 0 : index
    %1 = vector.load %arg4[%c0_1, %c0_2] : memref<16x128xbf16, #tpu.memory_space<vmem>>, vector<16x128xbf16>
    %c0_3 = arith.constant 0 : index
    %c0_4 = arith.constant 0 : index
    %2 = vector.load %arg5[%c0_3, %c0_4] : memref<32x128xbf16, #tpu.memory_space<vmem>>, vector<32x128xbf16>
    %c0_5 = arith.constant 0 : index
    %c0_6 = arith.constant 0 : index
    %3 = vector.load %arg6[%c0_5, %c0_6] : memref<32x128xbf16, #tpu.memory_space<vmem>>, vector<32x128xbf16>
    %c0_7 = arith.constant 0 : index
    %c0_8 = arith.constant 0 : index
    %4 = vector.load %arg7[%c0_7, %c0_8] : memref<1x128xf32, #tpu.memory_space<vmem>>, vector<1x128xf32>
    %c0_9 = arith.constant 0 : index
    %c0_10 = arith.constant 0 : index
    %5 = vector.load %arg8[%c0_9, %c0_10] : memref<1x128xf32, #tpu.memory_space<vmem>>, vector<1x128xf32>
    %c0_11 = arith.constant 0 : index
    %c0_12 = arith.constant 0 : index
    %6 = vector.load %arg1[%c0_11, %c0_12] : memref<8x1xi32, #tpu.memory_space<vmem>>, vector<8x1xi32>
    %cst = arith.constant 0.000000e+00 : f32
    %7 = vector.broadcast %cst : f32 to vector<8x32xf32>
    %cst_13 = arith.constant 0.000000e+00 : f32
    %8 = vector.broadcast %cst_13 : f32 to vector<8x32xf32>
    %cst_14 = arith.constant 0.000000e+00 : f32
    %9 = vector.broadcast %cst_14 : f32 to vector<8x32xf32>
    %cst_15 = arith.constant 0.000000e+00 : f32
    %10 = vector.broadcast %cst_15 : f32 to vector<8x32xf32>
    %cst_16 = arith.constant 0.000000e+00 : f32
    %11 = vector.broadcast %cst_16 : f32 to vector<8x32xf32>
    %c0_17 = arith.constant 0 : index
    %c0_18 = arith.constant 0 : index
    %c0_19 = arith.constant 0 : index
    %12 = vector.load %arg2[%c0_17, %c0_18, %c0_19] : memref<8x8x16xbf16, #tpu.memory_space<vmem>>, vector<1x8x16xbf16>
    %13 = vector.shape_cast %12 : vector<1x8x16xbf16> to vector<8x16xbf16>
    %cst_20 = arith.constant dense<0.000000e+00> : vector<8x128xf32>
    %14 = tpu.matmul %13, %0, %cst_20 {dimension_numbers = #tpu.dot_dimension_numbers<[1], [0], [0], [1], [0, 0, 1, 1], [], []>} : vector<8x16xbf16>, vector<16x128xbf16>, vector<8x128xf32> -> vector<8x128xf32>
    %c7 = arith.constant 7 : index
    %c0_21 = arith.constant 0 : index
    %c0_22 = arith.constant 0 : index
    %15 = vector.load %arg2[%c7, %c0_21, %c0_22] : memref<8x8x16xbf16, #tpu.memory_space<vmem>>, vector<1x8x16xbf16>
    %16 = vector.shape_cast %15 : vector<1x8x16xbf16> to vector<8x16xbf16>
    %cst_23 = arith.constant dense<0.000000e+00> : vector<8x128xf32>
    %17 = tpu.matmul %16, %1, %cst_23 {dimension_numbers = #tpu.dot_dimension_numbers<[1], [0], [0], [1], [0, 0, 1, 1], [], []>} : vector<8x16xbf16>, vector<16x128xbf16>, vector<8x128xf32> -> vector<8x128xf32>
    %18 = vector.broadcast %4 : vector<1x128xf32> to vector<8x128xf32>
    %19 = arith.addf %14, %18 : vector<8x128xf32>
    %20 = arith.truncf %7 : vector<8x32xf32> to vector<8x32xbf16>
    %cst_24 = arith.constant dense<0.000000e+00> : vector<8x128xf32>
    %21 = tpu.matmul %20, %2, %cst_24 {dimension_numbers = #tpu.dot_dimension_numbers<[1], [0], [0], [1], [0, 0, 1, 1], [], []>} : vector<8x32xbf16>, vector<32x128xbf16>, vector<8x128xf32> -> vector<8x128xf32>
    %22 = arith.addf %19, %21 : vector<8x128xf32>
    %23 = vector.broadcast %5 : vector<1x128xf32> to vector<8x128xf32>
    %24 = arith.addf %17, %23 : vector<8x128xf32>
    %25 = arith.truncf %9 : vector<8x32xf32> to vector<8x32xbf16>
    %cst_25 = arith.constant dense<0.000000e+00> : vector<8x128xf32>
    %26 = tpu.matmul %25, %3, %cst_25 {dimension_numbers = #tpu.dot_dimension_numbers<[1], [0], [0], [1], [0, 0, 1, 1], [], []>} : vector<8x32xbf16>, vector<32x128xbf16>, vector<8x128xf32> -> vector<8x128xf32>
    %27 = arith.addf %24, %26 : vector<8x128xf32>
    %28 = vector.extract_strided_slice %22 {offsets = [0, 0], sizes = [8, 32], strides = [1, 1]} : vector<8x128xf32> to vector<8x32xf32>
    %cst_26 = arith.constant 5.000000e-01 : f32
    %29 = vector.broadcast %cst_26 : f32 to vector<8x32xf32>
    %30 = arith.mulf %29, %28 : vector<8x32xf32>
    %31 = math.tanh %30 : vector<8x32xf32>
    %cst_27 = arith.constant 5.000000e-01 : f32
    %32 = vector.broadcast %cst_27 : f32 to vector<8x32xf32>
    %33 = arith.mulf %32, %31 : vector<8x32xf32>
    %cst_28 = arith.constant 5.000000e-01 : f32
    %34 = vector.broadcast %cst_28 : f32 to vector<8x32xf32>
    %35 = arith.addf %33, %34 : vector<8x32xf32>
    %36 = vector.extract_strided_slice %22 {offsets = [0, 32], sizes = [8, 32], strides = [1, 1]} : vector<8x128xf32> to vector<8x32xf32>
    %cst_29 = arith.constant 5.000000e-01 : f32
    %37 = vector.broadcast %cst_29 : f32 to vector<8x32xf32>
    %38 = arith.mulf %37, %36 : vector<8x32xf32>
    %39 = math.tanh %38 : vector<8x32xf32>
    %cst_30 = arith.constant 5.000000e-01 : f32
    %40 = vector.broadcast %cst_30 : f32 to vector<8x32xf32>
    %41 = arith.mulf %40, %39 : vector<8x32xf32>
    %cst_31 = arith.constant 5.000000e-01 : f32
    %42 = vector.broadcast %cst_31 : f32 to vector<8x32xf32>
    %43 = arith.addf %41, %42 : vector<8x32xf32>
    %44 = vector.extract_strided_slice %22 {offsets = [0, 64], sizes = [8, 32], strides = [1, 1]} : vector<8x128xf32> to vector<8x32xf32>
    %45 = math.tanh %44 : vector<8x32xf32>
    %46 = vector.extract_strided_slice %22 {offsets = [0, 96], sizes = [8, 32], strides = [1, 1]} : vector<8x128xf32> to vector<8x32xf32>
    %cst_32 = arith.constant 5.000000e-01 : f32
    %47 = vector.broadcast %cst_32 : f32 to vector<8x32xf32>
    %48 = arith.mulf %47, %46 : vector<8x32xf32>
    %49 = math.tanh %48 : vector<8x32xf32>
    %cst_33 = arith.constant 5.000000e-01 : f32
    %50 = vector.broadcast %cst_33 : f32 to vector<8x32xf32>
    %51 = arith.mulf %50, %49 : vector<8x32xf32>
    %cst_34 = arith.constant 5.000000e-01 : f32
    %52 = vector.broadcast %cst_34 : f32 to vector<8x32xf32>
    %53 = arith.addf %51, %52 : vector<8x32xf32>
    %54 = arith.mulf %43, %8 : vector<8x32xf32>
    %55 = arith.mulf %35, %45 : vector<8x32xf32>
    %56 = arith.addf %54, %55 : vector<8x32xf32>
    %57 = math.tanh %56 : vector<8x32xf32>
    %58 = arith.mulf %53, %57 : vector<8x32xf32>
    %59 = vector.extract_strided_slice %27 {offsets = [0, 0], sizes = [8, 32], strides = [1, 1]} : vector<8x128xf32> to vector<8x32xf32>
    %cst_35 = arith.constant 5.000000e-01 : f32
    %60 = vector.broadcast %cst_35 : f32 to vector<8x32xf32>
    %61 = arith.mulf %60, %59 : vector<8x32xf32>
    %62 = math.tanh %61 : vector<8x32xf32>
    %cst_36 = arith.constant 5.000000e-01 : f32
    %63 = vector.broadcast %cst_36 : f32 to vector<8x32xf32>
    %64 = arith.mulf %63, %62 : vector<8x32xf32>
    %cst_37 = arith.constant 5.000000e-01 : f32
    %65 = vector.broadcast %cst_37 : f32 to vector<8x32xf32>
    %66 = arith.addf %64, %65 : vector<8x32xf32>
    %67 = vector.extract_strided_slice %27 {offsets = [0, 32], sizes = [8, 32], strides = [1, 1]} : vector<8x128xf32> to vector<8x32xf32>
    %cst_38 = arith.constant 5.000000e-01 : f32
    %68 = vector.broadcast %cst_38 : f32 to vector<8x32xf32>
    %69 = arith.mulf %68, %67 : vector<8x32xf32>
    %70 = math.tanh %69 : vector<8x32xf32>
    %cst_39 = arith.constant 5.000000e-01 : f32
    %71 = vector.broadcast %cst_39 : f32 to vector<8x32xf32>
    %72 = arith.mulf %71, %70 : vector<8x32xf32>
    %cst_40 = arith.constant 5.000000e-01 : f32
    %73 = vector.broadcast %cst_40 : f32 to vector<8x32xf32>
    %74 = arith.addf %72, %73 : vector<8x32xf32>
    %75 = vector.extract_strided_slice %27 {offsets = [0, 64], sizes = [8, 32], strides = [1, 1]} : vector<8x128xf32> to vector<8x32xf32>
    %76 = math.tanh %75 : vector<8x32xf32>
    %77 = vector.extract_strided_slice %27 {offsets = [0, 96], sizes = [8, 32], strides = [1, 1]} : vector<8x128xf32> to vector<8x32xf32>
    %cst_41 = arith.constant 5.000000e-01 : f32
    %78 = vector.broadcast %cst_41 : f32 to vector<8x32xf32>
    %79 = arith.mulf %78, %77 : vector<8x32xf32>
    %80 = math.tanh %79 : vector<8x32xf32>
    %cst_42 = arith.constant 5.000000e-01 : f32
    %81 = vector.broadcast %cst_42 : f32 to vector<8x32xf32>
    %82 = arith.mulf %81, %80 : vector<8x32xf32>
    %cst_43 = arith.constant 5.000000e-01 : f32
    %83 = vector.broadcast %cst_43 : f32 to vector<8x32xf32>
    %84 = arith.addf %82, %83 : vector<8x32xf32>
    %85 = arith.mulf %74, %10 : vector<8x32xf32>
    %86 = arith.mulf %66, %76 : vector<8x32xf32>
    %87 = arith.addf %85, %86 : vector<8x32xf32>
    %88 = math.tanh %87 : vector<8x32xf32>
    %89 = arith.mulf %84, %88 : vector<8x32xf32>
    %c1_i32 = arith.constant 1 : i32
    %90 = vector.broadcast %c1_i32 : i32 to vector<8x1xi32>
    %91 = arith.cmpi eq, %6, %90 : vector<8x1xi32>
    %92 = vector.shape_cast %91 : vector<8x1xi1> to vector<8x1xi1>
    %93 = vector.broadcast %92 : vector<8x1xi1> to vector<8x32xi1>
    %94 = arith.select %93, %58, %11 : vector<8x32xi1>, vector<8x32xf32>
    %c1 = arith.constant 1 : index
    %c0_44 = arith.constant 0 : index
    %c0_45 = arith.constant 0 : index
    %95 = vector.load %arg2[%c1, %c0_44, %c0_45] : memref<8x8x16xbf16, #tpu.memory_space<vmem>>, vector<1x8x16xbf16>
    %96 = vector.shape_cast %95 : vector<1x8x16xbf16> to vector<8x16xbf16>
    %cst_46 = arith.constant dense<0.000000e+00> : vector<8x128xf32>
    %97 = tpu.matmul %96, %0, %cst_46 {dimension_numbers = #tpu.dot_dimension_numbers<[1], [0], [0], [1], [0, 0, 1, 1], [], []>} : vector<8x16xbf16>, vector<16x128xbf16>, vector<8x128xf32> -> vector<8x128xf32>
    %c6 = arith.constant 6 : index
    %c0_47 = arith.constant 0 : index
    %c0_48 = arith.constant 0 : index
    %98 = vector.load %arg2[%c6, %c0_47, %c0_48] : memref<8x8x16xbf16, #tpu.memory_space<vmem>>, vector<1x8x16xbf16>
    %99 = vector.shape_cast %98 : vector<1x8x16xbf16> to vector<8x16xbf16>
    %cst_49 = arith.constant dense<0.000000e+00> : vector<8x128xf32>
    %100 = tpu.matmul %99, %1, %cst_49 {dimension_numbers = #tpu.dot_dimension_numbers<[1], [0], [0], [1], [0, 0, 1, 1], [], []>} : vector<8x16xbf16>, vector<16x128xbf16>, vector<8x128xf32> -> vector<8x128xf32>
    %101 = vector.broadcast %4 : vector<1x128xf32> to vector<8x128xf32>
    %102 = arith.addf %97, %101 : vector<8x128xf32>
    %103 = arith.truncf %58 : vector<8x32xf32> to vector<8x32xbf16>
    %cst_50 = arith.constant dense<0.000000e+00> : vector<8x128xf32>
    %104 = tpu.matmul %103, %2, %cst_50 {dimension_numbers = #tpu.dot_dimension_numbers<[1], [0], [0], [1], [0, 0, 1, 1], [], []>} : vector<8x32xbf16>, vector<32x128xbf16>, vector<8x128xf32> -> vector<8x128xf32>
    %105 = arith.addf %102, %104 : vector<8x128xf32>
    %106 = vector.broadcast %5 : vector<1x128xf32> to vector<8x128xf32>
    %107 = arith.addf %100, %106 : vector<8x128xf32>
    %108 = arith.truncf %89 : vector<8x32xf32> to vector<8x32xbf16>
    %cst_51 = arith.constant dense<0.000000e+00> : vector<8x128xf32>
    %109 = tpu.matmul %108, %3, %cst_51 {dimension_numbers = #tpu.dot_dimension_numbers<[1], [0], [0], [1], [0, 0, 1, 1], [], []>} : vector<8x32xbf16>, vector<32x128xbf16>, vector<8x128xf32> -> vector<8x128xf32>
    %110 = arith.addf %107, %109 : vector<8x128xf32>
    %111 = vector.extract_strided_slice %105 {offsets = [0, 0], sizes = [8, 32], strides = [1, 1]} : vector<8x128xf32> to vector<8x32xf32>
    %cst_52 = arith.constant 5.000000e-01 : f32
    %112 = vector.broadcast %cst_52 : f32 to vector<8x32xf32>
    %113 = arith.mulf %112, %111 : vector<8x32xf32>
    %114 = math.tanh %113 : vector<8x32xf32>
    %cst_53 = arith.constant 5.000000e-01 : f32
    %115 = vector.broadcast %cst_53 : f32 to vector<8x32xf32>
    %116 = arith.mulf %115, %114 : vector<8x32xf32>
    %cst_54 = arith.constant 5.000000e-01 : f32
    %117 = vector.broadcast %cst_54 : f32 to vector<8x32xf32>
    %118 = arith.addf %116, %117 : vector<8x32xf32>
    %119 = vector.extract_strided_slice %105 {offsets = [0, 32], sizes = [8, 32], strides = [1, 1]} : vector<8x128xf32> to vector<8x32xf32>
    %cst_55 = arith.constant 5.000000e-01 : f32
    %120 = vector.broadcast %cst_55 : f32 to vector<8x32xf32>
    %121 = arith.mulf %120, %119 : vector<8x32xf32>
    %122 = math.tanh %121 : vector<8x32xf32>
    %cst_56 = arith.constant 5.000000e-01 : f32
    %123 = vector.broadcast %cst_56 : f32 to vector<8x32xf32>
    %124 = arith.mulf %123, %122 : vector<8x32xf32>
    %cst_57 = arith.constant 5.000000e-01 : f32
    %125 = vector.broadcast %cst_57 : f32 to vector<8x32xf32>
    %126 = arith.addf %124, %125 : vector<8x32xf32>
    %127 = vector.extract_strided_slice %105 {offsets = [0, 64], sizes = [8, 32], strides = [1, 1]} : vector<8x128xf32> to vector<8x32xf32>
    %128 = math.tanh %127 : vector<8x32xf32>
    %129 = vector.extract_strided_slice %105 {offsets = [0, 96], sizes = [8, 32], strides = [1, 1]} : vector<8x128xf32> to vector<8x32xf32>
    %cst_58 = arith.constant 5.000000e-01 : f32
    %130 = vector.broadcast %cst_58 : f32 to vector<8x32xf32>
    %131 = arith.mulf %130, %129 : vector<8x32xf32>
    %132 = math.tanh %131 : vector<8x32xf32>
    %cst_59 = arith.constant 5.000000e-01 : f32
    %133 = vector.broadcast %cst_59 : f32 to vector<8x32xf32>
    %134 = arith.mulf %133, %132 : vector<8x32xf32>
    %cst_60 = arith.constant 5.000000e-01 : f32
    %135 = vector.broadcast %cst_60 : f32 to vector<8x32xf32>
    %136 = arith.addf %134, %135 : vector<8x32xf32>
    %137 = arith.mulf %126, %56 : vector<8x32xf32>
    %138 = arith.mulf %118, %128 : vector<8x32xf32>
    %139 = arith.addf %137, %138 : vector<8x32xf32>
    %140 = math.tanh %139 : vector<8x32xf32>
    %141 = arith.mulf %136, %140 : vector<8x32xf32>
    %142 = vector.extract_strided_slice %110 {offsets = [0, 0], sizes = [8, 32], strides = [1, 1]} : vector<8x128xf32> to vector<8x32xf32>
    %cst_61 = arith.constant 5.000000e-01 : f32
    %143 = vector.broadcast %cst_61 : f32 to vector<8x32xf32>
    %144 = arith.mulf %143, %142 : vector<8x32xf32>
    %145 = math.tanh %144 : vector<8x32xf32>
    %cst_62 = arith.constant 5.000000e-01 : f32
    %146 = vector.broadcast %cst_62 : f32 to vector<8x32xf32>
    %147 = arith.mulf %146, %145 : vector<8x32xf32>
    %cst_63 = arith.constant 5.000000e-01 : f32
    %148 = vector.broadcast %cst_63 : f32 to vector<8x32xf32>
    %149 = arith.addf %147, %148 : vector<8x32xf32>
    %150 = vector.extract_strided_slice %110 {offsets = [0, 32], sizes = [8, 32], strides = [1, 1]} : vector<8x128xf32> to vector<8x32xf32>
    %cst_64 = arith.constant 5.000000e-01 : f32
    %151 = vector.broadcast %cst_64 : f32 to vector<8x32xf32>
    %152 = arith.mulf %151, %150 : vector<8x32xf32>
    %153 = math.tanh %152 : vector<8x32xf32>
    %cst_65 = arith.constant 5.000000e-01 : f32
    %154 = vector.broadcast %cst_65 : f32 to vector<8x32xf32>
    %155 = arith.mulf %154, %153 : vector<8x32xf32>
    %cst_66 = arith.constant 5.000000e-01 : f32
    %156 = vector.broadcast %cst_66 : f32 to vector<8x32xf32>
    %157 = arith.addf %155, %156 : vector<8x32xf32>
    %158 = vector.extract_strided_slice %110 {offsets = [0, 64], sizes = [8, 32], strides = [1, 1]} : vector<8x128xf32> to vector<8x32xf32>
    %159 = math.tanh %158 : vector<8x32xf32>
    %160 = vector.extract_strided_slice %110 {offsets = [0, 96], sizes = [8, 32], strides = [1, 1]} : vector<8x128xf32> to vector<8x32xf32>
    %cst_67 = arith.constant 5.000000e-01 : f32
    %161 = vector.broadcast %cst_67 : f32 to vector<8x32xf32>
    %162 = arith.mulf %161, %160 : vector<8x32xf32>
    %163 = math.tanh %162 : vector<8x32xf32>
    %cst_68 = arith.constant 5.000000e-01 : f32
    %164 = vector.broadcast %cst_68 : f32 to vector<8x32xf32>
    %165 = arith.mulf %164, %163 : vector<8x32xf32>
    %cst_69 = arith.constant 5.000000e-01 : f32
    %166 = vector.broadcast %cst_69 : f32 to vector<8x32xf32>
    %167 = arith.addf %165, %166 : vector<8x32xf32>
    %168 = arith.mulf %157, %87 : vector<8x32xf32>
    %169 = arith.mulf %149, %159 : vector<8x32xf32>
    %170 = arith.addf %168, %169 : vector<8x32xf32>
    %171 = math.tanh %170 : vector<8x32xf32>
    %172 = arith.mulf %167, %171 : vector<8x32xf32>
    %c2_i32 = arith.constant 2 : i32
    %173 = vector.broadcast %c2_i32 : i32 to vector<8x1xi32>
    %174 = arith.cmpi eq, %6, %173 : vector<8x1xi32>
    %175 = vector.shape_cast %174 : vector<8x1xi1> to vector<8x1xi1>
    %176 = vector.broadcast %175 : vector<8x1xi1> to vector<8x32xi1>
    %177 = arith.select %176, %141, %94 : vector<8x32xi1>, vector<8x32xf32>
    %c2 = arith.constant 2 : index
    %c0_70 = arith.constant 0 : index
    %c0_71 = arith.constant 0 : index
    %178 = vector.load %arg2[%c2, %c0_70, %c0_71] : memref<8x8x16xbf16, #tpu.memory_space<vmem>>, vector<1x8x16xbf16>
    %179 = vector.shape_cast %178 : vector<1x8x16xbf16> to vector<8x16xbf16>
    %cst_72 = arith.constant dense<0.000000e+00> : vector<8x128xf32>
    %180 = tpu.matmul %179, %0, %cst_72 {dimension_numbers = #tpu.dot_dimension_numbers<[1], [0], [0], [1], [0, 0, 1, 1], [], []>} : vector<8x16xbf16>, vector<16x128xbf16>, vector<8x128xf32> -> vector<8x128xf32>
    %c5 = arith.constant 5 : index
    %c0_73 = arith.constant 0 : index
    %c0_74 = arith.constant 0 : index
    %181 = vector.load %arg2[%c5, %c0_73, %c0_74] : memref<8x8x16xbf16, #tpu.memory_space<vmem>>, vector<1x8x16xbf16>
    %182 = vector.shape_cast %181 : vector<1x8x16xbf16> to vector<8x16xbf16>
    %cst_75 = arith.constant dense<0.000000e+00> : vector<8x128xf32>
    %183 = tpu.matmul %182, %1, %cst_75 {dimension_numbers = #tpu.dot_dimension_numbers<[1], [0], [0], [1], [0, 0, 1, 1], [], []>} : vector<8x16xbf16>, vector<16x128xbf16>, vector<8x128xf32> -> vector<8x128xf32>
    %184 = vector.broadcast %4 : vector<1x128xf32> to vector<8x128xf32>
    %185 = arith.addf %180, %184 : vector<8x128xf32>
    %186 = arith.truncf %141 : vector<8x32xf32> to vector<8x32xbf16>
    %cst_76 = arith.constant dense<0.000000e+00> : vector<8x128xf32>
    %187 = tpu.matmul %186, %2, %cst_76 {dimension_numbers = #tpu.dot_dimension_numbers<[1], [0], [0], [1], [0, 0, 1, 1], [], []>} : vector<8x32xbf16>, vector<32x128xbf16>, vector<8x128xf32> -> vector<8x128xf32>
    %188 = arith.addf %185, %187 : vector<8x128xf32>
    %189 = vector.broadcast %5 : vector<1x128xf32> to vector<8x128xf32>
    %190 = arith.addf %183, %189 : vector<8x128xf32>
    %191 = arith.truncf %172 : vector<8x32xf32> to vector<8x32xbf16>
    %cst_77 = arith.constant dense<0.000000e+00> : vector<8x128xf32>
    %192 = tpu.matmul %191, %3, %cst_77 {dimension_numbers = #tpu.dot_dimension_numbers<[1], [0], [0], [1], [0, 0, 1, 1], [], []>} : vector<8x32xbf16>, vector<32x128xbf16>, vector<8x128xf32> -> vector<8x128xf32>
    %193 = arith.addf %190, %192 : vector<8x128xf32>
    %194 = vector.extract_strided_slice %188 {offsets = [0, 0], sizes = [8, 32], strides = [1, 1]} : vector<8x128xf32> to vector<8x32xf32>
    %cst_78 = arith.constant 5.000000e-01 : f32
    %195 = vector.broadcast %cst_78 : f32 to vector<8x32xf32>
    %196 = arith.mulf %195, %194 : vector<8x32xf32>
    %197 = math.tanh %196 : vector<8x32xf32>
    %cst_79 = arith.constant 5.000000e-01 : f32
    %198 = vector.broadcast %cst_79 : f32 to vector<8x32xf32>
    %199 = arith.mulf %198, %197 : vector<8x32xf32>
    %cst_80 = arith.constant 5.000000e-01 : f32
    %200 = vector.broadcast %cst_80 : f32 to vector<8x32xf32>
    %201 = arith.addf %199, %200 : vector<8x32xf32>
    %202 = vector.extract_strided_slice %188 {offsets = [0, 32], sizes = [8, 32], strides = [1, 1]} : vector<8x128xf32> to vector<8x32xf32>
    %cst_81 = arith.constant 5.000000e-01 : f32
    %203 = vector.broadcast %cst_81 : f32 to vector<8x32xf32>
    %204 = arith.mulf %203, %202 : vector<8x32xf32>
    %205 = math.tanh %204 : vector<8x32xf32>
    %cst_82 = arith.constant 5.000000e-01 : f32
    %206 = vector.broadcast %cst_82 : f32 to vector<8x32xf32>
    %207 = arith.mulf %206, %205 : vector<8x32xf32>
    %cst_83 = arith.constant 5.000000e-01 : f32
    %208 = vector.broadcast %cst_83 : f32 to vector<8x32xf32>
    %209 = arith.addf %207, %208 : vector<8x32xf32>
    %210 = vector.extract_strided_slice %188 {offsets = [0, 64], sizes = [8, 32], strides = [1, 1]} : vector<8x128xf32> to vector<8x32xf32>
    %211 = math.tanh %210 : vector<8x32xf32>
    %212 = vector.extract_strided_slice %188 {offsets = [0, 96], sizes = [8, 32], strides = [1, 1]} : vector<8x128xf32> to vector<8x32xf32>
    %cst_84 = arith.constant 5.000000e-01 : f32
    %213 = vector.broadcast %cst_84 : f32 to vector<8x32xf32>
    %214 = arith.mulf %213, %212 : vector<8x32xf32>
    %215 = math.tanh %214 : vector<8x32xf32>
    %cst_85 = arith.constant 5.000000e-01 : f32
    %216 = vector.broadcast %cst_85 : f32 to vector<8x32xf32>
    %217 = arith.mulf %216, %215 : vector<8x32xf32>
    %cst_86 = arith.constant 5.000000e-01 : f32
    %218 = vector.broadcast %cst_86 : f32 to vector<8x32xf32>
    %219 = arith.addf %217, %218 : vector<8x32xf32>
    %220 = arith.mulf %209, %139 : vector<8x32xf32>
    %221 = arith.mulf %201, %211 : vector<8x32xf32>
    %222 = arith.addf %220, %221 : vector<8x32xf32>
    %223 = math.tanh %222 : vector<8x32xf32>
    %224 = arith.mulf %219, %223 : vector<8x32xf32>
    %225 = vector.extract_strided_slice %193 {offsets = [0, 0], sizes = [8, 32], strides = [1, 1]} : vector<8x128xf32> to vector<8x32xf32>
    %cst_87 = arith.constant 5.000000e-01 : f32
    %226 = vector.broadcast %cst_87 : f32 to vector<8x32xf32>
    %227 = arith.mulf %226, %225 : vector<8x32xf32>
    %228 = math.tanh %227 : vector<8x32xf32>
    %cst_88 = arith.constant 5.000000e-01 : f32
    %229 = vector.broadcast %cst_88 : f32 to vector<8x32xf32>
    %230 = arith.mulf %229, %228 : vector<8x32xf32>
    %cst_89 = arith.constant 5.000000e-01 : f32
    %231 = vector.broadcast %cst_89 : f32 to vector<8x32xf32>
    %232 = arith.addf %230, %231 : vector<8x32xf32>
    %233 = vector.extract_strided_slice %193 {offsets = [0, 32], sizes = [8, 32], strides = [1, 1]} : vector<8x128xf32> to vector<8x32xf32>
    %cst_90 = arith.constant 5.000000e-01 : f32
    %234 = vector.broadcast %cst_90 : f32 to vector<8x32xf32>
    %235 = arith.mulf %234, %233 : vector<8x32xf32>
    %236 = math.tanh %235 : vector<8x32xf32>
    %cst_91 = arith.constant 5.000000e-01 : f32
    %237 = vector.broadcast %cst_91 : f32 to vector<8x32xf32>
    %238 = arith.mulf %237, %236 : vector<8x32xf32>
    %cst_92 = arith.constant 5.000000e-01 : f32
    %239 = vector.broadcast %cst_92 : f32 to vector<8x32xf32>
    %240 = arith.addf %238, %239 : vector<8x32xf32>
    %241 = vector.extract_strided_slice %193 {offsets = [0, 64], sizes = [8, 32], strides = [1, 1]} : vector<8x128xf32> to vector<8x32xf32>
    %242 = math.tanh %241 : vector<8x32xf32>
    %243 = vector.extract_strided_slice %193 {offsets = [0, 96], sizes = [8, 32], strides = [1, 1]} : vector<8x128xf32> to vector<8x32xf32>
    %cst_93 = arith.constant 5.000000e-01 : f32
    %244 = vector.broadcast %cst_93 : f32 to vector<8x32xf32>
    %245 = arith.mulf %244, %243 : vector<8x32xf32>
    %246 = math.tanh %245 : vector<8x32xf32>
    %cst_94 = arith.constant 5.000000e-01 : f32
    %247 = vector.broadcast %cst_94 : f32 to vector<8x32xf32>
    %248 = arith.mulf %247, %246 : vector<8x32xf32>
    %cst_95 = arith.constant 5.000000e-01 : f32
    %249 = vector.broadcast %cst_95 : f32 to vector<8x32xf32>
    %250 = arith.addf %248, %249 : vector<8x32xf32>
    %251 = arith.mulf %240, %170 : vector<8x32xf32>
    %252 = arith.mulf %232, %242 : vector<8x32xf32>
    %253 = arith.addf %251, %252 : vector<8x32xf32>
    %254 = math.tanh %253 : vector<8x32xf32>
    %255 = arith.mulf %250, %254 : vector<8x32xf32>
    %c3_i32 = arith.constant 3 : i32
    %256 = vector.broadcast %c3_i32 : i32 to vector<8x1xi32>
    %257 = arith.cmpi eq, %6, %256 : vector<8x1xi32>
    %258 = vector.shape_cast %257 : vector<8x1xi1> to vector<8x1xi1>
    %259 = vector.broadcast %258 : vector<8x1xi1> to vector<8x32xi1>
    %260 = arith.select %259, %224, %177 : vector<8x32xi1>, vector<8x32xf32>
    %c3 = arith.constant 3 : index
    %c0_96 = arith.constant 0 : index
    %c0_97 = arith.constant 0 : index
    %261 = vector.load %arg2[%c3, %c0_96, %c0_97] : memref<8x8x16xbf16, #tpu.memory_space<vmem>>, vector<1x8x16xbf16>
    %262 = vector.shape_cast %261 : vector<1x8x16xbf16> to vector<8x16xbf16>
    %cst_98 = arith.constant dense<0.000000e+00> : vector<8x128xf32>
    %263 = tpu.matmul %262, %0, %cst_98 {dimension_numbers = #tpu.dot_dimension_numbers<[1], [0], [0], [1], [0, 0, 1, 1], [], []>} : vector<8x16xbf16>, vector<16x128xbf16>, vector<8x128xf32> -> vector<8x128xf32>
    %c4 = arith.constant 4 : index
    %c0_99 = arith.constant 0 : index
    %c0_100 = arith.constant 0 : index
    %264 = vector.load %arg2[%c4, %c0_99, %c0_100] : memref<8x8x16xbf16, #tpu.memory_space<vmem>>, vector<1x8x16xbf16>
    %265 = vector.shape_cast %264 : vector<1x8x16xbf16> to vector<8x16xbf16>
    %cst_101 = arith.constant dense<0.000000e+00> : vector<8x128xf32>
    %266 = tpu.matmul %265, %1, %cst_101 {dimension_numbers = #tpu.dot_dimension_numbers<[1], [0], [0], [1], [0, 0, 1, 1], [], []>} : vector<8x16xbf16>, vector<16x128xbf16>, vector<8x128xf32> -> vector<8x128xf32>
    %267 = vector.broadcast %4 : vector<1x128xf32> to vector<8x128xf32>
    %268 = arith.addf %263, %267 : vector<8x128xf32>
    %269 = arith.truncf %224 : vector<8x32xf32> to vector<8x32xbf16>
    %cst_102 = arith.constant dense<0.000000e+00> : vector<8x128xf32>
    %270 = tpu.matmul %269, %2, %cst_102 {dimension_numbers = #tpu.dot_dimension_numbers<[1], [0], [0], [1], [0, 0, 1, 1], [], []>} : vector<8x32xbf16>, vector<32x128xbf16>, vector<8x128xf32> -> vector<8x128xf32>
    %271 = arith.addf %268, %270 : vector<8x128xf32>
    %272 = vector.broadcast %5 : vector<1x128xf32> to vector<8x128xf32>
    %273 = arith.addf %266, %272 : vector<8x128xf32>
    %274 = arith.truncf %255 : vector<8x32xf32> to vector<8x32xbf16>
    %cst_103 = arith.constant dense<0.000000e+00> : vector<8x128xf32>
    %275 = tpu.matmul %274, %3, %cst_103 {dimension_numbers = #tpu.dot_dimension_numbers<[1], [0], [0], [1], [0, 0, 1, 1], [], []>} : vector<8x32xbf16>, vector<32x128xbf16>, vector<8x128xf32> -> vector<8x128xf32>
    %276 = arith.addf %273, %275 : vector<8x128xf32>
    %277 = vector.extract_strided_slice %271 {offsets = [0, 0], sizes = [8, 32], strides = [1, 1]} : vector<8x128xf32> to vector<8x32xf32>
    %cst_104 = arith.constant 5.000000e-01 : f32
    %278 = vector.broadcast %cst_104 : f32 to vector<8x32xf32>
    %279 = arith.mulf %278, %277 : vector<8x32xf32>
    %280 = math.tanh %279 : vector<8x32xf32>
    %cst_105 = arith.constant 5.000000e-01 : f32
    %281 = vector.broadcast %cst_105 : f32 to vector<8x32xf32>
    %282 = arith.mulf %281, %280 : vector<8x32xf32>
    %cst_106 = arith.constant 5.000000e-01 : f32
    %283 = vector.broadcast %cst_106 : f32 to vector<8x32xf32>
    %284 = arith.addf %282, %283 : vector<8x32xf32>
    %285 = vector.extract_strided_slice %271 {offsets = [0, 32], sizes = [8, 32], strides = [1, 1]} : vector<8x128xf32> to vector<8x32xf32>
    %cst_107 = arith.constant 5.000000e-01 : f32
    %286 = vector.broadcast %cst_107 : f32 to vector<8x32xf32>
    %287 = arith.mulf %286, %285 : vector<8x32xf32>
    %288 = math.tanh %287 : vector<8x32xf32>
    %cst_108 = arith.constant 5.000000e-01 : f32
    %289 = vector.broadcast %cst_108 : f32 to vector<8x32xf32>
    %290 = arith.mulf %289, %288 : vector<8x32xf32>
    %cst_109 = arith.constant 5.000000e-01 : f32
    %291 = vector.broadcast %cst_109 : f32 to vector<8x32xf32>
    %292 = arith.addf %290, %291 : vector<8x32xf32>
    %293 = vector.extract_strided_slice %271 {offsets = [0, 64], sizes = [8, 32], strides = [1, 1]} : vector<8x128xf32> to vector<8x32xf32>
    %294 = math.tanh %293 : vector<8x32xf32>
    %295 = vector.extract_strided_slice %271 {offsets = [0, 96], sizes = [8, 32], strides = [1, 1]} : vector<8x128xf32> to vector<8x32xf32>
    %cst_110 = arith.constant 5.000000e-01 : f32
    %296 = vector.broadcast %cst_110 : f32 to vector<8x32xf32>
    %297 = arith.mulf %296, %295 : vector<8x32xf32>
    %298 = math.tanh %297 : vector<8x32xf32>
    %cst_111 = arith.constant 5.000000e-01 : f32
    %299 = vector.broadcast %cst_111 : f32 to vector<8x32xf32>
    %300 = arith.mulf %299, %298 : vector<8x32xf32>
    %cst_112 = arith.constant 5.000000e-01 : f32
    %301 = vector.broadcast %cst_112 : f32 to vector<8x32xf32>
    %302 = arith.addf %300, %301 : vector<8x32xf32>
    %303 = arith.mulf %292, %222 : vector<8x32xf32>
    %304 = arith.mulf %284, %294 : vector<8x32xf32>
    %305 = arith.addf %303, %304 : vector<8x32xf32>
    %306 = math.tanh %305 : vector<8x32xf32>
    %307 = arith.mulf %302, %306 : vector<8x32xf32>
    %308 = vector.extract_strided_slice %276 {offsets = [0, 0], sizes = [8, 32], strides = [1, 1]} : vector<8x128xf32> to vector<8x32xf32>
    %cst_113 = arith.constant 5.000000e-01 : f32
    %309 = vector.broadcast %cst_113 : f32 to vector<8x32xf32>
    %310 = arith.mulf %309, %308 : vector<8x32xf32>
    %311 = math.tanh %310 : vector<8x32xf32>
    %cst_114 = arith.constant 5.000000e-01 : f32
    %312 = vector.broadcast %cst_114 : f32 to vector<8x32xf32>
    %313 = arith.mulf %312, %311 : vector<8x32xf32>
    %cst_115 = arith.constant 5.000000e-01 : f32
    %314 = vector.broadcast %cst_115 : f32 to vector<8x32xf32>
    %315 = arith.addf %313, %314 : vector<8x32xf32>
    %316 = vector.extract_strided_slice %276 {offsets = [0, 32], sizes = [8, 32], strides = [1, 1]} : vector<8x128xf32> to vector<8x32xf32>
    %cst_116 = arith.constant 5.000000e-01 : f32
    %317 = vector.broadcast %cst_116 : f32 to vector<8x32xf32>
    %318 = arith.mulf %317, %316 : vector<8x32xf32>
    %319 = math.tanh %318 : vector<8x32xf32>
    %cst_117 = arith.constant 5.000000e-01 : f32
    %320 = vector.broadcast %cst_117 : f32 to vector<8x32xf32>
    %321 = arith.mulf %320, %319 : vector<8x32xf32>
    %cst_118 = arith.constant 5.000000e-01 : f32
    %322 = vector.broadcast %cst_118 : f32 to vector<8x32xf32>
    %323 = arith.addf %321, %322 : vector<8x32xf32>
    %324 = vector.extract_strided_slice %276 {offsets = [0, 64], sizes = [8, 32], strides = [1, 1]} : vector<8x128xf32> to vector<8x32xf32>
    %325 = math.tanh %324 : vector<8x32xf32>
    %326 = vector.extract_strided_slice %276 {offsets = [0, 96], sizes = [8, 32], strides = [1, 1]} : vector<8x128xf32> to vector<8x32xf32>
    %cst_119 = arith.constant 5.000000e-01 : f32
    %327 = vector.broadcast %cst_119 : f32 to vector<8x32xf32>
    %328 = arith.mulf %327, %326 : vector<8x32xf32>
    %329 = math.tanh %328 : vector<8x32xf32>
    %cst_120 = arith.constant 5.000000e-01 : f32
    %330 = vector.broadcast %cst_120 : f32 to vector<8x32xf32>
    %331 = arith.mulf %330, %329 : vector<8x32xf32>
    %cst_121 = arith.constant 5.000000e-01 : f32
    %332 = vector.broadcast %cst_121 : f32 to vector<8x32xf32>
    %333 = arith.addf %331, %332 : vector<8x32xf32>
    %334 = arith.mulf %323, %253 : vector<8x32xf32>
    %335 = arith.mulf %315, %325 : vector<8x32xf32>
    %336 = arith.addf %334, %335 : vector<8x32xf32>
    %337 = math.tanh %336 : vector<8x32xf32>
    %338 = arith.mulf %333, %337 : vector<8x32xf32>
    %c4_i32 = arith.constant 4 : i32
    %339 = vector.broadcast %c4_i32 : i32 to vector<8x1xi32>
    %340 = arith.cmpi eq, %6, %339 : vector<8x1xi32>
    %341 = vector.shape_cast %340 : vector<8x1xi1> to vector<8x1xi1>
    %342 = vector.broadcast %341 : vector<8x1xi1> to vector<8x32xi1>
    %343 = arith.select %342, %307, %260 : vector<8x32xi1>, vector<8x32xf32>
    %c4_122 = arith.constant 4 : index
    %c0_123 = arith.constant 0 : index
    %c0_124 = arith.constant 0 : index
    %344 = vector.load %arg2[%c4_122, %c0_123, %c0_124] : memref<8x8x16xbf16, #tpu.memory_space<vmem>>, vector<1x8x16xbf16>
    %345 = vector.shape_cast %344 : vector<1x8x16xbf16> to vector<8x16xbf16>
    %cst_125 = arith.constant dense<0.000000e+00> : vector<8x128xf32>
    %346 = tpu.matmul %345, %0, %cst_125 {dimension_numbers = #tpu.dot_dimension_numbers<[1], [0], [0], [1], [0, 0, 1, 1], [], []>} : vector<8x16xbf16>, vector<16x128xbf16>, vector<8x128xf32> -> vector<8x128xf32>
    %c3_126 = arith.constant 3 : index
    %c0_127 = arith.constant 0 : index
    %c0_128 = arith.constant 0 : index
    %347 = vector.load %arg2[%c3_126, %c0_127, %c0_128] : memref<8x8x16xbf16, #tpu.memory_space<vmem>>, vector<1x8x16xbf16>
    %348 = vector.shape_cast %347 : vector<1x8x16xbf16> to vector<8x16xbf16>
    %cst_129 = arith.constant dense<0.000000e+00> : vector<8x128xf32>
    %349 = tpu.matmul %348, %1, %cst_129 {dimension_numbers = #tpu.dot_dimension_numbers<[1], [0], [0], [1], [0, 0, 1, 1], [], []>} : vector<8x16xbf16>, vector<16x128xbf16>, vector<8x128xf32> -> vector<8x128xf32>
    %350 = vector.broadcast %4 : vector<1x128xf32> to vector<8x128xf32>
    %351 = arith.addf %346, %350 : vector<8x128xf32>
    %352 = arith.truncf %307 : vector<8x32xf32> to vector<8x32xbf16>
    %cst_130 = arith.constant dense<0.000000e+00> : vector<8x128xf32>
    %353 = tpu.matmul %352, %2, %cst_130 {dimension_numbers = #tpu.dot_dimension_numbers<[1], [0], [0], [1], [0, 0, 1, 1], [], []>} : vector<8x32xbf16>, vector<32x128xbf16>, vector<8x128xf32> -> vector<8x128xf32>
    %354 = arith.addf %351, %353 : vector<8x128xf32>
    %355 = vector.broadcast %5 : vector<1x128xf32> to vector<8x128xf32>
    %356 = arith.addf %349, %355 : vector<8x128xf32>
    %357 = arith.truncf %338 : vector<8x32xf32> to vector<8x32xbf16>
    %cst_131 = arith.constant dense<0.000000e+00> : vector<8x128xf32>
    %358 = tpu.matmul %357, %3, %cst_131 {dimension_numbers = #tpu.dot_dimension_numbers<[1], [0], [0], [1], [0, 0, 1, 1], [], []>} : vector<8x32xbf16>, vector<32x128xbf16>, vector<8x128xf32> -> vector<8x128xf32>
    %359 = arith.addf %356, %358 : vector<8x128xf32>
    %360 = vector.extract_strided_slice %354 {offsets = [0, 0], sizes = [8, 32], strides = [1, 1]} : vector<8x128xf32> to vector<8x32xf32>
    %cst_132 = arith.constant 5.000000e-01 : f32
    %361 = vector.broadcast %cst_132 : f32 to vector<8x32xf32>
    %362 = arith.mulf %361, %360 : vector<8x32xf32>
    %363 = math.tanh %362 : vector<8x32xf32>
    %cst_133 = arith.constant 5.000000e-01 : f32
    %364 = vector.broadcast %cst_133 : f32 to vector<8x32xf32>
    %365 = arith.mulf %364, %363 : vector<8x32xf32>
    %cst_134 = arith.constant 5.000000e-01 : f32
    %366 = vector.broadcast %cst_134 : f32 to vector<8x32xf32>
    %367 = arith.addf %365, %366 : vector<8x32xf32>
    %368 = vector.extract_strided_slice %354 {offsets = [0, 32], sizes = [8, 32], strides = [1, 1]} : vector<8x128xf32> to vector<8x32xf32>
    %cst_135 = arith.constant 5.000000e-01 : f32
    %369 = vector.broadcast %cst_135 : f32 to vector<8x32xf32>
    %370 = arith.mulf %369, %368 : vector<8x32xf32>
    %371 = math.tanh %370 : vector<8x32xf32>
    %cst_136 = arith.constant 5.000000e-01 : f32
    %372 = vector.broadcast %cst_136 : f32 to vector<8x32xf32>
    %373 = arith.mulf %372, %371 : vector<8x32xf32>
    %cst_137 = arith.constant 5.000000e-01 : f32
    %374 = vector.broadcast %cst_137 : f32 to vector<8x32xf32>
    %375 = arith.addf %373, %374 : vector<8x32xf32>
    %376 = vector.extract_strided_slice %354 {offsets = [0, 64], sizes = [8, 32], strides = [1, 1]} : vector<8x128xf32> to vector<8x32xf32>
    %377 = math.tanh %376 : vector<8x32xf32>
    %378 = vector.extract_strided_slice %354 {offsets = [0, 96], sizes = [8, 32], strides = [1, 1]} : vector<8x128xf32> to vector<8x32xf32>
    %cst_138 = arith.constant 5.000000e-01 : f32
    %379 = vector.broadcast %cst_138 : f32 to vector<8x32xf32>
    %380 = arith.mulf %379, %378 : vector<8x32xf32>
    %381 = math.tanh %380 : vector<8x32xf32>
    %cst_139 = arith.constant 5.000000e-01 : f32
    %382 = vector.broadcast %cst_139 : f32 to vector<8x32xf32>
    %383 = arith.mulf %382, %381 : vector<8x32xf32>
    %cst_140 = arith.constant 5.000000e-01 : f32
    %384 = vector.broadcast %cst_140 : f32 to vector<8x32xf32>
    %385 = arith.addf %383, %384 : vector<8x32xf32>
    %386 = arith.mulf %375, %305 : vector<8x32xf32>
    %387 = arith.mulf %367, %377 : vector<8x32xf32>
    %388 = arith.addf %386, %387 : vector<8x32xf32>
    %389 = math.tanh %388 : vector<8x32xf32>
    %390 = arith.mulf %385, %389 : vector<8x32xf32>
    %391 = vector.extract_strided_slice %359 {offsets = [0, 0], sizes = [8, 32], strides = [1, 1]} : vector<8x128xf32> to vector<8x32xf32>
    %cst_141 = arith.constant 5.000000e-01 : f32
    %392 = vector.broadcast %cst_141 : f32 to vector<8x32xf32>
    %393 = arith.mulf %392, %391 : vector<8x32xf32>
    %394 = math.tanh %393 : vector<8x32xf32>
    %cst_142 = arith.constant 5.000000e-01 : f32
    %395 = vector.broadcast %cst_142 : f32 to vector<8x32xf32>
    %396 = arith.mulf %395, %394 : vector<8x32xf32>
    %cst_143 = arith.constant 5.000000e-01 : f32
    %397 = vector.broadcast %cst_143 : f32 to vector<8x32xf32>
    %398 = arith.addf %396, %397 : vector<8x32xf32>
    %399 = vector.extract_strided_slice %359 {offsets = [0, 32], sizes = [8, 32], strides = [1, 1]} : vector<8x128xf32> to vector<8x32xf32>
    %cst_144 = arith.constant 5.000000e-01 : f32
    %400 = vector.broadcast %cst_144 : f32 to vector<8x32xf32>
    %401 = arith.mulf %400, %399 : vector<8x32xf32>
    %402 = math.tanh %401 : vector<8x32xf32>
    %cst_145 = arith.constant 5.000000e-01 : f32
    %403 = vector.broadcast %cst_145 : f32 to vector<8x32xf32>
    %404 = arith.mulf %403, %402 : vector<8x32xf32>
    %cst_146 = arith.constant 5.000000e-01 : f32
    %405 = vector.broadcast %cst_146 : f32 to vector<8x32xf32>
    %406 = arith.addf %404, %405 : vector<8x32xf32>
    %407 = vector.extract_strided_slice %359 {offsets = [0, 64], sizes = [8, 32], strides = [1, 1]} : vector<8x128xf32> to vector<8x32xf32>
    %408 = math.tanh %407 : vector<8x32xf32>
    %409 = vector.extract_strided_slice %359 {offsets = [0, 96], sizes = [8, 32], strides = [1, 1]} : vector<8x128xf32> to vector<8x32xf32>
    %cst_147 = arith.constant 5.000000e-01 : f32
    %410 = vector.broadcast %cst_147 : f32 to vector<8x32xf32>
    %411 = arith.mulf %410, %409 : vector<8x32xf32>
    %412 = math.tanh %411 : vector<8x32xf32>
    %cst_148 = arith.constant 5.000000e-01 : f32
    %413 = vector.broadcast %cst_148 : f32 to vector<8x32xf32>
    %414 = arith.mulf %413, %412 : vector<8x32xf32>
    %cst_149 = arith.constant 5.000000e-01 : f32
    %415 = vector.broadcast %cst_149 : f32 to vector<8x32xf32>
    %416 = arith.addf %414, %415 : vector<8x32xf32>
    %417 = arith.mulf %406, %336 : vector<8x32xf32>
    %418 = arith.mulf %398, %408 : vector<8x32xf32>
    %419 = arith.addf %417, %418 : vector<8x32xf32>
    %420 = math.tanh %419 : vector<8x32xf32>
    %421 = arith.mulf %416, %420 : vector<8x32xf32>
    %c5_i32 = arith.constant 5 : i32
    %422 = vector.broadcast %c5_i32 : i32 to vector<8x1xi32>
    %423 = arith.cmpi eq, %6, %422 : vector<8x1xi32>
    %424 = vector.shape_cast %423 : vector<8x1xi1> to vector<8x1xi1>
    %425 = vector.broadcast %424 : vector<8x1xi1> to vector<8x32xi1>
    %426 = arith.select %425, %390, %343 : vector<8x32xi1>, vector<8x32xf32>
    %c5_150 = arith.constant 5 : index
    %c0_151 = arith.constant 0 : index
    %c0_152 = arith.constant 0 : index
    %427 = vector.load %arg2[%c5_150, %c0_151, %c0_152] : memref<8x8x16xbf16, #tpu.memory_space<vmem>>, vector<1x8x16xbf16>
    %428 = vector.shape_cast %427 : vector<1x8x16xbf16> to vector<8x16xbf16>
    %cst_153 = arith.constant dense<0.000000e+00> : vector<8x128xf32>
    %429 = tpu.matmul %428, %0, %cst_153 {dimension_numbers = #tpu.dot_dimension_numbers<[1], [0], [0], [1], [0, 0, 1, 1], [], []>} : vector<8x16xbf16>, vector<16x128xbf16>, vector<8x128xf32> -> vector<8x128xf32>
    %c2_154 = arith.constant 2 : index
    %c0_155 = arith.constant 0 : index
    %c0_156 = arith.constant 0 : index
    %430 = vector.load %arg2[%c2_154, %c0_155, %c0_156] : memref<8x8x16xbf16, #tpu.memory_space<vmem>>, vector<1x8x16xbf16>
    %431 = vector.shape_cast %430 : vector<1x8x16xbf16> to vector<8x16xbf16>
    %cst_157 = arith.constant dense<0.000000e+00> : vector<8x128xf32>
    %432 = tpu.matmul %431, %1, %cst_157 {dimension_numbers = #tpu.dot_dimension_numbers<[1], [0], [0], [1], [0, 0, 1, 1], [], []>} : vector<8x16xbf16>, vector<16x128xbf16>, vector<8x128xf32> -> vector<8x128xf32>
    %433 = vector.broadcast %4 : vector<1x128xf32> to vector<8x128xf32>
    %434 = arith.addf %429, %433 : vector<8x128xf32>
    %435 = arith.truncf %390 : vector<8x32xf32> to vector<8x32xbf16>
    %cst_158 = arith.constant dense<0.000000e+00> : vector<8x128xf32>
    %436 = tpu.matmul %435, %2, %cst_158 {dimension_numbers = #tpu.dot_dimension_numbers<[1], [0], [0], [1], [0, 0, 1, 1], [], []>} : vector<8x32xbf16>, vector<32x128xbf16>, vector<8x128xf32> -> vector<8x128xf32>
    %437 = arith.addf %434, %436 : vector<8x128xf32>
    %438 = vector.broadcast %5 : vector<1x128xf32> to vector<8x128xf32>
    %439 = arith.addf %432, %438 : vector<8x128xf32>
    %440 = arith.truncf %421 : vector<8x32xf32> to vector<8x32xbf16>
    %cst_159 = arith.constant dense<0.000000e+00> : vector<8x128xf32>
    %441 = tpu.matmul %440, %3, %cst_159 {dimension_numbers = #tpu.dot_dimension_numbers<[1], [0], [0], [1], [0, 0, 1, 1], [], []>} : vector<8x32xbf16>, vector<32x128xbf16>, vector<8x128xf32> -> vector<8x128xf32>
    %442 = arith.addf %439, %441 : vector<8x128xf32>
    %443 = vector.extract_strided_slice %437 {offsets = [0, 0], sizes = [8, 32], strides = [1, 1]} : vector<8x128xf32> to vector<8x32xf32>
    %cst_160 = arith.constant 5.000000e-01 : f32
    %444 = vector.broadcast %cst_160 : f32 to vector<8x32xf32>
    %445 = arith.mulf %444, %443 : vector<8x32xf32>
    %446 = math.tanh %445 : vector<8x32xf32>
    %cst_161 = arith.constant 5.000000e-01 : f32
    %447 = vector.broadcast %cst_161 : f32 to vector<8x32xf32>
    %448 = arith.mulf %447, %446 : vector<8x32xf32>
    %cst_162 = arith.constant 5.000000e-01 : f32
    %449 = vector.broadcast %cst_162 : f32 to vector<8x32xf32>
    %450 = arith.addf %448, %449 : vector<8x32xf32>
    %451 = vector.extract_strided_slice %437 {offsets = [0, 32], sizes = [8, 32], strides = [1, 1]} : vector<8x128xf32> to vector<8x32xf32>
    %cst_163 = arith.constant 5.000000e-01 : f32
    %452 = vector.broadcast %cst_163 : f32 to vector<8x32xf32>
    %453 = arith.mulf %452, %451 : vector<8x32xf32>
    %454 = math.tanh %453 : vector<8x32xf32>
    %cst_164 = arith.constant 5.000000e-01 : f32
    %455 = vector.broadcast %cst_164 : f32 to vector<8x32xf32>
    %456 = arith.mulf %455, %454 : vector<8x32xf32>
    %cst_165 = arith.constant 5.000000e-01 : f32
    %457 = vector.broadcast %cst_165 : f32 to vector<8x32xf32>
    %458 = arith.addf %456, %457 : vector<8x32xf32>
    %459 = vector.extract_strided_slice %437 {offsets = [0, 64], sizes = [8, 32], strides = [1, 1]} : vector<8x128xf32> to vector<8x32xf32>
    %460 = math.tanh %459 : vector<8x32xf32>
    %461 = vector.extract_strided_slice %437 {offsets = [0, 96], sizes = [8, 32], strides = [1, 1]} : vector<8x128xf32> to vector<8x32xf32>
    %cst_166 = arith.constant 5.000000e-01 : f32
    %462 = vector.broadcast %cst_166 : f32 to vector<8x32xf32>
    %463 = arith.mulf %462, %461 : vector<8x32xf32>
    %464 = math.tanh %463 : vector<8x32xf32>
    %cst_167 = arith.constant 5.000000e-01 : f32
    %465 = vector.broadcast %cst_167 : f32 to vector<8x32xf32>
    %466 = arith.mulf %465, %464 : vector<8x32xf32>
    %cst_168 = arith.constant 5.000000e-01 : f32
    %467 = vector.broadcast %cst_168 : f32 to vector<8x32xf32>
    %468 = arith.addf %466, %467 : vector<8x32xf32>
    %469 = arith.mulf %458, %388 : vector<8x32xf32>
    %470 = arith.mulf %450, %460 : vector<8x32xf32>
    %471 = arith.addf %469, %470 : vector<8x32xf32>
    %472 = math.tanh %471 : vector<8x32xf32>
    %473 = arith.mulf %468, %472 : vector<8x32xf32>
    %474 = vector.extract_strided_slice %442 {offsets = [0, 0], sizes = [8, 32], strides = [1, 1]} : vector<8x128xf32> to vector<8x32xf32>
    %cst_169 = arith.constant 5.000000e-01 : f32
    %475 = vector.broadcast %cst_169 : f32 to vector<8x32xf32>
    %476 = arith.mulf %475, %474 : vector<8x32xf32>
    %477 = math.tanh %476 : vector<8x32xf32>
    %cst_170 = arith.constant 5.000000e-01 : f32
    %478 = vector.broadcast %cst_170 : f32 to vector<8x32xf32>
    %479 = arith.mulf %478, %477 : vector<8x32xf32>
    %cst_171 = arith.constant 5.000000e-01 : f32
    %480 = vector.broadcast %cst_171 : f32 to vector<8x32xf32>
    %481 = arith.addf %479, %480 : vector<8x32xf32>
    %482 = vector.extract_strided_slice %442 {offsets = [0, 32], sizes = [8, 32], strides = [1, 1]} : vector<8x128xf32> to vector<8x32xf32>
    %cst_172 = arith.constant 5.000000e-01 : f32
    %483 = vector.broadcast %cst_172 : f32 to vector<8x32xf32>
    %484 = arith.mulf %483, %482 : vector<8x32xf32>
    %485 = math.tanh %484 : vector<8x32xf32>
    %cst_173 = arith.constant 5.000000e-01 : f32
    %486 = vector.broadcast %cst_173 : f32 to vector<8x32xf32>
    %487 = arith.mulf %486, %485 : vector<8x32xf32>
    %cst_174 = arith.constant 5.000000e-01 : f32
    %488 = vector.broadcast %cst_174 : f32 to vector<8x32xf32>
    %489 = arith.addf %487, %488 : vector<8x32xf32>
    %490 = vector.extract_strided_slice %442 {offsets = [0, 64], sizes = [8, 32], strides = [1, 1]} : vector<8x128xf32> to vector<8x32xf32>
    %491 = math.tanh %490 : vector<8x32xf32>
    %492 = vector.extract_strided_slice %442 {offsets = [0, 96], sizes = [8, 32], strides = [1, 1]} : vector<8x128xf32> to vector<8x32xf32>
    %cst_175 = arith.constant 5.000000e-01 : f32
    %493 = vector.broadcast %cst_175 : f32 to vector<8x32xf32>
    %494 = arith.mulf %493, %492 : vector<8x32xf32>
    %495 = math.tanh %494 : vector<8x32xf32>
    %cst_176 = arith.constant 5.000000e-01 : f32
    %496 = vector.broadcast %cst_176 : f32 to vector<8x32xf32>
    %497 = arith.mulf %496, %495 : vector<8x32xf32>
    %cst_177 = arith.constant 5.000000e-01 : f32
    %498 = vector.broadcast %cst_177 : f32 to vector<8x32xf32>
    %499 = arith.addf %497, %498 : vector<8x32xf32>
    %500 = arith.mulf %489, %419 : vector<8x32xf32>
    %501 = arith.mulf %481, %491 : vector<8x32xf32>
    %502 = arith.addf %500, %501 : vector<8x32xf32>
    %503 = math.tanh %502 : vector<8x32xf32>
    %504 = arith.mulf %499, %503 : vector<8x32xf32>
    %c6_i32 = arith.constant 6 : i32
    %505 = vector.broadcast %c6_i32 : i32 to vector<8x1xi32>
    %506 = arith.cmpi eq, %6, %505 : vector<8x1xi32>
    %507 = vector.shape_cast %506 : vector<8x1xi1> to vector<8x1xi1>
    %508 = vector.broadcast %507 : vector<8x1xi1> to vector<8x32xi1>
    %509 = arith.select %508, %473, %426 : vector<8x32xi1>, vector<8x32xf32>
    %c6_178 = arith.constant 6 : index
    %c0_179 = arith.constant 0 : index
    %c0_180 = arith.constant 0 : index
    %510 = vector.load %arg2[%c6_178, %c0_179, %c0_180] : memref<8x8x16xbf16, #tpu.memory_space<vmem>>, vector<1x8x16xbf16>
    %511 = vector.shape_cast %510 : vector<1x8x16xbf16> to vector<8x16xbf16>
    %cst_181 = arith.constant dense<0.000000e+00> : vector<8x128xf32>
    %512 = tpu.matmul %511, %0, %cst_181 {dimension_numbers = #tpu.dot_dimension_numbers<[1], [0], [0], [1], [0, 0, 1, 1], [], []>} : vector<8x16xbf16>, vector<16x128xbf16>, vector<8x128xf32> -> vector<8x128xf32>
    %c1_182 = arith.constant 1 : index
    %c0_183 = arith.constant 0 : index
    %c0_184 = arith.constant 0 : index
    %513 = vector.load %arg2[%c1_182, %c0_183, %c0_184] : memref<8x8x16xbf16, #tpu.memory_space<vmem>>, vector<1x8x16xbf16>
    %514 = vector.shape_cast %513 : vector<1x8x16xbf16> to vector<8x16xbf16>
    %cst_185 = arith.constant dense<0.000000e+00> : vector<8x128xf32>
    %515 = tpu.matmul %514, %1, %cst_185 {dimension_numbers = #tpu.dot_dimension_numbers<[1], [0], [0], [1], [0, 0, 1, 1], [], []>} : vector<8x16xbf16>, vector<16x128xbf16>, vector<8x128xf32> -> vector<8x128xf32>
    %516 = vector.broadcast %4 : vector<1x128xf32> to vector<8x128xf32>
    %517 = arith.addf %512, %516 : vector<8x128xf32>
    %518 = arith.truncf %473 : vector<8x32xf32> to vector<8x32xbf16>
    %cst_186 = arith.constant dense<0.000000e+00> : vector<8x128xf32>
    %519 = tpu.matmul %518, %2, %cst_186 {dimension_numbers = #tpu.dot_dimension_numbers<[1], [0], [0], [1], [0, 0, 1, 1], [], []>} : vector<8x32xbf16>, vector<32x128xbf16>, vector<8x128xf32> -> vector<8x128xf32>
    %520 = arith.addf %517, %519 : vector<8x128xf32>
    %521 = vector.broadcast %5 : vector<1x128xf32> to vector<8x128xf32>
    %522 = arith.addf %515, %521 : vector<8x128xf32>
    %523 = arith.truncf %504 : vector<8x32xf32> to vector<8x32xbf16>
    %cst_187 = arith.constant dense<0.000000e+00> : vector<8x128xf32>
    %524 = tpu.matmul %523, %3, %cst_187 {dimension_numbers = #tpu.dot_dimension_numbers<[1], [0], [0], [1], [0, 0, 1, 1], [], []>} : vector<8x32xbf16>, vector<32x128xbf16>, vector<8x128xf32> -> vector<8x128xf32>
    %525 = arith.addf %522, %524 : vector<8x128xf32>
    %526 = vector.extract_strided_slice %520 {offsets = [0, 0], sizes = [8, 32], strides = [1, 1]} : vector<8x128xf32> to vector<8x32xf32>
    %cst_188 = arith.constant 5.000000e-01 : f32
    %527 = vector.broadcast %cst_188 : f32 to vector<8x32xf32>
    %528 = arith.mulf %527, %526 : vector<8x32xf32>
    %529 = math.tanh %528 : vector<8x32xf32>
    %cst_189 = arith.constant 5.000000e-01 : f32
    %530 = vector.broadcast %cst_189 : f32 to vector<8x32xf32>
    %531 = arith.mulf %530, %529 : vector<8x32xf32>
    %cst_190 = arith.constant 5.000000e-01 : f32
    %532 = vector.broadcast %cst_190 : f32 to vector<8x32xf32>
    %533 = arith.addf %531, %532 : vector<8x32xf32>
    %534 = vector.extract_strided_slice %520 {offsets = [0, 32], sizes = [8, 32], strides = [1, 1]} : vector<8x128xf32> to vector<8x32xf32>
    %cst_191 = arith.constant 5.000000e-01 : f32
    %535 = vector.broadcast %cst_191 : f32 to vector<8x32xf32>
    %536 = arith.mulf %535, %534 : vector<8x32xf32>
    %537 = math.tanh %536 : vector<8x32xf32>
    %cst_192 = arith.constant 5.000000e-01 : f32
    %538 = vector.broadcast %cst_192 : f32 to vector<8x32xf32>
    %539 = arith.mulf %538, %537 : vector<8x32xf32>
    %cst_193 = arith.constant 5.000000e-01 : f32
    %540 = vector.broadcast %cst_193 : f32 to vector<8x32xf32>
    %541 = arith.addf %539, %540 : vector<8x32xf32>
    %542 = vector.extract_strided_slice %520 {offsets = [0, 64], sizes = [8, 32], strides = [1, 1]} : vector<8x128xf32> to vector<8x32xf32>
    %543 = math.tanh %542 : vector<8x32xf32>
    %544 = vector.extract_strided_slice %520 {offsets = [0, 96], sizes = [8, 32], strides = [1, 1]} : vector<8x128xf32> to vector<8x32xf32>
    %cst_194 = arith.constant 5.000000e-01 : f32
    %545 = vector.broadcast %cst_194 : f32 to vector<8x32xf32>
    %546 = arith.mulf %545, %544 : vector<8x32xf32>
    %547 = math.tanh %546 : vector<8x32xf32>
    %cst_195 = arith.constant 5.000000e-01 : f32
    %548 = vector.broadcast %cst_195 : f32 to vector<8x32xf32>
    %549 = arith.mulf %548, %547 : vector<8x32xf32>
    %cst_196 = arith.constant 5.000000e-01 : f32
    %550 = vector.broadcast %cst_196 : f32 to vector<8x32xf32>
    %551 = arith.addf %549, %550 : vector<8x32xf32>
    %552 = arith.mulf %541, %471 : vector<8x32xf32>
    %553 = arith.mulf %533, %543 : vector<8x32xf32>
    %554 = arith.addf %552, %553 : vector<8x32xf32>
    %555 = math.tanh %554 : vector<8x32xf32>
    %556 = arith.mulf %551, %555 : vector<8x32xf32>
    %557 = vector.extract_strided_slice %525 {offsets = [0, 0], sizes = [8, 32], strides = [1, 1]} : vector<8x128xf32> to vector<8x32xf32>
    %cst_197 = arith.constant 5.000000e-01 : f32
    %558 = vector.broadcast %cst_197 : f32 to vector<8x32xf32>
    %559 = arith.mulf %558, %557 : vector<8x32xf32>
    %560 = math.tanh %559 : vector<8x32xf32>
    %cst_198 = arith.constant 5.000000e-01 : f32
    %561 = vector.broadcast %cst_198 : f32 to vector<8x32xf32>
    %562 = arith.mulf %561, %560 : vector<8x32xf32>
    %cst_199 = arith.constant 5.000000e-01 : f32
    %563 = vector.broadcast %cst_199 : f32 to vector<8x32xf32>
    %564 = arith.addf %562, %563 : vector<8x32xf32>
    %565 = vector.extract_strided_slice %525 {offsets = [0, 32], sizes = [8, 32], strides = [1, 1]} : vector<8x128xf32> to vector<8x32xf32>
    %cst_200 = arith.constant 5.000000e-01 : f32
    %566 = vector.broadcast %cst_200 : f32 to vector<8x32xf32>
    %567 = arith.mulf %566, %565 : vector<8x32xf32>
    %568 = math.tanh %567 : vector<8x32xf32>
    %cst_201 = arith.constant 5.000000e-01 : f32
    %569 = vector.broadcast %cst_201 : f32 to vector<8x32xf32>
    %570 = arith.mulf %569, %568 : vector<8x32xf32>
    %cst_202 = arith.constant 5.000000e-01 : f32
    %571 = vector.broadcast %cst_202 : f32 to vector<8x32xf32>
    %572 = arith.addf %570, %571 : vector<8x32xf32>
    %573 = vector.extract_strided_slice %525 {offsets = [0, 64], sizes = [8, 32], strides = [1, 1]} : vector<8x128xf32> to vector<8x32xf32>
    %574 = math.tanh %573 : vector<8x32xf32>
    %575 = vector.extract_strided_slice %525 {offsets = [0, 96], sizes = [8, 32], strides = [1, 1]} : vector<8x128xf32> to vector<8x32xf32>
    %cst_203 = arith.constant 5.000000e-01 : f32
    %576 = vector.broadcast %cst_203 : f32 to vector<8x32xf32>
    %577 = arith.mulf %576, %575 : vector<8x32xf32>
    %578 = math.tanh %577 : vector<8x32xf32>
    %cst_204 = arith.constant 5.000000e-01 : f32
    %579 = vector.broadcast %cst_204 : f32 to vector<8x32xf32>
    %580 = arith.mulf %579, %578 : vector<8x32xf32>
    %cst_205 = arith.constant 5.000000e-01 : f32
    %581 = vector.broadcast %cst_205 : f32 to vector<8x32xf32>
    %582 = arith.addf %580, %581 : vector<8x32xf32>
    %583 = arith.mulf %572, %502 : vector<8x32xf32>
    %584 = arith.mulf %564, %574 : vector<8x32xf32>
    %585 = arith.addf %583, %584 : vector<8x32xf32>
    %586 = math.tanh %585 : vector<8x32xf32>
    %587 = arith.mulf %582, %586 : vector<8x32xf32>
    %c7_i32 = arith.constant 7 : i32
    %588 = vector.broadcast %c7_i32 : i32 to vector<8x1xi32>
    %589 = arith.cmpi eq, %6, %588 : vector<8x1xi32>
    %590 = vector.shape_cast %589 : vector<8x1xi1> to vector<8x1xi1>
    %591 = vector.broadcast %590 : vector<8x1xi1> to vector<8x32xi1>
    %592 = arith.select %591, %556, %509 : vector<8x32xi1>, vector<8x32xf32>
    %c7_206 = arith.constant 7 : index
    %c0_207 = arith.constant 0 : index
    %c0_208 = arith.constant 0 : index
    %593 = vector.load %arg2[%c7_206, %c0_207, %c0_208] : memref<8x8x16xbf16, #tpu.memory_space<vmem>>, vector<1x8x16xbf16>
    %594 = vector.shape_cast %593 : vector<1x8x16xbf16> to vector<8x16xbf16>
    %cst_209 = arith.constant dense<0.000000e+00> : vector<8x128xf32>
    %595 = tpu.matmul %594, %0, %cst_209 {dimension_numbers = #tpu.dot_dimension_numbers<[1], [0], [0], [1], [0, 0, 1, 1], [], []>} : vector<8x16xbf16>, vector<16x128xbf16>, vector<8x128xf32> -> vector<8x128xf32>
    %c0_210 = arith.constant 0 : index
    %c0_211 = arith.constant 0 : index
    %c0_212 = arith.constant 0 : index
    %596 = vector.load %arg2[%c0_210, %c0_211, %c0_212] : memref<8x8x16xbf16, #tpu.memory_space<vmem>>, vector<1x8x16xbf16>
    %597 = vector.shape_cast %596 : vector<1x8x16xbf16> to vector<8x16xbf16>
    %cst_213 = arith.constant dense<0.000000e+00> : vector<8x128xf32>
    %598 = tpu.matmul %597, %1, %cst_213 {dimension_numbers = #tpu.dot_dimension_numbers<[1], [0], [0], [1], [0, 0, 1, 1], [], []>} : vector<8x16xbf16>, vector<16x128xbf16>, vector<8x128xf32> -> vector<8x128xf32>
    %599 = vector.broadcast %4 : vector<1x128xf32> to vector<8x128xf32>
    %600 = arith.addf %595, %599 : vector<8x128xf32>
    %601 = arith.truncf %556 : vector<8x32xf32> to vector<8x32xbf16>
    %cst_214 = arith.constant dense<0.000000e+00> : vector<8x128xf32>
    %602 = tpu.matmul %601, %2, %cst_214 {dimension_numbers = #tpu.dot_dimension_numbers<[1], [0], [0], [1], [0, 0, 1, 1], [], []>} : vector<8x32xbf16>, vector<32x128xbf16>, vector<8x128xf32> -> vector<8x128xf32>
    %603 = arith.addf %600, %602 : vector<8x128xf32>
    %604 = vector.broadcast %5 : vector<1x128xf32> to vector<8x128xf32>
    %605 = arith.addf %598, %604 : vector<8x128xf32>
    %606 = arith.truncf %587 : vector<8x32xf32> to vector<8x32xbf16>
    %cst_215 = arith.constant dense<0.000000e+00> : vector<8x128xf32>
    %607 = tpu.matmul %606, %3, %cst_215 {dimension_numbers = #tpu.dot_dimension_numbers<[1], [0], [0], [1], [0, 0, 1, 1], [], []>} : vector<8x32xbf16>, vector<32x128xbf16>, vector<8x128xf32> -> vector<8x128xf32>
    %608 = arith.addf %605, %607 : vector<8x128xf32>
    %609 = vector.extract_strided_slice %603 {offsets = [0, 0], sizes = [8, 32], strides = [1, 1]} : vector<8x128xf32> to vector<8x32xf32>
    %cst_216 = arith.constant 5.000000e-01 : f32
    %610 = vector.broadcast %cst_216 : f32 to vector<8x32xf32>
    %611 = arith.mulf %610, %609 : vector<8x32xf32>
    %612 = math.tanh %611 : vector<8x32xf32>
    %cst_217 = arith.constant 5.000000e-01 : f32
    %613 = vector.broadcast %cst_217 : f32 to vector<8x32xf32>
    %614 = arith.mulf %613, %612 : vector<8x32xf32>
    %cst_218 = arith.constant 5.000000e-01 : f32
    %615 = vector.broadcast %cst_218 : f32 to vector<8x32xf32>
    %616 = arith.addf %614, %615 : vector<8x32xf32>
    %617 = vector.extract_strided_slice %603 {offsets = [0, 32], sizes = [8, 32], strides = [1, 1]} : vector<8x128xf32> to vector<8x32xf32>
    %cst_219 = arith.constant 5.000000e-01 : f32
    %618 = vector.broadcast %cst_219 : f32 to vector<8x32xf32>
    %619 = arith.mulf %618, %617 : vector<8x32xf32>
    %620 = math.tanh %619 : vector<8x32xf32>
    %cst_220 = arith.constant 5.000000e-01 : f32
    %621 = vector.broadcast %cst_220 : f32 to vector<8x32xf32>
    %622 = arith.mulf %621, %620 : vector<8x32xf32>
    %cst_221 = arith.constant 5.000000e-01 : f32
    %623 = vector.broadcast %cst_221 : f32 to vector<8x32xf32>
    %624 = arith.addf %622, %623 : vector<8x32xf32>
    %625 = vector.extract_strided_slice %603 {offsets = [0, 64], sizes = [8, 32], strides = [1, 1]} : vector<8x128xf32> to vector<8x32xf32>
    %626 = math.tanh %625 : vector<8x32xf32>
    %627 = vector.extract_strided_slice %603 {offsets = [0, 96], sizes = [8, 32], strides = [1, 1]} : vector<8x128xf32> to vector<8x32xf32>
    %cst_222 = arith.constant 5.000000e-01 : f32
    %628 = vector.broadcast %cst_222 : f32 to vector<8x32xf32>
    %629 = arith.mulf %628, %627 : vector<8x32xf32>
    %630 = math.tanh %629 : vector<8x32xf32>
    %cst_223 = arith.constant 5.000000e-01 : f32
    %631 = vector.broadcast %cst_223 : f32 to vector<8x32xf32>
    %632 = arith.mulf %631, %630 : vector<8x32xf32>
    %cst_224 = arith.constant 5.000000e-01 : f32
    %633 = vector.broadcast %cst_224 : f32 to vector<8x32xf32>
    %634 = arith.addf %632, %633 : vector<8x32xf32>
    %635 = arith.mulf %624, %554 : vector<8x32xf32>
    %636 = arith.mulf %616, %626 : vector<8x32xf32>
    %637 = arith.addf %635, %636 : vector<8x32xf32>
    %638 = math.tanh %637 : vector<8x32xf32>
    %639 = arith.mulf %634, %638 : vector<8x32xf32>
    %640 = vector.extract_strided_slice %608 {offsets = [0, 0], sizes = [8, 32], strides = [1, 1]} : vector<8x128xf32> to vector<8x32xf32>
    %cst_225 = arith.constant 5.000000e-01 : f32
    %641 = vector.broadcast %cst_225 : f32 to vector<8x32xf32>
    %642 = arith.mulf %641, %640 : vector<8x32xf32>
    %643 = math.tanh %642 : vector<8x32xf32>
    %cst_226 = arith.constant 5.000000e-01 : f32
    %644 = vector.broadcast %cst_226 : f32 to vector<8x32xf32>
    %645 = arith.mulf %644, %643 : vector<8x32xf32>
    %cst_227 = arith.constant 5.000000e-01 : f32
    %646 = vector.broadcast %cst_227 : f32 to vector<8x32xf32>
    %647 = arith.addf %645, %646 : vector<8x32xf32>
    %648 = vector.extract_strided_slice %608 {offsets = [0, 32], sizes = [8, 32], strides = [1, 1]} : vector<8x128xf32> to vector<8x32xf32>
    %cst_228 = arith.constant 5.000000e-01 : f32
    %649 = vector.broadcast %cst_228 : f32 to vector<8x32xf32>
    %650 = arith.mulf %649, %648 : vector<8x32xf32>
    %651 = math.tanh %650 : vector<8x32xf32>
    %cst_229 = arith.constant 5.000000e-01 : f32
    %652 = vector.broadcast %cst_229 : f32 to vector<8x32xf32>
    %653 = arith.mulf %652, %651 : vector<8x32xf32>
    %cst_230 = arith.constant 5.000000e-01 : f32
    %654 = vector.broadcast %cst_230 : f32 to vector<8x32xf32>
    %655 = arith.addf %653, %654 : vector<8x32xf32>
    %656 = vector.extract_strided_slice %608 {offsets = [0, 64], sizes = [8, 32], strides = [1, 1]} : vector<8x128xf32> to vector<8x32xf32>
    %657 = math.tanh %656 : vector<8x32xf32>
    %658 = vector.extract_strided_slice %608 {offsets = [0, 96], sizes = [8, 32], strides = [1, 1]} : vector<8x128xf32> to vector<8x32xf32>
    %cst_231 = arith.constant 5.000000e-01 : f32
    %659 = vector.broadcast %cst_231 : f32 to vector<8x32xf32>
    %660 = arith.mulf %659, %658 : vector<8x32xf32>
    %661 = math.tanh %660 : vector<8x32xf32>
    %cst_232 = arith.constant 5.000000e-01 : f32
    %662 = vector.broadcast %cst_232 : f32 to vector<8x32xf32>
    %663 = arith.mulf %662, %661 : vector<8x32xf32>
    %cst_233 = arith.constant 5.000000e-01 : f32
    %664 = vector.broadcast %cst_233 : f32 to vector<8x32xf32>
    %665 = arith.addf %663, %664 : vector<8x32xf32>
    %666 = arith.mulf %655, %585 : vector<8x32xf32>
    %667 = arith.mulf %647, %657 : vector<8x32xf32>
    %668 = arith.addf %666, %667 : vector<8x32xf32>
    %669 = math.tanh %668 : vector<8x32xf32>
    %670 = arith.mulf %665, %669 : vector<8x32xf32>
    %c8_i32 = arith.constant 8 : i32
    %671 = vector.broadcast %c8_i32 : i32 to vector<8x1xi32>
    %672 = arith.cmpi eq, %6, %671 : vector<8x1xi32>
    %673 = vector.shape_cast %672 : vector<8x1xi1> to vector<8x1xi1>
    %674 = vector.broadcast %673 : vector<8x1xi1> to vector<8x32xi1>
    %675 = arith.select %674, %639, %592 : vector<8x32xi1>, vector<8x32xf32>
    %676 = arith.truncf %675 : vector<8x32xf32> to vector<8x32xbf16>
    %c0_234 = arith.constant 0 : index
    %c0_235 = arith.constant 0 : index
    %677 = vector.load %arg9[%c0_234, %c0_235] : memref<32x128xbf16, #tpu.memory_space<vmem>>, vector<32x128xbf16>
    %cst_236 = arith.constant dense<0.000000e+00> : vector<8x128xf32>
    %678 = tpu.matmul %676, %677, %cst_236 {dimension_numbers = #tpu.dot_dimension_numbers<[1], [0], [0], [1], [0, 0, 1, 1], [], []>} : vector<8x32xbf16>, vector<32x128xbf16>, vector<8x128xf32> -> vector<8x128xf32>
    %679 = arith.truncf %670 : vector<8x32xf32> to vector<8x32xbf16>
    %c0_237 = arith.constant 0 : index
    %c0_238 = arith.constant 0 : index
    %680 = vector.load %arg10[%c0_237, %c0_238] : memref<32x128xbf16, #tpu.memory_space<vmem>>, vector<32x128xbf16>
    %cst_239 = arith.constant dense<0.000000e+00> : vector<8x128xf32>
    %681 = tpu.matmul %679, %680, %cst_239 {dimension_numbers = #tpu.dot_dimension_numbers<[1], [0], [0], [1], [0, 0, 1, 1], [], []>} : vector<8x32xbf16>, vector<32x128xbf16>, vector<8x128xf32> -> vector<8x128xf32>
    %682 = arith.addf %678, %681 : vector<8x128xf32>
    %c0_240 = arith.constant 0 : index
    %c0_241 = arith.constant 0 : index
    %683 = vector.load %arg11[%c0_240, %c0_241] : memref<1x128xf32, #tpu.memory_space<vmem>>, vector<1x128xf32>
    %684 = vector.broadcast %683 : vector<1x128xf32> to vector<8x128xf32>
    %685 = arith.addf %682, %684 : vector<8x128xf32>
    %cst_242 = arith.constant dense<0xFF800000> : vector<8xf32>
    %686 = vector.multi_reduction <maximumf>, %685, %cst_242 [1] : vector<8x128xf32> to vector<8xf32>
    %cst_243 = arith.constant 0xFF800000 : f32
    %687 = vector.broadcast %cst_243 : f32 to vector<8xf32>
    %688 = arith.maximumf %687, %686 : vector<8xf32>
    %689 = vector.shape_cast %688 : vector<8xf32> to vector<8x1xf32>
    %690 = vector.broadcast %689 : vector<8x1xf32> to vector<8x128xf32>
    %691 = arith.subf %685, %690 : vector<8x128xf32>
    %692 = math.exp %691 : vector<8x128xf32>
    %cst_244 = arith.constant dense<0.000000e+00> : vector<8xf32>
    %693 = vector.multi_reduction <add>, %692, %cst_244 [1] : vector<8x128xf32> to vector<8xf32>
    %694 = vector.shape_cast %693 : vector<8xf32> to vector<8x1xf32>
    %695 = vector.broadcast %694 : vector<8x1xf32> to vector<8x128xf32>
    %696 = arith.divf %692, %695 : vector<8x128xf32>
    %c0_245 = arith.constant 0 : index
    %c0_246 = arith.constant 0 : index
    %697 = vector.load %arg12[%c0_245, %c0_246] : memref<8x128xf32, #tpu.memory_space<vmem>>, vector<8x128xf32>
    tpu.vector_store %arg12[%c0_245, %c0_246], %696 {strides = array<i32>} : memref<8x128xf32, #tpu.memory_space<vmem>>, vector<8x128xf32>,
    return
  }
  func.func @transform_0(%arg0: i32) -> (i32, i32) {
    %c0_i32 = arith.constant 0 : i32
    %c0_i32_0 = arith.constant 0 : i32
    return %arg0, %c0_i32 : i32, i32
  }
  func.func @transform_1(%arg0: i32) -> (i32, i32, i32) {
    %c0_i32 = arith.constant 0 : i32
    %c0_i32_0 = arith.constant 0 : i32
    %c0_i32_1 = arith.constant 0 : i32
    return %c0_i32, %arg0, %c0_i32_0 : i32, i32, i32
  }
  func.func @transform_2(%arg0: i32) -> (i32, i32) {
    %c0_i32 = arith.constant 0 : i32
    %c0_i32_0 = arith.constant 0 : i32
    %c0_i32_1 = arith.constant 0 : i32
    return %c0_i32, %c0_i32_0 : i32, i32
  }
  func.func @transform_3(%arg0: i32) -> (i32, i32) {
    %c0_i32 = arith.constant 0 : i32
    %c0_i32_0 = arith.constant 0 : i32
    %c0_i32_1 = arith.constant 0 : i32
    return %c0_i32, %c0_i32_0 : i32, i32
  }
  func.func @transform_4(%arg0: i32) -> (i32, i32) {
    %c0_i32 = arith.constant 0 : i32
    %c0_i32_0 = arith.constant 0 : i32
    %c0_i32_1 = arith.constant 0 : i32
    return %c0_i32, %c0_i32_0 : i32, i32
  }
  func.func @transform_5(%arg0: i32) -> (i32, i32) {
    %c0_i32 = arith.constant 0 : i32
    %c0_i32_0 = arith.constant 0 : i32
    %c0_i32_1 = arith.constant 0 : i32
    return %c0_i32, %c0_i32_0 : i32, i32
  }
  func.func @transform_6(%arg0: i32) -> (i32, i32) {
    %c0_i32 = arith.constant 0 : i32
    %c0_i32_0 = arith.constant 0 : i32
    %c0_i32_1 = arith.constant 0 : i32
    return %c0_i32, %c0_i32_0 : i32, i32
  }
  func.func @transform_7(%arg0: i32) -> (i32, i32) {
    %c0_i32 = arith.constant 0 : i32
    %c0_i32_0 = arith.constant 0 : i32
    %c0_i32_1 = arith.constant 0 : i32
    return %c0_i32, %c0_i32_0 : i32, i32
  }
  func.func @transform_8(%arg0: i32) -> (i32, i32) {
    %c0_i32 = arith.constant 0 : i32
    %c0_i32_0 = arith.constant 0 : i32
    %c0_i32_1 = arith.constant 0 : i32
    return %c0_i32, %c0_i32_0 : i32, i32
  }
  func.func @transform_9(%arg0: i32) -> (i32, i32) {
    %c0_i32 = arith.constant 0 : i32
    %c0_i32_0 = arith.constant 0 : i32
    %c0_i32_1 = arith.constant 0 : i32
    return %c0_i32, %c0_i32_0 : i32, i32
  }
  func.func @transform_10(%arg0: i32) -> (i32, i32) {
    %c0_i32 = arith.constant 0 : i32
    %c0_i32_0 = arith.constant 0 : i32
    %c0_i32_1 = arith.constant 0 : i32
    return %c0_i32, %c0_i32_0 : i32, i32
  }
  func.func @transform_11(%arg0: i32) -> (i32, i32) {
    %c0_i32 = arith.constant 0 : i32
    %c0_i32_0 = arith.constant 0 : i32
    return %arg0, %c0_i32 : i32, i32
  }
}

</mosaic_0001>

<llo_original>
// kernel: tpu_custom_call.1
$region0: #{tpu_custom_call.1}
  #allocation0 [shape = 'u32[]', space=smem, size = 0x4, offset = 0x4, fixed_abs, tag = 'smem constant byte address 0x4 - core index']
  #allocation1 [shape = 'u32[144,128]{1,0:T(1,128)}', space=vmem, size = 0x12000, scoped, tag = 'internal scratch']
  %s0 = inlined_call_operand.vmem [shape: s32[8,1], index: 0, kind: input, shape index: {}]
  %s1 = inlined_call_operand.hbm [shape: bf16[8,8,16], index: 1, kind: input, shape index: {}]
  %s2 = inlined_call_operand.hbm [shape: bf16[16,128], index: 2, kind: input, shape index: {}]
  %s3 = inlined_call_operand.hbm [shape: bf16[16,128], index: 3, kind: input, shape index: {}]
  %s4 = inlined_call_operand.vmem [shape: bf16[32,128], index: 4, kind: input, shape index: {}]
  %s5 = inlined_call_operand.hbm [shape: bf16[32,128], index: 5, kind: input, shape index: {}]
  %s6 = inlined_call_operand.vmem [shape: f32[1,128], index: 6, kind: input, shape index: {}]
  %s7 = inlined_call_operand.vmem [shape: f32[1,128], index: 7, kind: input, shape index: {}]
  %s8 = inlined_call_operand.vmem [shape: bf16[32,128], index: 8, kind: input, shape index: {}]
  %s9 = inlined_call_operand.hbm [shape: bf16[32,128], index: 9, kind: input, shape index: {}]
  %s10 = inlined_call_operand.vmem [shape: f32[1,128], index: 10, kind: input, shape index: {}]
  %s11 = inlined_call_operand.hbm [shape: f32[8,128], index: 11, kind: output, shape index: {}]
  %s12 = sld [smem:[#allocation0]]
  $region74: #{tpu_custom_call.1} parent=0
    _
  %s14 = ssub.s32 1, %s12
  %s15 = scalar_select 0, %s14, %s12
  $region1: #{tpu_custom_call.1} parent=0
    #allocation2 [shape = 'u8[16384]{0}', space=vmem, size = 0x4000, scoped, tag = 'input window, operand 1, single buffered']
    #allocation3 [shape = 's32[1]{0}', space=sflag, size = 0x4, scoped, tag = 'scoped memory for tpu_custom_call.1']
    #allocation4 [shape = 's32[1]{0}', space=sflag, size = 0x4, scoped, tag = 'scoped memory for tpu_custom_call.1']
    #allocation5 [shape = 'u8[4096]{0}', space=vmem, size = 0x1000, scoped, tag = 'input window, operand 2, single buffered']
    #allocation6 [shape = 's32[1]{0}', space=sflag, size = 0x4, scoped, tag = 'scoped memory for tpu_custom_call.1']
    #allocation7 [shape = 'u8[4096]{0}', space=vmem, size = 0x1000, scoped, tag = 'input window, operand 3, single buffered']
    #allocation8 [shape = 'u8[8192]{0}', space=vmem, size = 0x2000, scoped, tag = 'input window, operand 5, single buffered']
    #allocation9 [shape = 's32[1]{0}', space=sflag, size = 0x4, scoped, tag = 'scoped memory for tpu_custom_call.1']
    #allocation10 [shape = 'u8[8192]{0}', space=vmem, size = 0x2000, scoped, tag = 'input window, operand 9, single buffered']
    #allocation11 [shape = 'u8[4096]{0}', space=vmem, size = 0x1000, scoped, tag = 'output window, operand 0, single buffered']
    %16 = vsyncpa [#allocation3], 0
    %17 = vsyncpa [#allocation6], 0
    %18 = vsyncpa [#allocation9], 0
    %19 = vsyncpa [#allocation4], 0
    // Predicated region
    $region2: #{tpu_custom_call.1} parent=1 // pred_check
      _
    $region3: #{tpu_custom_call.1} parent=1 // pred_check_branch
      %21 = sbr.rel (0) target = $region5
    $region4: #{tpu_custom_call.1} parent=1 // pred_region
      _
    $region5: #{tpu_custom_call.1} parent=1 // pred_fallthru
      _
    // Predicated region
    $region6: #{tpu_custom_call.1} parent=1 // pred_check
      _
    $region7: #{tpu_custom_call.1} parent=1 // pred_check_branch
      %23 = sbr.rel (0) target = $region9
    $region8: #{tpu_custom_call.1} parent=1 // pred_region
      %s25 = ssub.s32 512, 512
      %26 = vsyncadd [#allocation3], %s25
      %s27 = sshll.u32 [#allocation2], 4
      %s28 = int_to_ptr.vmem [resolvable:$true] %s27
      %33 = dma.hbm_to_vmem [thread:$0]  %s1, 512, %s28, [#allocation3], 64, 64, 4
    $region9: #{tpu_custom_call.1} parent=1 // pred_fallthru
      _
    // Predicated region
    $region10: #{tpu_custom_call.1} parent=1 // pred_check
      _
    $region11: #{tpu_custom_call.1} parent=1 // pred_check_branch
      %35 = sbr.rel (0) target = $region13
    $region12: #{tpu_custom_call.1} parent=1 // pred_region
      %s37 = ssub.s32 128, 128
      %38 = vsyncadd [#allocation6], %s37
      %s39 = sshll.u32 [#allocation5], 4
      %s40 = int_to_ptr.vmem [resolvable:$true] %s39
      %45 = dma.hbm_to_vmem [thread:$0]  %s2, 128, %s40, [#allocation6], 64, 64, 4
    $region13: #{tpu_custom_call.1} parent=1 // pred_fallthru
      _
    // Predicated region
    $region14: #{tpu_custom_call.1} parent=1 // pred_check
      _
    $region15: #{tpu_custom_call.1} parent=1 // pred_check_branch
      %47 = sbr.rel (0) target = $region17
    $region16: #{tpu_custom_call.1} parent=1 // pred_region
      %s49 = ssub.s32 128, 128
      %50 = vsyncadd [#allocation6], %s49
      %s51 = sshll.u32 [#allocation7], 4
      %s52 = int_to_ptr.vmem [resolvable:$true] %s51
      %57 = dma.hbm_to_vmem [thread:$0]  %s3, 128, %s52, [#allocation6], 64, 64, 4
    $region17: #{tpu_custom_call.1} parent=1 // pred_fallthru
      _
    // Predicated region
    $region18: #{tpu_custom_call.1} parent=1 // pred_check
      _
    $region19: #{tpu_custom_call.1} parent=1 // pred_check_branch
      %59 = sbr.rel (0) target = $region21
    $region20: #{tpu_custom_call.1} parent=1 // pred_region
      _
    $region21: #{tpu_custom_call.1} parent=1 // pred_fallthru
      _
    // Predicated region
    $region22: #{tpu_custom_call.1} parent=1 // pred_check
      _
    $region23: #{tpu_custom_call.1} parent=1 // pred_check_branch
      %61 = sbr.rel (0) target = $region25
    $region24: #{tpu_custom_call.1} parent=1 // pred_region
      %s63 = ssub.s32 256, 256
      %64 = vsyncadd [#allocation9], %s63
      %s65 = sshll.u32 [#allocation8], 4
      %s66 = int_to_ptr.vmem [resolvable:$true] %s65
      %71 = dma.hbm_to_vmem [thread:$0]  %s5, 256, %s66, [#allocation9], 64, 64, 4
    $region25: #{tpu_custom_call.1} parent=1 // pred_fallthru
      _
    // Predicated region
    $region26: #{tpu_custom_call.1} parent=1 // pred_check
      _
    $region27: #{tpu_custom_call.1} parent=1 // pred_check_branch
      %73 = sbr.rel (0) target = $region29
    $region28: #{tpu_custom_call.1} parent=1 // pred_region
      _
    $region29: #{tpu_custom_call.1} parent=1 // pred_fallthru
      _
    // Predicated region
    $region30: #{tpu_custom_call.1} parent=1 // pred_check
      _
    $region31: #{tpu_custom_call.1} parent=1 // pred_check_branch
      %75 = sbr.rel (0) target = $region33
    $region32: #{tpu_custom_call.1} parent=1 // pred_region
      _
    $region33: #{tpu_custom_call.1} parent=1 // pred_fallthru
      _
    // Predicated region
    $region34: #{tpu_custom_call.1} parent=1 // pred_check
      _
    $region35: #{tpu_custom_call.1} parent=1 // pred_check_branch
      %77 = sbr.rel (0) target = $region37
    $region36: #{tpu_custom_call.1} parent=1 // pred_region
      _
    $region37: #{tpu_custom_call.1} parent=1 // pred_fallthru
      _
    // Predicated region
    $region38: #{tpu_custom_call.1} parent=1 // pred_check
      _
    $region39: #{tpu_custom_call.1} parent=1 // pred_check_branch
      %79 = sbr.rel (0) target = $region41
    $region40: #{tpu_custom_call.1} parent=1 // pred_region
      %s81 = ssub.s32 256, 256
      %82 = vsyncadd [#allocation9], %s81
      %s83 = sshll.u32 [#allocation10], 4
      %s84 = int_to_ptr.vmem [resolvable:$true] %s83
      %89 = dma.hbm_to_vmem [thread:$0]  %s9, 256, %s84, [#allocation9], 64, 64, 4
    $region41: #{tpu_custom_call.1} parent=1 // pred_fallthru
      _
    // Predicated region
    $region42: #{tpu_custom_call.1} parent=1 // pred_check
      _
    $region43: #{tpu_custom_call.1} parent=1 // pred_check_branch
      %91 = sbr.rel (0) target = $region45
    $region44: #{tpu_custom_call.1} parent=1 // pred_region
      _
    $region45: #{tpu_custom_call.1} parent=1 // pred_fallthru
      _
    // Predicated region
    $region46: #{tpu_custom_call.1} parent=1 // pred_check
      _
    $region47: #{tpu_custom_call.1} parent=1 // pred_check_branch
      %93 = sbr.rel (0) target = $region49
    $region48: #{tpu_custom_call.1} parent=1 // pred_region
      %94 = dma.done [#allocation3], 512
    $region49: #{tpu_custom_call.1} parent=1 // pred_fallthru
      _
    // Predicated region
    $region50: #{tpu_custom_call.1} parent=1 // pred_check
      _
    $region51: #{tpu_custom_call.1} parent=1 // pred_check_branch
      %96 = sbr.rel (0) target = $region53
    $region52: #{tpu_custom_call.1} parent=1 // pred_region
      %97 = dma.done [#allocation6], 128
    $region53: #{tpu_custom_call.1} parent=1 // pred_fallthru
      _
    // Predicated region
    $region54: #{tpu_custom_call.1} parent=1 // pred_check
      _
    $region55: #{tpu_custom_call.1} parent=1 // pred_check_branch
      %99 = sbr.rel (0) target = $region57
    $region56: #{tpu_custom_call.1} parent=1 // pred_region
      %100 = dma.done [#allocation6], 128
    $region57: #{tpu_custom_call.1} parent=1 // pred_fallthru
      _
    // Predicated region
    $region58: #{tpu_custom_call.1} parent=1 // pred_check
      _
    $region59: #{tpu_custom_call.1} parent=1 // pred_check_branch
      %102 = sbr.rel (0) target = $region61
    $region60: #{tpu_custom_call.1} parent=1 // pred_region
      %103 = dma.done [#allocation9], 256
    $region61: #{tpu_custom_call.1} parent=1 // pred_fallthru
      _
    // Predicated region
    $region62: #{tpu_custom_call.1} parent=1 // pred_check
      _
    $region63: #{tpu_custom_call.1} parent=1 // pred_check_branch
      %105 = sbr.rel (0) target = $region65
    $region64: #{tpu_custom_call.1} parent=1 // pred_region
      %106 = dma.done [#allocation9], 256
    $region65: #{tpu_custom_call.1} parent=1 // pred_fallthru
      _
    %v108 = vld [vmem:[#allocation5] sm:$0xf]
    %v109 = vld [vmem:[#allocation5 + $0x4] sm:$0xf]
    %v110 = vld [vmem:[#allocation7] sm:$0xf]
    %v111 = vld [vmem:[#allocation7 + $0x4] sm:$0xf]
    %v112 = vld [vmem:[%s4] sm:$0xf]
    %v113 = vld [vmem:[%s4 + $0x4] sm:$0xf]
    %v114 = vld [vmem:[%s4 + $0x8] sm:$0xf]
    %v115 = vld [vmem:[%s4 + $0xc] sm:$0xf]
    %v116 = vld [vmem:[#allocation8] sm:$0xf]
    %v117 = vld [vmem:[#allocation8 + $0x4] sm:$0xf]
    %v118 = vld [vmem:[#allocation8 + $0x8] sm:$0xf]
    %v119 = vld [vmem:[#allocation8 + $0xc] sm:$0xf]
    %v120 = vld [vmem:[%s6] sm:$0x1]
    %v121 = vld [vmem:[%s7] sm:$0x1]
    %v122 = vld [vmem:[%s0] sm:$0xff]
    %v123 = vld [vmem:[#allocation2] sm:$0xf]
    %s124 = scalar_lea.vmem [#allocation2], 28
    %v125 = vld [vmem:[%s124] sm:$0xf]
    %v127 = vlaneseq
    %v128 = vshrl.u32 %v127, 7
    %v129 = vsub.s32 0, %v128
    %v130 = vrot.slane %v120, %v129
    %v134 = vunpack.c.l.b16 %v108
    %v135 = vunpack.c.l.b16 %v109
    %v136 = vpack.c.b16 %v135, %v134
    %vm138 = vcmask 130048
    %v140 = vsel %vm138, %v123, 0
    %142 = vmatprep.subr.bf16.mxu0 0
    %143 = vmatpush1.bf16.msra.mxu0 %v136
    %144 = vmatprep.subr.bf16.mxu0 0
    %145 = vmatpush1.bf16.msra.mxu0 0
    %146 = vmatprep.subr.bf16.mxu0 0
    %147 = vmatpush1.bf16.msra.mxu0 0
    %148 = vmatprep.subr.bf16.mxu0 0
    %149 = vmatpush1.bf16.msra.mxu0 0
    %150 = vmatprep.subr.bf16.mxu0 0
    %151 = vmatpush1.bf16.msra.mxu0 0
    %152 = vmatprep.subr.bf16.mxu0 0
    %153 = vmatpush1.bf16.msra.mxu0 0
    %154 = vmatprep.subr.bf16.mxu0 0
    %155 = vmatpush1.bf16.msra.mxu0 0
    %156 = vmatprep.subr.bf16.mxu0 0
    %157 = vmatpush1.bf16.msra.mxu0 0
    %158 = vmatprep.subr.bf16.mxu0 0
    %159 = vmatpush1.bf16.msra.mxu0 0
    %160 = vmatprep.subr.bf16.mxu0 0
    %161 = vmatpush1.bf16.msra.mxu0 0
    %162 = vmatprep.subr.bf16.mxu0 0
    %163 = vmatpush1.bf16.msra.mxu0 0
    %164 = vmatprep.subr.bf16.mxu0 0
    %165 = vmatpush1.bf16.msra.mxu0 0
    %166 = vmatprep.subr.bf16.mxu0 0
    %167 = vmatpush1.bf16.msra.mxu0 0
    %168 = vmatprep.subr.bf16.mxu0 0
    %169 = vmatpush1.bf16.msra.mxu0 0
    %170 = vmatprep.subr.bf16.mxu0 0
    %171 = vmatpush1.bf16.msra.mxu0 0
    %172 = vmatprep.subr.bf16.mxu0 0
    %173 = vmatpush1.bf16.msra.mxu0 0
    %174 = vmatprep.mubr.bf16.mxu0 0
    %175 = vmatmul.mubr.bf16.gmra.mrb[0].mxu0 %v140
    %v176 = vpop.f32.mrb[0].mxu0
    %v177 = vadd.f32 %v130, %v176
    %v178 = vpop.f32.mrb[0].mxu0
    %v179 = vpop.f32.mrb[0].mxu0
    %v180 = vpop.f32.mrb[0].mxu0
    %181 = vdwg.mxu0
    %v186 = vunpack.c.l.b16 %v112
    %v187 = vunpack.c.l.b16 %v113
    %v188 = vunpack.c.l.b16 %v114
    %v189 = vunpack.c.l.b16 %v115
    %v190 = vpack.c.b16 %v187, %v186
    %v191 = vpack.c.b16 %v189, %v188
    %vm194 = vcmask 261120
    %v196 = vsel %vm194, 0, 0
    %198 = vmatprep.subr.bf16.mxu0 0
    %199 = vmatpush1.bf16.msra.mxu0 %v190
    %200 = vmatprep.subr.bf16.mxu0 0
    %201 = vmatpush1.bf16.msra.mxu0 %v191
    %202 = vmatprep.subr.bf16.mxu0 0
    %203 = vmatpush1.bf16.msra.mxu0 0
    %204 = vmatprep.subr.bf16.mxu0 0
    %205 = vmatpush1.bf16.msra.mxu0 0
    %206 = vmatprep.subr.bf16.mxu0 0
    %207 = vmatpush1.bf16.msra.mxu0 0
    %208 = vmatprep.subr.bf16.mxu0 0
    %209 = vmatpush1.bf16.msra.mxu0 0
    %210 = vmatprep.subr.bf16.mxu0 0
    %211 = vmatpush1.bf16.msra.mxu0 0
    %212 = vmatprep.subr.bf16.mxu0 0
    %213 = vmatpush1.bf16.msra.mxu0 0
    %214 = vmatprep.subr.bf16.mxu0 0
    %215 = vmatpush1.bf16.msra.mxu0 0
    %216 = vmatprep.subr.bf16.mxu0 0
    %217 = vmatpush1.bf16.msra.mxu0 0
    %218 = vmatprep.subr.bf16.mxu0 0
    %219 = vmatpush1.bf16.msra.mxu0 0
    %220 = vmatprep.subr.bf16.mxu0 0
    %221 = vmatpush1.bf16.msra.mxu0 0
    %222 = vmatprep.subr.bf16.mxu0 0
    %223 = vmatpush1.bf16.msra.mxu0 0
    %224 = vmatprep.subr.bf16.mxu0 0
    %225 = vmatpush1.bf16.msra.mxu0 0
    %226 = vmatprep.subr.bf16.mxu0 0
    %227 = vmatpush1.bf16.msra.mxu0 0
    %228 = vmatprep.subr.bf16.mxu0 0
    %229 = vmatpush1.bf16.msra.mxu0 0
    %230 = vmatprep.mubr.bf16.mxu0 0
    %231 = vmatmul.mubr.bf16.gmra.mrb[0].mxu0 %v196
    %v232 = vpop.f32.mrb[0].mxu0
    %v233 = vadd.f32 0.0, %v232
    %v234 = vpop.f32.mrb[0].mxu0
    %v235 = vpop.f32.mrb[0].mxu0
    %v236 = vpop.f32.mrb[0].mxu0
    %237 = vdwg.mxu0
    %v238 = vadd.f32 %v177, %v233
    %v240 = vlaneseq
    %v241 = vshrl.u32 %v240, 7
    %v242 = vsub.s32 0, %v241
    %v243 = vrot.slane %v121, %v242
    %v247 = vunpack.c.l.b16 %v110
    %v248 = vunpack.c.l.b16 %v111
    %v249 = vpack.c.b16 %v248, %v247
    %v252 = vsel %vm138, %v125, 0
    %254 = vmatprep.subr.bf16.mxu0 0
    %255 = vmatpush1.bf16.msra.mxu0 %v249
    %256 = vmatprep.subr.bf16.mxu0 0
    %257 = vmatpush1.bf16.msra.mxu0 0
    %258 = vmatprep.subr.bf16.mxu0 0
    %259 = vmatpush1.bf16.msra.mxu0 0
    %260 = vmatprep.subr.bf16.mxu0 0
    %261 = vmatpush1.bf16.msra.mxu0 0
    %262 = vmatprep.subr.bf16.mxu0 0
    %263 = vmatpush1.bf16.msra.mxu0 0
    %264 = vmatprep.subr.bf16.mxu0 0
    %265 = vmatpush1.bf16.msra.mxu0 0
    %266 = vmatprep.subr.bf16.mxu0 0
    %267 = vmatpush1.bf16.msra.mxu0 0
    %268 = vmatprep.subr.bf16.mxu0 0
    %269 = vmatpush1.bf16.msra.mxu0 0
    %270 = vmatprep.subr.bf16.mxu0 0
    %271 = vmatpush1.bf16.msra.mxu0 0
    %272 = vmatprep.subr.bf16.mxu0 0
    %273 = vmatpush1.bf16.msra.mxu0 0
    %274 = vmatprep.subr.bf16.mxu0 0
    %275 = vmatpush1.bf16.msra.mxu0 0
    %276 = vmatprep.subr.bf16.mxu0 0
    %277 = vmatpush1.bf16.msra.mxu0 0
    %278 = vmatprep.subr.bf16.mxu0 0
    %279 = vmatpush1.bf16.msra.mxu0 0
    %280 = vmatprep.subr.bf16.mxu0 0
    %281 = vmatpush1.bf16.msra.mxu0 0
    %282 = vmatprep.subr.bf16.mxu0 0
    %283 = vmatpush1.bf16.msra.mxu0 0
    %284 = vmatprep.subr.bf16.mxu0 0
    %285 = vmatpush1.bf16.msra.mxu0 0
    %286 = vmatprep.mubr.bf16.mxu0 0
    %287 = vmatmul.mubr.bf16.gmra.mrb[0].mxu0 %v252
    %v288 = vpop.f32.mrb[0].mxu0
    %v289 = vadd.f32 %v243, %v288
    %v290 = vpop.f32.mrb[0].mxu0
    %v291 = vpop.f32.mrb[0].mxu0
    %v292 = vpop.f32.mrb[0].mxu0
    %293 = vdwg.mxu0
    %v298 = vunpack.c.l.b16 %v116
    %v299 = vunpack.c.l.b16 %v117
    %v300 = vunpack.c.l.b16 %v118
    %v301 = vunpack.c.l.b16 %v119
    %v302 = vpack.c.b16 %v299, %v298
    %v303 = vpack.c.b16 %v301, %v300
    %306 = vmatprep.subr.bf16.mxu0 0
    %307 = vmatpush1.bf16.msra.mxu0 %v302
    %308 = vmatprep.subr.bf16.mxu0 0
    %309 = vmatpush1.bf16.msra.mxu0 %v303
    %310 = vmatprep.subr.bf16.mxu0 0
    %311 = vmatpush1.bf16.msra.mxu0 0
    %312 = vmatprep.subr.bf16.mxu0 0
    %313 = vmatpush1.bf16.msra.mxu0 0
    %314 = vmatprep.subr.bf16.mxu0 0
    %315 = vmatpush1.bf16.msra.mxu0 0
    %316 = vmatprep.subr.bf16.mxu0 0
    %317 = vmatpush1.bf16.msra.mxu0 0
    %318 = vmatprep.subr.bf16.mxu0 0
    %319 = vmatpush1.bf16.msra.mxu0 0
    %320 = vmatprep.subr.bf16.mxu0 0
    %321 = vmatpush1.bf16.msra.mxu0 0
    %322 = vmatprep.subr.bf16.mxu0 0
    %323 = vmatpush1.bf16.msra.mxu0 0
    %324 = vmatprep.subr.bf16.mxu0 0
    %325 = vmatpush1.bf16.msra.mxu0 0
    %326 = vmatprep.subr.bf16.mxu0 0
    %327 = vmatpush1.bf16.msra.mxu0 0
    %328 = vmatprep.subr.bf16.mxu0 0
    %329 = vmatpush1.bf16.msra.mxu0 0
    %330 = vmatprep.subr.bf16.mxu0 0
    %331 = vmatpush1.bf16.msra.mxu0 0
    %332 = vmatprep.subr.bf16.mxu0 0
    %333 = vmatpush1.bf16.msra.mxu0 0
    %334 = vmatprep.subr.bf16.mxu0 0
    %335 = vmatpush1.bf16.msra.mxu0 0
    %336 = vmatprep.subr.bf16.mxu0 0
    %337 = vmatpush1.bf16.msra.mxu0 0
    %338 = vmatprep.mubr.bf16.mxu0 0
    %339 = vmatmul.mubr.bf16.gmra.mrb[0].mxu0 %v196
    %v340 = vpop.f32.mrb[0].mxu0
    %v341 = vadd.f32 0.0, %v340
    %v342 = vpop.f32.mrb[0].mxu0
    %v343 = vpop.f32.mrb[0].mxu0
    %v344 = vpop.f32.mrb[0].mxu0
    %345 = vdwg.mxu0
    %v346 = vadd.f32 %v289, %v341
    %v347 = vmul.f32 %v238, 0.5
    %v348 = vtanh.pop %v347
    %v349 = vmul.f32 %v348, 0.5
    %v350 = vadd.f32 %v349, 0.5
    %v351 = vtanh.pop %v238
    %v352 = vmul.f32 %v350, 0.0
    %354 = vrot.lane.b32.xlu0 %v351, 64
    %v355 = vpop.permute.xlu0 %354
    %v357 = vmul.f32 %v350, %v355
    %359 = vrot.lane.b32.xlu0 %v357, 32
    %v360 = vpop.permute.xlu0 %359
    %v362 = vadd.f32 %v352, %v360
    %v363 = vtanh.pop %v362
    %365 = vrot.lane.b32.xlu0 %v363, 64
    %v366 = vpop.permute.xlu0 %365
    %v368 = vmul.f32 %v350, %v366
    %v369 = vmul.f32 %v346, 0.5
    %v370 = vtanh.pop %v369
    %v371 = vmul.f32 %v370, 0.5
    %v372 = vadd.f32 %v371, 0.5
    %v373 = vtanh.pop %v346
    %v374 = vmul.f32 %v372, 0.0
    %376 = vrot.lane.b32.xlu0 %v373, 64
    %v377 = vpop.permute.xlu0 %376
    %v379 = vmul.f32 %v372, %v377
    %381 = vrot.lane.b32.xlu0 %v379, 32
    %v382 = vpop.permute.xlu0 %381
    %v384 = vadd.f32 %v374, %v382
    %v385 = vtanh.pop %v384
    %387 = vrot.lane.b32.xlu0 %v385, 64
    %v388 = vpop.permute.xlu0 %387
    %v390 = vmul.f32 %v372, %v388
    %vm391 = vcmp.eq.s32.totalorder %v122, 1
    %v392 = vsel %vm391, 1, 0
    %393 = vset.pattern.permute.xlu0 0
    %394 = vperm.xlu0 %393, %v392
    %v395 = vpop.permute.xlu0 %394
    %vm396 = vcmp.eq.s32.totalorder %v395, 1
    %v397 = vsel %vm396, %v368, 0.0
    %s398 = scalar_lea.vmem [#allocation2], 4
    %v399 = vld [vmem:[%s398] sm:$0xf]
    %s400 = scalar_lea.vmem [#allocation2], 24
    %v401 = vld [vmem:[%s400] sm:$0xf]
    %v403 = vsel %vm138, %v399, 0
    %405 = vmatprep.subr.bf16.mxu0 0
    %406 = vmatpush1.bf16.msra.mxu0 %v136
    %407 = vmatprep.subr.bf16.mxu0 0
    %408 = vmatpush1.bf16.msra.mxu0 0
    %409 = vmatprep.subr.bf16.mxu0 0
    %410 = vmatpush1.bf16.msra.mxu0 0
    %411 = vmatprep.subr.bf16.mxu0 0
    %412 = vmatpush1.bf16.msra.mxu0 0
    %413 = vmatprep.subr.bf16.mxu0 0
    %414 = vmatpush1.bf16.msra.mxu0 0
    %415 = vmatprep.subr.bf16.mxu0 0
    %416 = vmatpush1.bf16.msra.mxu0 0
    %417 = vmatprep.subr.bf16.mxu0 0
    %418 = vmatpush1.bf16.msra.mxu0 0
    %419 = vmatprep.subr.bf16.mxu0 0
    %420 = vmatpush1.bf16.msra.mxu0 0
    %421 = vmatprep.subr.bf16.mxu0 0
    %422 = vmatpush1.bf16.msra.mxu0 0
    %423 = vmatprep.subr.bf16.mxu0 0
    %424 = vmatpush1.bf16.msra.mxu0 0
    %425 = vmatprep.subr.bf16.mxu0 0
    %426 = vmatpush1.bf16.msra.mxu0 0
    %427 = vmatprep.subr.bf16.mxu0 0
    %428 = vmatpush1.bf16.msra.mxu0 0
    %429 = vmatprep.subr.bf16.mxu0 0
    %430 = vmatpush1.bf16.msra.mxu0 0
    %431 = vmatprep.subr.bf16.mxu0 0
    %432 = vmatpush1.bf16.msra.mxu0 0
    %433 = vmatprep.subr.bf16.mxu0 0
    %434 = vmatpush1.bf16.msra.mxu0 0
    %435 = vmatprep.subr.bf16.mxu0 0
    %436 = vmatpush1.bf16.msra.mxu0 0
    %437 = vmatprep.mubr.bf16.mxu0 0
    %438 = vmatmul.mubr.bf16.gmra.mrb[0].mxu0 %v403
    %v439 = vpop.f32.mrb[0].mxu0
    %v440 = vadd.f32 %v130, %v439
    %v441 = vpop.f32.mrb[0].mxu0
    %v442 = vpop.f32.mrb[0].mxu0
    %v443 = vpop.f32.mrb[0].mxu0
    %444 = vdwg.mxu0
    %v445 = vpack.c.bf16 %v368, %v368
    %447 = vrot.lane.b32.xlu0 %v445, 32
    %v448 = vpop.permute.xlu0 %447
    %v450 = vsel %vm194, %v448, 0
    %452 = vmatprep.subr.bf16.mxu0 0
    %453 = vmatpush1.bf16.msra.mxu0 %v190
    %454 = vmatprep.subr.bf16.mxu0 0
    %455 = vmatpush1.bf16.msra.mxu0 %v191
    %456 = vmatprep.subr.bf16.mxu0 0
    %457 = vmatpush1.bf16.msra.mxu0 0
    %458 = vmatprep.subr.bf16.mxu0 0
    %459 = vmatpush1.bf16.msra.mxu0 0
    %460 = vmatprep.subr.bf16.mxu0 0
    %461 = vmatpush1.bf16.msra.mxu0 0
    %462 = vmatprep.subr.bf16.mxu0 0
    %463 = vmatpush1.bf16.msra.mxu0 0
    %464 = vmatprep.subr.bf16.mxu0 0
    %465 = vmatpush1.bf16.msra.mxu0 0
    %466 = vmatprep.subr.bf16.mxu0 0
    %467 = vmatpush1.bf16.msra.mxu0 0
    %468 = vmatprep.subr.bf16.mxu0 0
    %469 = vmatpush1.bf16.msra.mxu0 0
    %470 = vmatprep.subr.bf16.mxu0 0
    %471 = vmatpush1.bf16.msra.mxu0 0
    %472 = vmatprep.subr.bf16.mxu0 0
    %473 = vmatpush1.bf16.msra.mxu0 0
    %474 = vmatprep.subr.bf16.mxu0 0
    %475 = vmatpush1.bf16.msra.mxu0 0
    %476 = vmatprep.subr.bf16.mxu0 0
    %477 = vmatpush1.bf16.msra.mxu0 0
    %478 = vmatprep.subr.bf16.mxu0 0
    %479 = vmatpush1.bf16.msra.mxu0 0
    %480 = vmatprep.subr.bf16.mxu0 0
    %481 = vmatpush1.bf16.msra.mxu0 0
    %482 = vmatprep.subr.bf16.mxu0 0
    %483 = vmatpush1.bf16.msra.mxu0 0
    %484 = vmatprep.mubr.bf16.mxu0 0
    %485 = vmatmul.mubr.bf16.gmra.mrb[0].mxu0 %v450
    %v486 = vpop.f32.mrb[0].mxu0
    %v487 = vadd.f32 0.0, %v486
    %v488 = vpop.f32.mrb[0].mxu0
    %v489 = vpop.f32.mrb[0].mxu0
    %v490 = vpop.f32.mrb[0].mxu0
    %491 = vdwg.mxu0
    %v492 = vadd.f32 %v440, %v487
    %v494 = vsel %vm138, %v401, 0
    %496 = vmatprep.subr.bf16.mxu0 0
    %497 = vmatpush1.bf16.msra.mxu0 %v249
    %498 = vmatprep.subr.bf16.mxu0 0
    %499 = vmatpush1.bf16.msra.mxu0 0
    %500 = vmatprep.subr.bf16.mxu0 0
    %501 = vmatpush1.bf16.msra.mxu0 0
    %502 = vmatprep.subr.bf16.mxu0 0
    %503 = vmatpush1.bf16.msra.mxu0 0
    %504 = vmatprep.subr.bf16.mxu0 0
    %505 = vmatpush1.bf16.msra.mxu0 0
    %506 = vmatprep.subr.bf16.mxu0 0
    %507 = vmatpush1.bf16.msra.mxu0 0
    %508 = vmatprep.subr.bf16.mxu0 0
    %509 = vmatpush1.bf16.msra.mxu0 0
    %510 = vmatprep.subr.bf16.mxu0 0
    %511 = vmatpush1.bf16.msra.mxu0 0
    %512 = vmatprep.subr.bf16.mxu0 0
    %513 = vmatpush1.bf16.msra.mxu0 0
    %514 = vmatprep.subr.bf16.mxu0 0
    %515 = vmatpush1.bf16.msra.mxu0 0
    %516 = vmatprep.subr.bf16.mxu0 0
    %517 = vmatpush1.bf16.msra.mxu0 0
    %518 = vmatprep.subr.bf16.mxu0 0
    %519 = vmatpush1.bf16.msra.mxu0 0
    %520 = vmatprep.subr.bf16.mxu0 0
    %521 = vmatpush1.bf16.msra.mxu0 0
    %522 = vmatprep.subr.bf16.mxu0 0
    %523 = vmatpush1.bf16.msra.mxu0 0
    %524 = vmatprep.subr.bf16.mxu0 0
    %525 = vmatpush1.bf16.msra.mxu0 0
    %526 = vmatprep.subr.bf16.mxu0 0
    %527 = vmatpush1.bf16.msra.mxu0 0
    %528 = vmatprep.mubr.bf16.mxu0 0
    %529 = vmatmul.mubr.bf16.gmra.mrb[0].mxu0 %v494
    %v530 = vpop.f32.mrb[0].mxu0
    %v531 = vadd.f32 %v243, %v530
    %v532 = vpop.f32.mrb[0].mxu0
    %v533 = vpop.f32.mrb[0].mxu0
    %v534 = vpop.f32.mrb[0].mxu0
    %535 = vdwg.mxu0
    %v536 = vpack.c.bf16 %v390, %v390
    %538 = vrot.lane.b32.xlu0 %v536, 32
    %v539 = vpop.permute.xlu0 %538
    %v541 = vsel %vm194, %v539, 0
    %543 = vmatprep.subr.bf16.mxu0 0
    %544 = vmatpush1.bf16.msra.mxu0 %v302
    %545 = vmatprep.subr.bf16.mxu0 0
    %546 = vmatpush1.bf16.msra.mxu0 %v303
    %547 = vmatprep.subr.bf16.mxu0 0
    %548 = vmatpush1.bf16.msra.mxu0 0
    %549 = vmatprep.subr.bf16.mxu0 0
    %550 = vmatpush1.bf16.msra.mxu0 0
    %551 = vmatprep.subr.bf16.mxu0 0
    %552 = vmatpush1.bf16.msra.mxu0 0
    %553 = vmatprep.subr.bf16.mxu0 0
    %554 = vmatpush1.bf16.msra.mxu0 0
    %555 = vmatprep.subr.bf16.mxu0 0
    %556 = vmatpush1.bf16.msra.mxu0 0
    %557 = vmatprep.subr.bf16.mxu0 0
    %558 = vmatpush1.bf16.msra.mxu0 0
    %559 = vmatprep.subr.bf16.mxu0 0
    %560 = vmatpush1.bf16.msra.mxu0 0
    %561 = vmatprep.subr.bf16.mxu0 0
    %562 = vmatpush1.bf16.msra.mxu0 0
    %563 = vmatprep.subr.bf16.mxu0 0
    %564 = vmatpush1.bf16.msra.mxu0 0
    %565 = vmatprep.subr.bf16.mxu0 0
    %566 = vmatpush1.bf16.msra.mxu0 0
    %567 = vmatprep.subr.bf16.mxu0 0
    %568 = vmatpush1.bf16.msra.mxu0 0
    %569 = vmatprep.subr.bf16.mxu0 0
    %570 = vmatpush1.bf16.msra.mxu0 0
    %571 = vmatprep.subr.bf16.mxu0 0
    %572 = vmatpush1.bf16.msra.mxu0 0
    %573 = vmatprep.subr.bf16.mxu0 0
    %574 = vmatpush1.bf16.msra.mxu0 0
    %575 = vmatprep.mubr.bf16.mxu0 0
    %576 = vmatmul.mubr.bf16.gmra.mrb[0].mxu0 %v541
    %v577 = vpop.f32.mrb[0].mxu0
    %v578 = vadd.f32 0.0, %v577
    %v579 = vpop.f32.mrb[0].mxu0
    %v580 = vpop.f32.mrb[0].mxu0
    %v581 = vpop.f32.mrb[0].mxu0
    %582 = vdwg.mxu0
    %v583 = vadd.f32 %v531, %v578
    %v584 = vmul.f32 %v492, 0.5
    %v585 = vtanh.pop %v584
    %v586 = vmul.f32 %v585, 0.5
    %v587 = vadd.f32 %v586, 0.5
    %v588 = vtanh.pop %v492
    %v589 = vmul.f32 %v587, %v362
    %591 = vrot.lane.b32.xlu0 %v588, 64
    %v592 = vpop.permute.xlu0 %591
    %v594 = vmul.f32 %v587, %v592
    %596 = vrot.lane.b32.xlu0 %v594, 32
    %v597 = vpop.permute.xlu0 %596
    %v599 = vadd.f32 %v589, %v597
    %v600 = vtanh.pop %v599
    %602 = vrot.lane.b32.xlu0 %v600, 64
    %v603 = vpop.permute.xlu0 %602
    %v605 = vmul.f32 %v587, %v603
    %v606 = vmul.f32 %v583, 0.5
    %v607 = vtanh.pop %v606
    %v608 = vmul.f32 %v607, 0.5
    %v609 = vadd.f32 %v608, 0.5
    %v610 = vtanh.pop %v583
    %v611 = vmul.f32 %v609, %v384
    %613 = vrot.lane.b32.xlu0 %v610, 64
    %v614 = vpop.permute.xlu0 %613
    %v616 = vmul.f32 %v609, %v614
    %618 = vrot.lane.b32.xlu0 %v616, 32
    %v619 = vpop.permute.xlu0 %618
    %v621 = vadd.f32 %v611, %v619
    %v622 = vtanh.pop %v621
    %624 = vrot.lane.b32.xlu0 %v622, 64
    %v625 = vpop.permute.xlu0 %624
    %v627 = vmul.f32 %v609, %v625
    %vm628 = vcmp.eq.s32.totalorder %v122, 2
    %v629 = vsel %vm628, 1, 0
    %630 = vset.pattern.permute.xlu0 0
    %631 = vperm.xlu0 %630, %v629
    %v632 = vpop.permute.xlu0 %631
    %vm633 = vcmp.eq.s32.totalorder %v632, 1
    %v634 = vsel %vm633, %v605, %v397
    %s635 = scalar_lea.vmem [#allocation2], 8
    %v636 = vld [vmem:[%s635] sm:$0xf]
    %s637 = scalar_lea.vmem [#allocation2], 20
    %v638 = vld [vmem:[%s637] sm:$0xf]
    %v640 = vsel %vm138, %v636, 0
    %642 = vmatprep.subr.bf16.mxu0 0
    %643 = vmatpush1.bf16.msra.mxu0 %v136
    %644 = vmatprep.subr.bf16.mxu0 0
    %645 = vmatpush1.bf16.msra.mxu0 0
    %646 = vmatprep.subr.bf16.mxu0 0
    %647 = vmatpush1.bf16.msra.mxu0 0
    %648 = vmatprep.subr.bf16.mxu0 0
    %649 = vmatpush1.bf16.msra.mxu0 0
    %650 = vmatprep.subr.bf16.mxu0 0
    %651 = vmatpush1.bf16.msra.mxu0 0
    %652 = vmatprep.subr.bf16.mxu0 0
    %653 = vmatpush1.bf16.msra.mxu0 0
    %654 = vmatprep.subr.bf16.mxu0 0
    %655 = vmatpush1.bf16.msra.mxu0 0
    %656 = vmatprep.subr.bf16.mxu0 0
    %657 = vmatpush1.bf16.msra.mxu0 0
    %658 = vmatprep.subr.bf16.mxu0 0
    %659 = vmatpush1.bf16.msra.mxu0 0
    %660 = vmatprep.subr.bf16.mxu0 0
    %661 = vmatpush1.bf16.msra.mxu0 0
    %662 = vmatprep.subr.bf16.mxu0 0
    %663 = vmatpush1.bf16.msra.mxu0 0
    %664 = vmatprep.subr.bf16.mxu0 0
    %665 = vmatpush1.bf16.msra.mxu0 0
    %666 = vmatprep.subr.bf16.mxu0 0
    %667 = vmatpush1.bf16.msra.mxu0 0
    %668 = vmatprep.subr.bf16.mxu0 0
    %669 = vmatpush1.bf16.msra.mxu0 0
    %670 = vmatprep.subr.bf16.mxu0 0
    %671 = vmatpush1.bf16.msra.mxu0 0
    %672 = vmatprep.subr.bf16.mxu0 0
    %673 = vmatpush1.bf16.msra.mxu0 0
    %674 = vmatprep.mubr.bf16.mxu0 0
    %675 = vmatmul.mubr.bf16.gmra.mrb[0].mxu0 %v640
    %v676 = vpop.f32.mrb[0].mxu0
    %v677 = vadd.f32 %v130, %v676
    %v678 = vpop.f32.mrb[0].mxu0
    %v679 = vpop.f32.mrb[0].mxu0
    %v680 = vpop.f32.mrb[0].mxu0
    %681 = vdwg.mxu0
    %v682 = vpack.c.bf16 %v605, %v605
    %684 = vrot.lane.b32.xlu0 %v682, 32
    %v685 = vpop.permute.xlu0 %684
    %v687 = vsel %vm194, %v685, 0
    %689 = vmatprep.subr.bf16.mxu0 0
    %690 = vmatpush1.bf16.msra.mxu0 %v190
    %691 = vmatprep.subr.bf16.mxu0 0
    %692 = vmatpush1.bf16.msra.mxu0 %v191
    %693 = vmatprep.subr.bf16.mxu0 0
    %694 = vmatpush1.bf16.msra.mxu0 0
    %695 = vmatprep.subr.bf16.mxu0 0
    %696 = vmatpush1.bf16.msra.mxu0 0
    %697 = vmatprep.subr.bf16.mxu0 0
    %698 = vmatpush1.bf16.msra.mxu0 0
    %699 = vmatprep.subr.bf16.mxu0 0
    %700 = vmatpush1.bf16.msra.mxu0 0
    %701 = vmatprep.subr.bf16.mxu0 0
    %702 = vmatpush1.bf16.msra.mxu0 0
    %703 = vmatprep.subr.bf16.mxu0 0
    %704 = vmatpush1.bf16.msra.mxu0 0
    %705 = vmatprep.subr.bf16.mxu0 0
    %706 = vmatpush1.bf16.msra.mxu0 0
    %707 = vmatprep.subr.bf16.mxu0 0
    %708 = vmatpush1.bf16.msra.mxu0 0
    %709 = vmatprep.subr.bf16.mxu0 0
    %710 = vmatpush1.bf16.msra.mxu0 0
    %711 = vmatprep.subr.bf16.mxu0 0
    %712 = vmatpush1.bf16.msra.mxu0 0
    %713 = vmatprep.subr.bf16.mxu0 0
    %714 = vmatpush1.bf16.msra.mxu0 0
    %715 = vmatprep.subr.bf16.mxu0 0
    %716 = vmatpush1.bf16.msra.mxu0 0
    %717 = vmatprep.subr.bf16.mxu0 0
    %718 = vmatpush1.bf16.msra.mxu0 0
    %719 = vmatprep.subr.bf16.mxu0 0
    %720 = vmatpush1.bf16.msra.mxu0 0
    %721 = vmatprep.mubr.bf16.mxu0 0
    %722 = vmatmul.mubr.bf16.gmra.mrb[0].mxu0 %v687
    %v723 = vpop.f32.mrb[0].mxu0
    %v724 = vadd.f32 0.0, %v723
    %v725 = vpop.f32.mrb[0].mxu0
    %v726 = vpop.f32.mrb[0].mxu0
    %v727 = vpop.f32.mrb[0].mxu0
    %728 = vdwg.mxu0
    %v729 = vadd.f32 %v677, %v724
    %v731 = vsel %vm138, %v638, 0
    %733 = vmatprep.subr.bf16.mxu0 0
    %734 = vmatpush1.bf16.msra.mxu0 %v249
    %735 = vmatprep.subr.bf16.mxu0 0
    %736 = vmatpush1.bf16.msra.mxu0 0
    %737 = vmatprep.subr.bf16.mxu0 0
    %738 = vmatpush1.bf16.msra.mxu0 0
    %739 = vmatprep.subr.bf16.mxu0 0
    %740 = vmatpush1.bf16.msra.mxu0 0
    %741 = vmatprep.subr.bf16.mxu0 0
    %742 = vmatpush1.bf16.msra.mxu0 0
    %743 = vmatprep.subr.bf16.mxu0 0
    %744 = vmatpush1.bf16.msra.mxu0 0
    %745 = vmatprep.subr.bf16.mxu0 0
    %746 = vmatpush1.bf16.msra.mxu0 0
    %747 = vmatprep.subr.bf16.mxu0 0
    %748 = vmatpush1.bf16.msra.mxu0 0
    %749 = vmatprep.subr.bf16.mxu0 0
    %750 = vmatpush1.bf16.msra.mxu0 0
    %751 = vmatprep.subr.bf16.mxu0 0
    %752 = vmatpush1.bf16.msra.mxu0 0
    %753 = vmatprep.subr.bf16.mxu0 0
    %754 = vmatpush1.bf16.msra.mxu0 0
    %755 = vmatprep.subr.bf16.mxu0 0
    %756 = vmatpush1.bf16.msra.mxu0 0
    %757 = vmatprep.subr.bf16.mxu0 0
    %758 = vmatpush1.bf16.msra.mxu0 0
    %759 = vmatprep.subr.bf16.mxu0 0
    %760 = vmatpush1.bf16.msra.mxu0 0
    %761 = vmatprep.subr.bf16.mxu0 0
    %762 = vmatpush1.bf16.msra.mxu0 0
    %763 = vmatprep.subr.bf16.mxu0 0
    %764 = vmatpush1.bf16.msra.mxu0 0
    %765 = vmatprep.mubr.bf16.mxu0 0
    %766 = vmatmul.mubr.bf16.gmra.mrb[0].mxu0 %v731
    %v767 = vpop.f32.mrb[0].mxu0
    %v768 = vadd.f32 %v243, %v767
    %v769 = vpop.f32.mrb[0].mxu0
    %v770 = vpop.f32.mrb[0].mxu0
    %v771 = vpop.f32.mrb[0].mxu0
    %772 = vdwg.mxu0
    %v773 = vpack.c.bf16 %v627, %v627
    %775 = vrot.lane.b32.xlu0 %v773, 32
    %v776 = vpop.permute.xlu0 %775
    %v778 = vsel %vm194, %v776, 0
    %780 = vmatprep.subr.bf16.mxu0 0
    %781 = vmatpush1.bf16.msra.mxu0 %v302
    %782 = vmatprep.subr.bf16.mxu0 0
    %783 = vmatpush1.bf16.msra.mxu0 %v303
    %784 = vmatprep.subr.bf16.mxu0 0
    %785 = vmatpush1.bf16.msra.mxu0 0
    %786 = vmatprep.subr.bf16.mxu0 0
    %787 = vmatpush1.bf16.msra.mxu0 0
    %788 = vmatprep.subr.bf16.mxu0 0
    %789 = vmatpush1.bf16.msra.mxu0 0
    %790 = vmatprep.subr.bf16.mxu0 0
    %791 = vmatpush1.bf16.msra.mxu0 0
    %792 = vmatprep.subr.bf16.mxu0 0
    %793 = vmatpush1.bf16.msra.mxu0 0
    %794 = vmatprep.subr.bf16.mxu0 0
    %795 = vmatpush1.bf16.msra.mxu0 0
    %796 = vmatprep.subr.bf16.mxu0 0
    %797 = vmatpush1.bf16.msra.mxu0 0
    %798 = vmatprep.subr.bf16.mxu0 0
    %799 = vmatpush1.bf16.msra.mxu0 0
    %800 = vmatprep.subr.bf16.mxu0 0
    %801 = vmatpush1.bf16.msra.mxu0 0
    %802 = vmatprep.subr.bf16.mxu0 0
    %803 = vmatpush1.bf16.msra.mxu0 0
    %804 = vmatprep.subr.bf16.mxu0 0
    %805 = vmatpush1.bf16.msra.mxu0 0
    %806 = vmatprep.subr.bf16.mxu0 0
    %807 = vmatpush1.bf16.msra.mxu0 0
    %808 = vmatprep.subr.bf16.mxu0 0
    %809 = vmatpush1.bf16.msra.mxu0 0
    %810 = vmatprep.subr.bf16.mxu0 0
    %811 = vmatpush1.bf16.msra.mxu0 0
    %812 = vmatprep.mubr.bf16.mxu0 0
    %813 = vmatmul.mubr.bf16.gmra.mrb[0].mxu0 %v778
    %v814 = vpop.f32.mrb[0].mxu0
    %v815 = vadd.f32 0.0, %v814
    %v816 = vpop.f32.mrb[0].mxu0
    %v817 = vpop.f32.mrb[0].mxu0
    %v818 = vpop.f32.mrb[0].mxu0
    %819 = vdwg.mxu0
    %v820 = vadd.f32 %v768, %v815
    %v821 = vmul.f32 %v729, 0.5
    %v822 = vtanh.pop %v821
    %v823 = vmul.f32 %v822, 0.5
    %v824 = vadd.f32 %v823, 0.5
    %v825 = vtanh.pop %v729
    %v826 = vmul.f32 %v824, %v599
    %828 = vrot.lane.b32.xlu0 %v825, 64
    %v829 = vpop.permute.xlu0 %828
    %v831 = vmul.f32 %v824, %v829
    %833 = vrot.lane.b32.xlu0 %v831, 32
    %v834 = vpop.permute.xlu0 %833
    %v836 = vadd.f32 %v826, %v834
    %v837 = vtanh.pop %v836
    %839 = vrot.lane.b32.xlu0 %v837, 64
    %v840 = vpop.permute.xlu0 %839
    %v842 = vmul.f32 %v824, %v840
    %v843 = vmul.f32 %v820, 0.5
    %v844 = vtanh.pop %v843
    %v845 = vmul.f32 %v844, 0.5
    %v846 = vadd.f32 %v845, 0.5
    %v847 = vtanh.pop %v820
    %v848 = vmul.f32 %v846, %v621
    %850 = vrot.lane.b32.xlu0 %v847, 64
    %v851 = vpop.permute.xlu0 %850
    %v853 = vmul.f32 %v846, %v851
    %855 = vrot.lane.b32.xlu0 %v853, 32
    %v856 = vpop.permute.xlu0 %855
    %v858 = vadd.f32 %v848, %v856
    %v859 = vtanh.pop %v858
    %861 = vrot.lane.b32.xlu0 %v859, 64
    %v862 = vpop.permute.xlu0 %861
    %v864 = vmul.f32 %v846, %v862
    %vm865 = vcmp.eq.s32.totalorder %v122, 3
    %v866 = vsel %vm865, 1, 0
    %867 = vset.pattern.permute.xlu0 0
    %868 = vperm.xlu0 %867, %v866
    %v869 = vpop.permute.xlu0 %868
    %vm870 = vcmp.eq.s32.totalorder %v869, 1
    %v871 = vsel %vm870, %v842, %v634
    %s872 = scalar_lea.vmem [#allocation2], 12
    %v873 = vld [vmem:[%s872] sm:$0xf]
    %s874 = scalar_lea.vmem [#allocation2], 16
    %v875 = vld [vmem:[%s874] sm:$0xf]
    %v877 = vsel %vm138, %v873, 0
    %879 = vmatprep.subr.bf16.mxu0 0
    %880 = vmatpush1.bf16.msra.mxu0 %v136
    %881 = vmatprep.subr.bf16.mxu0 0
    %882 = vmatpush1.bf16.msra.mxu0 0
    %883 = vmatprep.subr.bf16.mxu0 0
    %884 = vmatpush1.bf16.msra.mxu0 0
    %885 = vmatprep.subr.bf16.mxu0 0
    %886 = vmatpush1.bf16.msra.mxu0 0
    %887 = vmatprep.subr.bf16.mxu0 0
    %888 = vmatpush1.bf16.msra.mxu0 0
    %889 = vmatprep.subr.bf16.mxu0 0
    %890 = vmatpush1.bf16.msra.mxu0 0
    %891 = vmatprep.subr.bf16.mxu0 0
    %892 = vmatpush1.bf16.msra.mxu0 0
    %893 = vmatprep.subr.bf16.mxu0 0
    %894 = vmatpush1.bf16.msra.mxu0 0
    %895 = vmatprep.subr.bf16.mxu0 0
    %896 = vmatpush1.bf16.msra.mxu0 0
    %897 = vmatprep.subr.bf16.mxu0 0
    %898 = vmatpush1.bf16.msra.mxu0 0
    %899 = vmatprep.subr.bf16.mxu0 0
    %900 = vmatpush1.bf16.msra.mxu0 0
    %901 = vmatprep.subr.bf16.mxu0 0
    %902 = vmatpush1.bf16.msra.mxu0 0
    %903 = vmatprep.subr.bf16.mxu0 0
    %904 = vmatpush1.bf16.msra.mxu0 0
    %905 = vmatprep.subr.bf16.mxu0 0
    %906 = vmatpush1.bf16.msra.mxu0 0
    %907 = vmatprep.subr.bf16.mxu0 0
    %908 = vmatpush1.bf16.msra.mxu0 0
    %909 = vmatprep.subr.bf16.mxu0 0
    %910 = vmatpush1.bf16.msra.mxu0 0
    %911 = vmatprep.mubr.bf16.mxu0 0
    %912 = vmatmul.mubr.bf16.gmra.mrb[0].mxu0 %v877
    %v913 = vpop.f32.mrb[0].mxu0
    %v914 = vadd.f32 %v130, %v913
    %v915 = vpop.f32.mrb[0].mxu0
    %v916 = vpop.f32.mrb[0].mxu0
    %v917 = vpop.f32.mrb[0].mxu0
    %918 = vdwg.mxu0
    %v919 = vpack.c.bf16 %v842, %v842
    %921 = vrot.lane.b32.xlu0 %v919, 32
    %v922 = vpop.permute.xlu0 %921
    %v924 = vsel %vm194, %v922, 0
    %926 = vmatprep.subr.bf16.mxu0 0
    %927 = vmatpush1.bf16.msra.mxu0 %v190
    %928 = vmatprep.subr.bf16.mxu0 0
    %929 = vmatpush1.bf16.msra.mxu0 %v191
    %930 = vmatprep.subr.bf16.mxu0 0
    %931 = vmatpush1.bf16.msra.mxu0 0
    %932 = vmatprep.subr.bf16.mxu0 0
    %933 = vmatpush1.bf16.msra.mxu0 0
    %934 = vmatprep.subr.bf16.mxu0 0
    %935 = vmatpush1.bf16.msra.mxu0 0
    %936 = vmatprep.subr.bf16.mxu0 0
    %937 = vmatpush1.bf16.msra.mxu0 0
    %938 = vmatprep.subr.bf16.mxu0 0
    %939 = vmatpush1.bf16.msra.mxu0 0
    %940 = vmatprep.subr.bf16.mxu0 0
    %941 = vmatpush1.bf16.msra.mxu0 0
    %942 = vmatprep.subr.bf16.mxu0 0
    %943 = vmatpush1.bf16.msra.mxu0 0
    %944 = vmatprep.subr.bf16.mxu0 0
    %945 = vmatpush1.bf16.msra.mxu0 0
    %946 = vmatprep.subr.bf16.mxu0 0
    %947 = vmatpush1.bf16.msra.mxu0 0
    %948 = vmatprep.subr.bf16.mxu0 0
    %949 = vmatpush1.bf16.msra.mxu0 0
    %950 = vmatprep.subr.bf16.mxu0 0
    %951 = vmatpush1.bf16.msra.mxu0 0
    %952 = vmatprep.subr.bf16.mxu0 0
    %953 = vmatpush1.bf16.msra.mxu0 0
    %954 = vmatprep.subr.bf16.mxu0 0
    %955 = vmatpush1.bf16.msra.mxu0 0
    %956 = vmatprep.subr.bf16.mxu0 0
    %957 = vmatpush1.bf16.msra.mxu0 0
    %958 = vmatprep.mubr.bf16.mxu0 0
    %959 = vmatmul.mubr.bf16.gmra.mrb[0].mxu0 %v924
    %v960 = vpop.f32.mrb[0].mxu0
    %v961 = vadd.f32 0.0, %v960
    %v962 = vpop.f32.mrb[0].mxu0
    %v963 = vpop.f32.mrb[0].mxu0
    %v964 = vpop.f32.mrb[0].mxu0
    %965 = vdwg.mxu0
    %v966 = vadd.f32 %v914, %v961
    %v968 = vsel %vm138, %v875, 0
    %970 = vmatprep.subr.bf16.mxu0 0
    %971 = vmatpush1.bf16.msra.mxu0 %v249
    %972 = vmatprep.subr.bf16.mxu0 0
    %973 = vmatpush1.bf16.msra.mxu0 0
    %974 = vmatprep.subr.bf16.mxu0 0
    %975 = vmatpush1.bf16.msra.mxu0 0
    %976 = vmatprep.subr.bf16.mxu0 0
    %977 = vmatpush1.bf16.msra.mxu0 0
    %978 = vmatprep.subr.bf16.mxu0 0
    %979 = vmatpush1.bf16.msra.mxu0 0
    %980 = vmatprep.subr.bf16.mxu0 0
    %981 = vmatpush1.bf16.msra.mxu0 0
    %982 = vmatprep.subr.bf16.mxu0 0
    %983 = vmatpush1.bf16.msra.mxu0 0
    %984 = vmatprep.subr.bf16.mxu0 0
    %985 = vmatpush1.bf16.msra.mxu0 0
    %986 = vmatprep.subr.bf16.mxu0 0
    %987 = vmatpush1.bf16.msra.mxu0 0
    %988 = vmatprep.subr.bf16.mxu0 0
    %989 = vmatpush1.bf16.msra.mxu0 0
    %990 = vmatprep.subr.bf16.mxu0 0
    %991 = vmatpush1.bf16.msra.mxu0 0
    %992 = vmatprep.subr.bf16.mxu0 0
    %993 = vmatpush1.bf16.msra.mxu0 0
    %994 = vmatprep.subr.bf16.mxu0 0
    %995 = vmatpush1.bf16.msra.mxu0 0
    %996 = vmatprep.subr.bf16.mxu0 0
    %997 = vmatpush1.bf16.msra.mxu0 0
    %998 = vmatprep.subr.bf16.mxu0 0
    %999 = vmatpush1.bf16.msra.mxu0 0
    %1000 = vmatprep.subr.bf16.mxu0 0
    %1001 = vmatpush1.bf16.msra.mxu0 0
    %1002 = vmatprep.mubr.bf16.mxu0 0
    %1003 = vmatmul.mubr.bf16.gmra.mrb[0].mxu0 %v968
    %v1004 = vpop.f32.mrb[0].mxu0
    %v1005 = vadd.f32 %v243, %v1004
    %v1006 = vpop.f32.mrb[0].mxu0
    %v1007 = vpop.f32.mrb[0].mxu0
    %v1008 = vpop.f32.mrb[0].mxu0
    %1009 = vdwg.mxu0
    %v1010 = vpack.c.bf16 %v864, %v864
    %1012 = vrot.lane.b32.xlu0 %v1010, 32
    %v1013 = vpop.permute.xlu0 %1012
    %v1015 = vsel %vm194, %v1013, 0
    %1017 = vmatprep.subr.bf16.mxu0 0
    %1018 = vmatpush1.bf16.msra.mxu0 %v302
    %1019 = vmatprep.subr.bf16.mxu0 0
    %1020 = vmatpush1.bf16.msra.mxu0 %v303
    %1021 = vmatprep.subr.bf16.mxu0 0
    %1022 = vmatpush1.bf16.msra.mxu0 0
    %1023 = vmatprep.subr.bf16.mxu0 0
    %1024 = vmatpush1.bf16.msra.mxu0 0
    %1025 = vmatprep.subr.bf16.mxu0 0
    %1026 = vmatpush1.bf16.msra.mxu0 0
    %1027 = vmatprep.subr.bf16.mxu0 0
    %1028 = vmatpush1.bf16.msra.mxu0 0
    %1029 = vmatprep.subr.bf16.mxu0 0
    %1030 = vmatpush1.bf16.msra.mxu0 0
    %1031 = vmatprep.subr.bf16.mxu0 0
    %1032 = vmatpush1.bf16.msra.mxu0 0
    %1033 = vmatprep.subr.bf16.mxu0 0
    %1034 = vmatpush1.bf16.msra.mxu0 0
    %1035 = vmatprep.subr.bf16.mxu0 0
    %1036 = vmatpush1.bf16.msra.mxu0 0
    %1037 = vmatprep.subr.bf16.mxu0 0
    %1038 = vmatpush1.bf16.msra.mxu0 0
    %1039 = vmatprep.subr.bf16.mxu0 0
    %1040 = vmatpush1.bf16.msra.mxu0 0
    %1041 = vmatprep.subr.bf16.mxu0 0
    %1042 = vmatpush1.bf16.msra.mxu0 0
    %1043 = vmatprep.subr.bf16.mxu0 0
    %1044 = vmatpush1.bf16.msra.mxu0 0
    %1045 = vmatprep.subr.bf16.mxu0 0
    %1046 = vmatpush1.bf16.msra.mxu0 0
    %1047 = vmatprep.subr.bf16.mxu0 0
    %1048 = vmatpush1.bf16.msra.mxu0 0
    %1049 = vmatprep.mubr.bf16.mxu0 0
    %1050 = vmatmul.mubr.bf16.gmra.mrb[0].mxu0 %v1015
    %v1051 = vpop.f32.mrb[0].mxu0
    %v1052 = vadd.f32 0.0, %v1051
    %v1053 = vpop.f32.mrb[0].mxu0
    %v1054 = vpop.f32.mrb[0].mxu0
    %v1055 = vpop.f32.mrb[0].mxu0
    %1056 = vdwg.mxu0
    %v1057 = vadd.f32 %v1005, %v1052
    %v1058 = vmul.f32 %v966, 0.5
    %v1059 = vtanh.pop %v1058
    %v1060 = vmul.f32 %v1059, 0.5
    %v1061 = vadd.f32 %v1060, 0.5
    %v1062 = vtanh.pop %v966
    %v1063 = vmul.f32 %v1061, %v836
    %1065 = vrot.lane.b32.xlu0 %v1062, 64
    %v1066 = vpop.permute.xlu0 %1065
    %v1068 = vmul.f32 %v1061, %v1066
    %1070 = vrot.lane.b32.xlu0 %v1068, 32
    %v1071 = vpop.permute.xlu0 %1070
    %v1073 = vadd.f32 %v1063, %v1071
    %v1074 = vtanh.pop %v1073
    %1076 = vrot.lane.b32.xlu0 %v1074, 64
    %v1077 = vpop.permute.xlu0 %1076
    %v1079 = vmul.f32 %v1061, %v1077
    %v1080 = vmul.f32 %v1057, 0.5
    %v1081 = vtanh.pop %v1080
    %v1082 = vmul.f32 %v1081, 0.5
    %v1083 = vadd.f32 %v1082, 0.5
    %v1084 = vtanh.pop %v1057
    %v1085 = vmul.f32 %v1083, %v858
    %1087 = vrot.lane.b32.xlu0 %v1084, 64
    %v1088 = vpop.permute.xlu0 %1087
    %v1090 = vmul.f32 %v1083, %v1088
    %1092 = vrot.lane.b32.xlu0 %v1090, 32
    %v1093 = vpop.permute.xlu0 %1092
    %v1095 = vadd.f32 %v1085, %v1093
    %v1096 = vtanh.pop %v1095
    %1098 = vrot.lane.b32.xlu0 %v1096, 64
    %v1099 = vpop.permute.xlu0 %1098
    %v1101 = vmul.f32 %v1083, %v1099
    %vm1102 = vcmp.eq.s32.totalorder %v122, 4
    %v1103 = vsel %vm1102, 1, 0
    %1104 = vset.pattern.permute.xlu0 0
    %1105 = vperm.xlu0 %1104, %v1103
    %v1106 = vpop.permute.xlu0 %1105
    %vm1107 = vcmp.eq.s32.totalorder %v1106, 1
    %v1108 = vsel %vm1107, %v1079, %v871
    %1109 = vmatprep.subr.bf16.mxu0 0
    %1110 = vmatpush1.bf16.msra.mxu0 %v136
    %1111 = vmatprep.subr.bf16.mxu0 0
    %1112 = vmatpush1.bf16.msra.mxu0 0
    %1113 = vmatprep.subr.bf16.mxu0 0
    %1114 = vmatpush1.bf16.msra.mxu0 0
    %1115 = vmatprep.subr.bf16.mxu0 0
    %1116 = vmatpush1.bf16.msra.mxu0 0
    %1117 = vmatprep.subr.bf16.mxu0 0
    %1118 = vmatpush1.bf16.msra.mxu0 0
    %1119 = vmatprep.subr.bf16.mxu0 0
    %1120 = vmatpush1.bf16.msra.mxu0 0
    %1121 = vmatprep.subr.bf16.mxu0 0
    %1122 = vmatpush1.bf16.msra.mxu0 0
    %1123 = vmatprep.subr.bf16.mxu0 0
    %1124 = vmatpush1.bf16.msra.mxu0 0
    %1125 = vmatprep.subr.bf16.mxu0 0
    %1126 = vmatpush1.bf16.msra.mxu0 0
    %1127 = vmatprep.subr.bf16.mxu0 0
    %1128 = vmatpush1.bf16.msra.mxu0 0
    %1129 = vmatprep.subr.bf16.mxu0 0
    %1130 = vmatpush1.bf16.msra.mxu0 0
    %1131 = vmatprep.subr.bf16.mxu0 0
    %1132 = vmatpush1.bf16.msra.mxu0 0
    %1133 = vmatprep.subr.bf16.mxu0 0
    %1134 = vmatpush1.bf16.msra.mxu0 0
    %1135 = vmatprep.subr.bf16.mxu0 0
    %1136 = vmatpush1.bf16.msra.mxu0 0
    %1137 = vmatprep.subr.bf16.mxu0 0
    %1138 = vmatpush1.bf16.msra.mxu0 0
    %1139 = vmatprep.subr.bf16.mxu0 0
    %1140 = vmatpush1.bf16.msra.mxu0 0
    %1141 = vmatprep.mubr.bf16.mxu0 0
    %1142 = vmatmul.mubr.bf16.gmra.mrb[0].mxu0 %v968
    %v1143 = vpop.f32.mrb[0].mxu0
    %v1144 = vadd.f32 %v130, %v1143
    %v1145 = vpop.f32.mrb[0].mxu0
    %v1146 = vpop.f32.mrb[0].mxu0
    %v1147 = vpop.f32.mrb[0].mxu0
    %1148 = vdwg.mxu0
    %v1149 = vpack.c.bf16 %v1079, %v1079
    %1151 = vrot.lane.b32.xlu0 %v1149, 32
    %v1152 = vpop.permute.xlu0 %1151
    %v1154 = vsel %vm194, %v1152, 0
    %1156 = vmatprep.subr.bf16.mxu0 0
    %1157 = vmatpush1.bf16.msra.mxu0 %v190
    %1158 = vmatprep.subr.bf16.mxu0 0
    %1159 = vmatpush1.bf16.msra.mxu0 %v191
    %1160 = vmatprep.subr.bf16.mxu0 0
    %1161 = vmatpush1.bf16.msra.mxu0 0
    %1162 = vmatprep.subr.bf16.mxu0 0
    %1163 = vmatpush1.bf16.msra.mxu0 0
    %1164 = vmatprep.subr.bf16.mxu0 0
    %1165 = vmatpush1.bf16.msra.mxu0 0
    %1166 = vmatprep.subr.bf16.mxu0 0
    %1167 = vmatpush1.bf16.msra.mxu0 0
    %1168 = vmatprep.subr.bf16.mxu0 0
    %1169 = vmatpush1.bf16.msra.mxu0 0
    %1170 = vmatprep.subr.bf16.mxu0 0
    %1171 = vmatpush1.bf16.msra.mxu0 0
    %1172 = vmatprep.subr.bf16.mxu0 0
    %1173 = vmatpush1.bf16.msra.mxu0 0
    %1174 = vmatprep.subr.bf16.mxu0 0
    %1175 = vmatpush1.bf16.msra.mxu0 0
    %1176 = vmatprep.subr.bf16.mxu0 0
    %1177 = vmatpush1.bf16.msra.mxu0 0
    %1178 = vmatprep.subr.bf16.mxu0 0
    %1179 = vmatpush1.bf16.msra.mxu0 0
    %1180 = vmatprep.subr.bf16.mxu0 0
    %1181 = vmatpush1.bf16.msra.mxu0 0
    %1182 = vmatprep.subr.bf16.mxu0 0
    %1183 = vmatpush1.bf16.msra.mxu0 0
    %1184 = vmatprep.subr.bf16.mxu0 0
    %1185 = vmatpush1.bf16.msra.mxu0 0
    %1186 = vmatprep.subr.bf16.mxu0 0
    %1187 = vmatpush1.bf16.msra.mxu0 0
    %1188 = vmatprep.mubr.bf16.mxu0 0
    %1189 = vmatmul.mubr.bf16.gmra.mrb[0].mxu0 %v1154
    %v1190 = vpop.f32.mrb[0].mxu0
    %v1191 = vadd.f32 0.0, %v1190
    %v1192 = vpop.f32.mrb[0].mxu0
    %v1193 = vpop.f32.mrb[0].mxu0
    %v1194 = vpop.f32.mrb[0].mxu0
    %1195 = vdwg.mxu0
    %v1196 = vadd.f32 %v1144, %v1191
    %1197 = vmatprep.subr.bf16.mxu0 0
    %1198 = vmatpush1.bf16.msra.mxu0 %v249
    %1199 = vmatprep.subr.bf16.mxu0 0
    %1200 = vmatpush1.bf16.msra.mxu0 0
    %1201 = vmatprep.subr.bf16.mxu0 0
    %1202 = vmatpush1.bf16.msra.mxu0 0
    %1203 = vmatprep.subr.bf16.mxu0 0
    %1204 = vmatpush1.bf16.msra.mxu0 0
    %1205 = vmatprep.subr.bf16.mxu0 0
    %1206 = vmatpush1.bf16.msra.mxu0 0
    %1207 = vmatprep.subr.bf16.mxu0 0
    %1208 = vmatpush1.bf16.msra.mxu0 0
    %1209 = vmatprep.subr.bf16.mxu0 0
    %1210 = vmatpush1.bf16.msra.mxu0 0
    %1211 = vmatprep.subr.bf16.mxu0 0
    %1212 = vmatpush1.bf16.msra.mxu0 0
    %1213 = vmatprep.subr.bf16.mxu0 0
    %1214 = vmatpush1.bf16.msra.mxu0 0
    %1215 = vmatprep.subr.bf16.mxu0 0
    %1216 = vmatpush1.bf16.msra.mxu0 0
    %1217 = vmatprep.subr.bf16.mxu0 0
    %1218 = vmatpush1.bf16.msra.mxu0 0
    %1219 = vmatprep.subr.bf16.mxu0 0
    %1220 = vmatpush1.bf16.msra.mxu0 0
    %1221 = vmatprep.subr.bf16.mxu0 0
    %1222 = vmatpush1.bf16.msra.mxu0 0
    %1223 = vmatprep.subr.bf16.mxu0 0
    %1224 = vmatpush1.bf16.msra.mxu0 0
    %1225 = vmatprep.subr.bf16.mxu0 0
    %1226 = vmatpush1.bf16.msra.mxu0 0
    %1227 = vmatprep.subr.bf16.mxu0 0
    %1228 = vmatpush1.bf16.msra.mxu0 0
    %1229 = vmatprep.mubr.bf16.mxu0 0
    %1230 = vmatmul.mubr.bf16.gmra.mrb[0].mxu0 %v877
    %v1231 = vpop.f32.mrb[0].mxu0
    %v1232 = vadd.f32 %v243, %v1231
    %v1233 = vpop.f32.mrb[0].mxu0
    %v1234 = vpop.f32.mrb[0].mxu0
    %v1235 = vpop.f32.mrb[0].mxu0
    %1236 = vdwg.mxu0
    %v1237 = vpack.c.bf16 %v1101, %v1101
    %1239 = vrot.lane.b32.xlu0 %v1237, 32
    %v1240 = vpop.permute.xlu0 %1239
    %v1242 = vsel %vm194, %v1240, 0
    %1244 = vmatprep.subr.bf16.mxu0 0
    %1245 = vmatpush1.bf16.msra.mxu0 %v302
    %1246 = vmatprep.subr.bf16.mxu0 0
    %1247 = vmatpush1.bf16.msra.mxu0 %v303
    %1248 = vmatprep.subr.bf16.mxu0 0
    %1249 = vmatpush1.bf16.msra.mxu0 0
    %1250 = vmatprep.subr.bf16.mxu0 0
    %1251 = vmatpush1.bf16.msra.mxu0 0
    %1252 = vmatprep.subr.bf16.mxu0 0
    %1253 = vmatpush1.bf16.msra.mxu0 0
    %1254 = vmatprep.subr.bf16.mxu0 0
    %1255 = vmatpush1.bf16.msra.mxu0 0
    %1256 = vmatprep.subr.bf16.mxu0 0
    %1257 = vmatpush1.bf16.msra.mxu0 0
    %1258 = vmatprep.subr.bf16.mxu0 0
    %1259 = vmatpush1.bf16.msra.mxu0 0
    %1260 = vmatprep.subr.bf16.mxu0 0
    %1261 = vmatpush1.bf16.msra.mxu0 0
    %1262 = vmatprep.subr.bf16.mxu0 0
    %1263 = vmatpush1.bf16.msra.mxu0 0
    %1264 = vmatprep.subr.bf16.mxu0 0
    %1265 = vmatpush1.bf16.msra.mxu0 0
    %1266 = vmatprep.subr.bf16.mxu0 0
    %1267 = vmatpush1.bf16.msra.mxu0 0
    %1268 = vmatprep.subr.bf16.mxu0 0
    %1269 = vmatpush1.bf16.msra.mxu0 0
    %1270 = vmatprep.subr.bf16.mxu0 0
    %1271 = vmatpush1.bf16.msra.mxu0 0
    %1272 = vmatprep.subr.bf16.mxu0 0
    %1273 = vmatpush1.bf16.msra.mxu0 0
    %1274 = vmatprep.subr.bf16.mxu0 0
    %1275 = vmatpush1.bf16.msra.mxu0 0
    %1276 = vmatprep.mubr.bf16.mxu0 0
    %1277 = vmatmul.mubr.bf16.gmra.mrb[0].mxu0 %v1242
    %v1278 = vpop.f32.mrb[0].mxu0
    %v1279 = vadd.f32 0.0, %v1278
    %v1280 = vpop.f32.mrb[0].mxu0
    %v1281 = vpop.f32.mrb[0].mxu0
    %v1282 = vpop.f32.mrb[0].mxu0
    %1283 = vdwg.mxu0
    %v1284 = vadd.f32 %v1232, %v1279
    %v1285 = vmul.f32 %v1196, 0.5
    %v1286 = vtanh.pop %v1285
    %v1287 = vmul.f32 %v1286, 0.5
    %v1288 = vadd.f32 %v1287, 0.5
    %v1289 = vtanh.pop %v1196
    %v1290 = vmul.f32 %v1288, %v1073
    %1292 = vrot.lane.b32.xlu0 %v1289, 64
    %v1293 = vpop.permute.xlu0 %1292
    %v1295 = vmul.f32 %v1288, %v1293
    %1297 = vrot.lane.b32.xlu0 %v1295, 32
    %v1298 = vpop.permute.xlu0 %1297
    %v1300 = vadd.f32 %v1290, %v1298
    %v1301 = vtanh.pop %v1300
    %1303 = vrot.lane.b32.xlu0 %v1301, 64
    %v1304 = vpop.permute.xlu0 %1303
    %v1306 = vmul.f32 %v1288, %v1304
    %v1307 = vmul.f32 %v1284, 0.5
    %v1308 = vtanh.pop %v1307
    %v1309 = vmul.f32 %v1308, 0.5
    %v1310 = vadd.f32 %v1309, 0.5
    %v1311 = vtanh.pop %v1284
    %v1312 = vmul.f32 %v1310, %v1095
    %1314 = vrot.lane.b32.xlu0 %v1311, 64
    %v1315 = vpop.permute.xlu0 %1314
    %v1317 = vmul.f32 %v1310, %v1315
    %1319 = vrot.lane.b32.xlu0 %v1317, 32
    %v1320 = vpop.permute.xlu0 %1319
    %v1322 = vadd.f32 %v1312, %v1320
    %v1323 = vtanh.pop %v1322
    %1325 = vrot.lane.b32.xlu0 %v1323, 64
    %v1326 = vpop.permute.xlu0 %1325
    %v1328 = vmul.f32 %v1310, %v1326
    %vm1329 = vcmp.eq.s32.totalorder %v122, 5
    %v1330 = vsel %vm1329, 1, 0
    %1331 = vset.pattern.permute.xlu0 0
    %1332 = vperm.xlu0 %1331, %v1330
    %v1333 = vpop.permute.xlu0 %1332
    %vm1334 = vcmp.eq.s32.totalorder %v1333, 1
    %v1335 = vsel %vm1334, %v1306, %v1108
    %1336 = vmatprep.subr.bf16.mxu0 0
    %1337 = vmatpush1.bf16.msra.mxu0 %v136
    %1338 = vmatprep.subr.bf16.mxu0 0
    %1339 = vmatpush1.bf16.msra.mxu0 0
    %1340 = vmatprep.subr.bf16.mxu0 0
    %1341 = vmatpush1.bf16.msra.mxu0 0
    %1342 = vmatprep.subr.bf16.mxu0 0
    %1343 = vmatpush1.bf16.msra.mxu0 0
    %1344 = vmatprep.subr.bf16.mxu0 0
    %1345 = vmatpush1.bf16.msra.mxu0 0
    %1346 = vmatprep.subr.bf16.mxu0 0
    %1347 = vmatpush1.bf16.msra.mxu0 0
    %1348 = vmatprep.subr.bf16.mxu0 0
    %1349 = vmatpush1.bf16.msra.mxu0 0
    %1350 = vmatprep.subr.bf16.mxu0 0
    %1351 = vmatpush1.bf16.msra.mxu0 0
    %1352 = vmatprep.subr.bf16.mxu0 0
    %1353 = vmatpush1.bf16.msra.mxu0 0
    %1354 = vmatprep.subr.bf16.mxu0 0
    %1355 = vmatpush1.bf16.msra.mxu0 0
    %1356 = vmatprep.subr.bf16.mxu0 0
    %1357 = vmatpush1.bf16.msra.mxu0 0
    %1358 = vmatprep.subr.bf16.mxu0 0
    %1359 = vmatpush1.bf16.msra.mxu0 0
    %1360 = vmatprep.subr.bf16.mxu0 0
    %1361 = vmatpush1.bf16.msra.mxu0 0
    %1362 = vmatprep.subr.bf16.mxu0 0
    %1363 = vmatpush1.bf16.msra.mxu0 0
    %1364 = vmatprep.subr.bf16.mxu0 0
    %1365 = vmatpush1.bf16.msra.mxu0 0
    %1366 = vmatprep.subr.bf16.mxu0 0
    %1367 = vmatpush1.bf16.msra.mxu0 0
    %1368 = vmatprep.mubr.bf16.mxu0 0
    %1369 = vmatmul.mubr.bf16.gmra.mrb[0].mxu0 %v731
    %v1370 = vpop.f32.mrb[0].mxu0
    %v1371 = vadd.f32 %v130, %v1370
    %v1372 = vpop.f32.mrb[0].mxu0
    %v1373 = vpop.f32.mrb[0].mxu0
    %v1374 = vpop.f32.mrb[0].mxu0
    %1375 = vdwg.mxu0
    %v1376 = vpack.c.bf16 %v1306, %v1306
    %1378 = vrot.lane.b32.xlu0 %v1376, 32
    %v1379 = vpop.permute.xlu0 %1378
    %v1381 = vsel %vm194, %v1379, 0
    %1383 = vmatprep.subr.bf16.mxu0 0
    %1384 = vmatpush1.bf16.msra.mxu0 %v190
    %1385 = vmatprep.subr.bf16.mxu0 0
    %1386 = vmatpush1.bf16.msra.mxu0 %v191
    %1387 = vmatprep.subr.bf16.mxu0 0
    %1388 = vmatpush1.bf16.msra.mxu0 0
    %1389 = vmatprep.subr.bf16.mxu0 0
    %1390 = vmatpush1.bf16.msra.mxu0 0
    %1391 = vmatprep.subr.bf16.mxu0 0
    %1392 = vmatpush1.bf16.msra.mxu0 0
    %1393 = vmatprep.subr.bf16.mxu0 0
    %1394 = vmatpush1.bf16.msra.mxu0 0
    %1395 = vmatprep.subr.bf16.mxu0 0
    %1396 = vmatpush1.bf16.msra.mxu0 0
    %1397 = vmatprep.subr.bf16.mxu0 0
    %1398 = vmatpush1.bf16.msra.mxu0 0
    %1399 = vmatprep.subr.bf16.mxu0 0
    %1400 = vmatpush1.bf16.msra.mxu0 0
    %1401 = vmatprep.subr.bf16.mxu0 0
    %1402 = vmatpush1.bf16.msra.mxu0 0
    %1403 = vmatprep.subr.bf16.mxu0 0
    %1404 = vmatpush1.bf16.msra.mxu0 0
    %1405 = vmatprep.subr.bf16.mxu0 0
    %1406 = vmatpush1.bf16.msra.mxu0 0
    %1407 = vmatprep.subr.bf16.mxu0 0
    %1408 = vmatpush1.bf16.msra.mxu0 0
    %1409 = vmatprep.subr.bf16.mxu0 0
    %1410 = vmatpush1.bf16.msra.mxu0 0
    %1411 = vmatprep.subr.bf16.mxu0 0
    %1412 = vmatpush1.bf16.msra.mxu0 0
    %1413 = vmatprep.subr.bf16.mxu0 0
    %1414 = vmatpush1.bf16.msra.mxu0 0
    %1415 = vmatprep.mubr.bf16.mxu0 0
    %1416 = vmatmul.mubr.bf16.gmra.mrb[0].mxu0 %v1381
    %v1417 = vpop.f32.mrb[0].mxu0
    %v1418 = vadd.f32 0.0, %v1417
    %v1419 = vpop.f32.mrb[0].mxu0
    %v1420 = vpop.f32.mrb[0].mxu0
    %v1421 = vpop.f32.mrb[0].mxu0
    %1422 = vdwg.mxu0
    %v1423 = vadd.f32 %v1371, %v1418
    %1424 = vmatprep.subr.bf16.mxu0 0
    %1425 = vmatpush1.bf16.msra.mxu0 %v249
    %1426 = vmatprep.subr.bf16.mxu0 0
    %1427 = vmatpush1.bf16.msra.mxu0 0
    %1428 = vmatprep.subr.bf16.mxu0 0
    %1429 = vmatpush1.bf16.msra.mxu0 0
    %1430 = vmatprep.subr.bf16.mxu0 0
    %1431 = vmatpush1.bf16.msra.mxu0 0
    %1432 = vmatprep.subr.bf16.mxu0 0
    %1433 = vmatpush1.bf16.msra.mxu0 0
    %1434 = vmatprep.subr.bf16.mxu0 0
    %1435 = vmatpush1.bf16.msra.mxu0 0
    %1436 = vmatprep.subr.bf16.mxu0 0
    %1437 = vmatpush1.bf16.msra.mxu0 0
    %1438 = vmatprep.subr.bf16.mxu0 0
    %1439 = vmatpush1.bf16.msra.mxu0 0
    %1440 = vmatprep.subr.bf16.mxu0 0
    %1441 = vmatpush1.bf16.msra.mxu0 0
    %1442 = vmatprep.subr.bf16.mxu0 0
    %1443 = vmatpush1.bf16.msra.mxu0 0
    %1444 = vmatprep.subr.bf16.mxu0 0
    %1445 = vmatpush1.bf16.msra.mxu0 0
    %1446 = vmatprep.subr.bf16.mxu0 0
    %1447 = vmatpush1.bf16.msra.mxu0 0
    %1448 = vmatprep.subr.bf16.mxu0 0
    %1449 = vmatpush1.bf16.msra.mxu0 0
    %1450 = vmatprep.subr.bf16.mxu0 0
    %1451 = vmatpush1.bf16.msra.mxu0 0
    %1452 = vmatprep.subr.bf16.mxu0 0
    %1453 = vmatpush1.bf16.msra.mxu0 0
    %1454 = vmatprep.subr.bf16.mxu0 0
    %1455 = vmatpush1.bf16.msra.mxu0 0
    %1456 = vmatprep.mubr.bf16.mxu0 0
    %1457 = vmatmul.mubr.bf16.gmra.mrb[0].mxu0 %v640
    %v1458 = vpop.f32.mrb[0].mxu0
    %v1459 = vadd.f32 %v243, %v1458
    %v1460 = vpop.f32.mrb[0].mxu0
    %v1461 = vpop.f32.mrb[0].mxu0
    %v1462 = vpop.f32.mrb[0].mxu0
    %1463 = vdwg.mxu0
    %v1464 = vpack.c.bf16 %v1328, %v1328
    %1466 = vrot.lane.b32.xlu0 %v1464, 32
    %v1467 = vpop.permute.xlu0 %1466
    %v1469 = vsel %vm194, %v1467, 0
    %1471 = vmatprep.subr.bf16.mxu0 0
    %1472 = vmatpush1.bf16.msra.mxu0 %v302
    %1473 = vmatprep.subr.bf16.mxu0 0
    %1474 = vmatpush1.bf16.msra.mxu0 %v303
    %1475 = vmatprep.subr.bf16.mxu0 0
    %1476 = vmatpush1.bf16.msra.mxu0 0
    %1477 = vmatprep.subr.bf16.mxu0 0
    %1478 = vmatpush1.bf16.msra.mxu0 0
    %1479 = vmatprep.subr.bf16.mxu0 0
    %1480 = vmatpush1.bf16.msra.mxu0 0
    %1481 = vmatprep.subr.bf16.mxu0 0
    %1482 = vmatpush1.bf16.msra.mxu0 0
    %1483 = vmatprep.subr.bf16.mxu0 0
    %1484 = vmatpush1.bf16.msra.mxu0 0
    %1485 = vmatprep.subr.bf16.mxu0 0
    %1486 = vmatpush1.bf16.msra.mxu0 0
    %1487 = vmatprep.subr.bf16.mxu0 0
    %1488 = vmatpush1.bf16.msra.mxu0 0
    %1489 = vmatprep.subr.bf16.mxu0 0
    %1490 = vmatpush1.bf16.msra.mxu0 0
    %1491 = vmatprep.subr.bf16.mxu0 0
    %1492 = vmatpush1.bf16.msra.mxu0 0
    %1493 = vmatprep.subr.bf16.mxu0 0
    %1494 = vmatpush1.bf16.msra.mxu0 0
    %1495 = vmatprep.subr.bf16.mxu0 0
    %1496 = vmatpush1.bf16.msra.mxu0 0
    %1497 = vmatprep.subr.bf16.mxu0 0
    %1498 = vmatpush1.bf16.msra.mxu0 0
    %1499 = vmatprep.subr.bf16.mxu0 0
    %1500 = vmatpush1.bf16.msra.mxu0 0
    %1501 = vmatprep.subr.bf16.mxu0 0
    %1502 = vmatpush1.bf16.msra.mxu0 0
    %1503 = vmatprep.mubr.bf16.mxu0 0
    %1504 = vmatmul.mubr.bf16.gmra.mrb[0].mxu0 %v1469
    %v1505 = vpop.f32.mrb[0].mxu0
    %v1506 = vadd.f32 0.0, %v1505
    %v1507 = vpop.f32.mrb[0].mxu0
    %v1508 = vpop.f32.mrb[0].mxu0
    %v1509 = vpop.f32.mrb[0].mxu0
    %1510 = vdwg.mxu0
    %v1511 = vadd.f32 %v1459, %v1506
    %v1512 = vmul.f32 %v1423, 0.5
    %v1513 = vtanh.pop %v1512
    %v1514 = vmul.f32 %v1513, 0.5
    %v1515 = vadd.f32 %v1514, 0.5
    %v1516 = vtanh.pop %v1423
    %v1517 = vmul.f32 %v1515, %v1300
    %1519 = vrot.lane.b32.xlu0 %v1516, 64
    %v1520 = vpop.permute.xlu0 %1519
    %v1522 = vmul.f32 %v1515, %v1520
    %1524 = vrot.lane.b32.xlu0 %v1522, 32
    %v1525 = vpop.permute.xlu0 %1524
    %v1527 = vadd.f32 %v1517, %v1525
    %v1528 = vtanh.pop %v1527
    %1530 = vrot.lane.b32.xlu0 %v1528, 64
    %v1531 = vpop.permute.xlu0 %1530
    %v1533 = vmul.f32 %v1515, %v1531
    %v1534 = vmul.f32 %v1511, 0.5
    %v1535 = vtanh.pop %v1534
    %v1536 = vmul.f32 %v1535, 0.5
    %v1537 = vadd.f32 %v1536, 0.5
    %v1538 = vtanh.pop %v1511
    %v1539 = vmul.f32 %v1537, %v1322
    %1541 = vrot.lane.b32.xlu0 %v1538, 64
    %v1542 = vpop.permute.xlu0 %1541
    %v1544 = vmul.f32 %v1537, %v1542
    %1546 = vrot.lane.b32.xlu0 %v1544, 32
    %v1547 = vpop.permute.xlu0 %1546
    %v1549 = vadd.f32 %v1539, %v1547
    %v1550 = vtanh.pop %v1549
    %1552 = vrot.lane.b32.xlu0 %v1550, 64
    %v1553 = vpop.permute.xlu0 %1552
    %v1555 = vmul.f32 %v1537, %v1553
    %vm1556 = vcmp.eq.s32.totalorder %v122, 6
    %v1557 = vsel %vm1556, 1, 0
    %1558 = vset.pattern.permute.xlu0 0
    %1559 = vperm.xlu0 %1558, %v1557
    %v1560 = vpop.permute.xlu0 %1559
    %vm1561 = vcmp.eq.s32.totalorder %v1560, 1
    %v1562 = vsel %vm1561, %v1533, %v1335
    %1563 = vmatprep.subr.bf16.mxu0 0
    %1564 = vmatpush1.bf16.msra.mxu0 %v136
    %1565 = vmatprep.subr.bf16.mxu0 0
    %1566 = vmatpush1.bf16.msra.mxu0 0
    %1567 = vmatprep.subr.bf16.mxu0 0
    %1568 = vmatpush1.bf16.msra.mxu0 0
    %1569 = vmatprep.subr.bf16.mxu0 0
    %1570 = vmatpush1.bf16.msra.mxu0 0
    %1571 = vmatprep.subr.bf16.mxu0 0
    %1572 = vmatpush1.bf16.msra.mxu0 0
    %1573 = vmatprep.subr.bf16.mxu0 0
    %1574 = vmatpush1.bf16.msra.mxu0 0
    %1575 = vmatprep.subr.bf16.mxu0 0
    %1576 = vmatpush1.bf16.msra.mxu0 0
    %1577 = vmatprep.subr.bf16.mxu0 0
    %1578 = vmatpush1.bf16.msra.mxu0 0
    %1579 = vmatprep.subr.bf16.mxu0 0
    %1580 = vmatpush1.bf16.msra.mxu0 0
    %1581 = vmatprep.subr.bf16.mxu0 0
    %1582 = vmatpush1.bf16.msra.mxu0 0
    %1583 = vmatprep.subr.bf16.mxu0 0
    %1584 = vmatpush1.bf16.msra.mxu0 0
    %1585 = vmatprep.subr.bf16.mxu0 0
    %1586 = vmatpush1.bf16.msra.mxu0 0
    %1587 = vmatprep.subr.bf16.mxu0 0
    %1588 = vmatpush1.bf16.msra.mxu0 0
    %1589 = vmatprep.subr.bf16.mxu0 0
    %1590 = vmatpush1.bf16.msra.mxu0 0
    %1591 = vmatprep.subr.bf16.mxu0 0
    %1592 = vmatpush1.bf16.msra.mxu0 0
    %1593 = vmatprep.subr.bf16.mxu0 0
    %1594 = vmatpush1.bf16.msra.mxu0 0
    %1595 = vmatprep.mubr.bf16.mxu0 0
    %1596 = vmatmul.mubr.bf16.gmra.mrb[0].mxu0 %v494
    %v1597 = vpop.f32.mrb[0].mxu0
    %v1598 = vadd.f32 %v130, %v1597
    %v1599 = vpop.f32.mrb[0].mxu0
    %v1600 = vpop.f32.mrb[0].mxu0
    %v1601 = vpop.f32.mrb[0].mxu0
    %1602 = vdwg.mxu0
    %v1603 = vpack.c.bf16 %v1533, %v1533
    %1605 = vrot.lane.b32.xlu0 %v1603, 32
    %v1606 = vpop.permute.xlu0 %1605
    %v1608 = vsel %vm194, %v1606, 0
    %1610 = vmatprep.subr.bf16.mxu0 0
    %1611 = vmatpush1.bf16.msra.mxu0 %v190
    %1612 = vmatprep.subr.bf16.mxu0 0
    %1613 = vmatpush1.bf16.msra.mxu0 %v191
    %1614 = vmatprep.subr.bf16.mxu0 0
    %1615 = vmatpush1.bf16.msra.mxu0 0
    %1616 = vmatprep.subr.bf16.mxu0 0
    %1617 = vmatpush1.bf16.msra.mxu0 0
    %1618 = vmatprep.subr.bf16.mxu0 0
    %1619 = vmatpush1.bf16.msra.mxu0 0
    %1620 = vmatprep.subr.bf16.mxu0 0
    %1621 = vmatpush1.bf16.msra.mxu0 0
    %1622 = vmatprep.subr.bf16.mxu0 0
    %1623 = vmatpush1.bf16.msra.mxu0 0
    %1624 = vmatprep.subr.bf16.mxu0 0
    %1625 = vmatpush1.bf16.msra.mxu0 0
    %1626 = vmatprep.subr.bf16.mxu0 0
    %1627 = vmatpush1.bf16.msra.mxu0 0
    %1628 = vmatprep.subr.bf16.mxu0 0
    %1629 = vmatpush1.bf16.msra.mxu0 0
    %1630 = vmatprep.subr.bf16.mxu0 0
    %1631 = vmatpush1.bf16.msra.mxu0 0
    %1632 = vmatprep.subr.bf16.mxu0 0
    %1633 = vmatpush1.bf16.msra.mxu0 0
    %1634 = vmatprep.subr.bf16.mxu0 0
    %1635 = vmatpush1.bf16.msra.mxu0 0
    %1636 = vmatprep.subr.bf16.mxu0 0
    %1637 = vmatpush1.bf16.msra.mxu0 0
    %1638 = vmatprep.subr.bf16.mxu0 0
    %1639 = vmatpush1.bf16.msra.mxu0 0
    %1640 = vmatprep.subr.bf16.mxu0 0
    %1641 = vmatpush1.bf16.msra.mxu0 0
    %1642 = vmatprep.mubr.bf16.mxu0 0
    %1643 = vmatmul.mubr.bf16.gmra.mrb[0].mxu0 %v1608
    %v1644 = vpop.f32.mrb[0].mxu0
    %v1645 = vadd.f32 0.0, %v1644
    %v1646 = vpop.f32.mrb[0].mxu0
    %v1647 = vpop.f32.mrb[0].mxu0
    %v1648 = vpop.f32.mrb[0].mxu0
    %1649 = vdwg.mxu0
    %v1650 = vadd.f32 %v1598, %v1645
    %1651 = vmatprep.subr.bf16.mxu0 0
    %1652 = vmatpush1.bf16.msra.mxu0 %v249
    %1653 = vmatprep.subr.bf16.mxu0 0
    %1654 = vmatpush1.bf16.msra.mxu0 0
    %1655 = vmatprep.subr.bf16.mxu0 0
    %1656 = vmatpush1.bf16.msra.mxu0 0
    %1657 = vmatprep.subr.bf16.mxu0 0
    %1658 = vmatpush1.bf16.msra.mxu0 0
    %1659 = vmatprep.subr.bf16.mxu0 0
    %1660 = vmatpush1.bf16.msra.mxu0 0
    %1661 = vmatprep.subr.bf16.mxu0 0
    %1662 = vmatpush1.bf16.msra.mxu0 0
    %1663 = vmatprep.subr.bf16.mxu0 0
    %1664 = vmatpush1.bf16.msra.mxu0 0
    %1665 = vmatprep.subr.bf16.mxu0 0
    %1666 = vmatpush1.bf16.msra.mxu0 0
    %1667 = vmatprep.subr.bf16.mxu0 0
    %1668 = vmatpush1.bf16.msra.mxu0 0
    %1669 = vmatprep.subr.bf16.mxu0 0
    %1670 = vmatpush1.bf16.msra.mxu0 0
    %1671 = vmatprep.subr.bf16.mxu0 0
    %1672 = vmatpush1.bf16.msra.mxu0 0
    %1673 = vmatprep.subr.bf16.mxu0 0
    %1674 = vmatpush1.bf16.msra.mxu0 0
    %1675 = vmatprep.subr.bf16.mxu0 0
    %1676 = vmatpush1.bf16.msra.mxu0 0
    %1677 = vmatprep.subr.bf16.mxu0 0
    %1678 = vmatpush1.bf16.msra.mxu0 0
    %1679 = vmatprep.subr.bf16.mxu0 0
    %1680 = vmatpush1.bf16.msra.mxu0 0
    %1681 = vmatprep.subr.bf16.mxu0 0
    %1682 = vmatpush1.bf16.msra.mxu0 0
    %1683 = vmatprep.mubr.bf16.mxu0 0
    %1684 = vmatmul.mubr.bf16.gmra.mrb[0].mxu0 %v403
    %v1685 = vpop.f32.mrb[0].mxu0
    %v1686 = vadd.f32 %v243, %v1685
    %v1687 = vpop.f32.mrb[0].mxu0
    %v1688 = vpop.f32.mrb[0].mxu0
    %v1689 = vpop.f32.mrb[0].mxu0
    %1690 = vdwg.mxu0
    %v1691 = vpack.c.bf16 %v1555, %v1555
    %1693 = vrot.lane.b32.xlu0 %v1691, 32
    %v1694 = vpop.permute.xlu0 %1693
    %v1696 = vsel %vm194, %v1694, 0
    %1698 = vmatprep.subr.bf16.mxu0 0
    %1699 = vmatpush1.bf16.msra.mxu0 %v302
    %1700 = vmatprep.subr.bf16.mxu0 0
    %1701 = vmatpush1.bf16.msra.mxu0 %v303
    %1702 = vmatprep.subr.bf16.mxu0 0
    %1703 = vmatpush1.bf16.msra.mxu0 0
    %1704 = vmatprep.subr.bf16.mxu0 0
    %1705 = vmatpush1.bf16.msra.mxu0 0
    %1706 = vmatprep.subr.bf16.mxu0 0
    %1707 = vmatpush1.bf16.msra.mxu0 0
    %1708 = vmatprep.subr.bf16.mxu0 0
    %1709 = vmatpush1.bf16.msra.mxu0 0
    %1710 = vmatprep.subr.bf16.mxu0 0
    %1711 = vmatpush1.bf16.msra.mxu0 0
    %1712 = vmatprep.subr.bf16.mxu0 0
    %1713 = vmatpush1.bf16.msra.mxu0 0
    %1714 = vmatprep.subr.bf16.mxu0 0
    %1715 = vmatpush1.bf16.msra.mxu0 0
    %1716 = vmatprep.subr.bf16.mxu0 0
    %1717 = vmatpush1.bf16.msra.mxu0 0
    %1718 = vmatprep.subr.bf16.mxu0 0
    %1719 = vmatpush1.bf16.msra.mxu0 0
    %1720 = vmatprep.subr.bf16.mxu0 0
    %1721 = vmatpush1.bf16.msra.mxu0 0
    %1722 = vmatprep.subr.bf16.mxu0 0
    %1723 = vmatpush1.bf16.msra.mxu0 0
    %1724 = vmatprep.subr.bf16.mxu0 0
    %1725 = vmatpush1.bf16.msra.mxu0 0
    %1726 = vmatprep.subr.bf16.mxu0 0
    %1727 = vmatpush1.bf16.msra.mxu0 0
    %1728 = vmatprep.subr.bf16.mxu0 0
    %1729 = vmatpush1.bf16.msra.mxu0 0
    %1730 = vmatprep.mubr.bf16.mxu0 0
    %1731 = vmatmul.mubr.bf16.gmra.mrb[0].mxu0 %v1696
    %v1732 = vpop.f32.mrb[0].mxu0
    %v1733 = vadd.f32 0.0, %v1732
    %v1734 = vpop.f32.mrb[0].mxu0
    %v1735 = vpop.f32.mrb[0].mxu0
    %v1736 = vpop.f32.mrb[0].mxu0
    %1737 = vdwg.mxu0
    %v1738 = vadd.f32 %v1686, %v1733
    %v1739 = vmul.f32 %v1650, 0.5
    %v1740 = vtanh.pop %v1739
    %v1741 = vmul.f32 %v1740, 0.5
    %v1742 = vadd.f32 %v1741, 0.5
    %v1743 = vtanh.pop %v1650
    %v1744 = vmul.f32 %v1742, %v1527
    %1746 = vrot.lane.b32.xlu0 %v1743, 64
    %v1747 = vpop.permute.xlu0 %1746
    %v1749 = vmul.f32 %v1742, %v1747
    %1751 = vrot.lane.b32.xlu0 %v1749, 32
    %v1752 = vpop.permute.xlu0 %1751
    %v1754 = vadd.f32 %v1744, %v1752
    %v1755 = vtanh.pop %v1754
    %1757 = vrot.lane.b32.xlu0 %v1755, 64
    %v1758 = vpop.permute.xlu0 %1757
    %v1760 = vmul.f32 %v1742, %v1758
    %v1761 = vmul.f32 %v1738, 0.5
    %v1762 = vtanh.pop %v1761
    %v1763 = vmul.f32 %v1762, 0.5
    %v1764 = vadd.f32 %v1763, 0.5
    %v1765 = vtanh.pop %v1738
    %v1766 = vmul.f32 %v1764, %v1549
    %1768 = vrot.lane.b32.xlu0 %v1765, 64
    %v1769 = vpop.permute.xlu0 %1768
    %v1771 = vmul.f32 %v1764, %v1769
    %1773 = vrot.lane.b32.xlu0 %v1771, 32
    %v1774 = vpop.permute.xlu0 %1773
    %v1776 = vadd.f32 %v1766, %v1774
    %v1777 = vtanh.pop %v1776
    %1779 = vrot.lane.b32.xlu0 %v1777, 64
    %v1780 = vpop.permute.xlu0 %1779
    %v1782 = vmul.f32 %v1764, %v1780
    %vm1783 = vcmp.eq.s32.totalorder %v122, 7
    %v1784 = vsel %vm1783, 1, 0
    %1785 = vset.pattern.permute.xlu0 0
    %1786 = vperm.xlu0 %1785, %v1784
    %v1787 = vpop.permute.xlu0 %1786
    %vm1788 = vcmp.eq.s32.totalorder %v1787, 1
    %v1789 = vsel %vm1788, %v1760, %v1562
    %1790 = vmatprep.subr.bf16.mxu0 0
    %1791 = vmatpush1.bf16.msra.mxu0 %v136
    %1792 = vmatprep.subr.bf16.mxu0 0
    %1793 = vmatpush1.bf16.msra.mxu0 0
    %1794 = vmatprep.subr.bf16.mxu0 0
    %1795 = vmatpush1.bf16.msra.mxu0 0
    %1796 = vmatprep.subr.bf16.mxu0 0
    %1797 = vmatpush1.bf16.msra.mxu0 0
    %1798 = vmatprep.subr.bf16.mxu0 0
    %1799 = vmatpush1.bf16.msra.mxu0 0
    %1800 = vmatprep.subr.bf16.mxu0 0
    %1801 = vmatpush1.bf16.msra.mxu0 0
    %1802 = vmatprep.subr.bf16.mxu0 0
    %1803 = vmatpush1.bf16.msra.mxu0 0
    %1804 = vmatprep.subr.bf16.mxu0 0
    %1805 = vmatpush1.bf16.msra.mxu0 0
    %1806 = vmatprep.subr.bf16.mxu0 0
    %1807 = vmatpush1.bf16.msra.mxu0 0
    %1808 = vmatprep.subr.bf16.mxu0 0
    %1809 = vmatpush1.bf16.msra.mxu0 0
    %1810 = vmatprep.subr.bf16.mxu0 0
    %1811 = vmatpush1.bf16.msra.mxu0 0
    %1812 = vmatprep.subr.bf16.mxu0 0
    %1813 = vmatpush1.bf16.msra.mxu0 0
    %1814 = vmatprep.subr.bf16.mxu0 0
    %1815 = vmatpush1.bf16.msra.mxu0 0
    %1816 = vmatprep.subr.bf16.mxu0 0
    %1817 = vmatpush1.bf16.msra.mxu0 0
    %1818 = vmatprep.subr.bf16.mxu0 0
    %1819 = vmatpush1.bf16.msra.mxu0 0
    %1820 = vmatprep.subr.bf16.mxu0 0
    %1821 = vmatpush1.bf16.msra.mxu0 0
    %1822 = vmatprep.mubr.bf16.mxu0 0
    %1823 = vmatmul.mubr.bf16.gmra.mrb[0].mxu0 %v252
    %v1824 = vpop.f32.mrb[0].mxu0
    %v1825 = vadd.f32 %v130, %v1824
    %v1826 = vpop.f32.mrb[0].mxu0
    %v1827 = vpop.f32.mrb[0].mxu0
    %v1828 = vpop.f32.mrb[0].mxu0
    %1829 = vdwg.mxu0
    %v1830 = vpack.c.bf16 %v1760, %v1760
    %1832 = vrot.lane.b32.xlu0 %v1830, 32
    %v1833 = vpop.permute.xlu0 %1832
    %v1835 = vsel %vm194, %v1833, 0
    %1837 = vmatprep.subr.bf16.mxu0 0
    %1838 = vmatpush1.bf16.msra.mxu0 %v190
    %1839 = vmatprep.subr.bf16.mxu0 0
    %1840 = vmatpush1.bf16.msra.mxu0 %v191
    %1841 = vmatprep.subr.bf16.mxu0 0
    %1842 = vmatpush1.bf16.msra.mxu0 0
    %1843 = vmatprep.subr.bf16.mxu0 0
    %1844 = vmatpush1.bf16.msra.mxu0 0
    %1845 = vmatprep.subr.bf16.mxu0 0
    %1846 = vmatpush1.bf16.msra.mxu0 0
    %1847 = vmatprep.subr.bf16.mxu0 0
    %1848 = vmatpush1.bf16.msra.mxu0 0
    %1849 = vmatprep.subr.bf16.mxu0 0
    %1850 = vmatpush1.bf16.msra.mxu0 0
    %1851 = vmatprep.subr.bf16.mxu0 0
    %1852 = vmatpush1.bf16.msra.mxu0 0
    %1853 = vmatprep.subr.bf16.mxu0 0
    %1854 = vmatpush1.bf16.msra.mxu0 0
    %1855 = vmatprep.subr.bf16.mxu0 0
    %1856 = vmatpush1.bf16.msra.mxu0 0
    %1857 = vmatprep.subr.bf16.mxu0 0
    %1858 = vmatpush1.bf16.msra.mxu0 0
    %1859 = vmatprep.subr.bf16.mxu0 0
    %1860 = vmatpush1.bf16.msra.mxu0 0
    %1861 = vmatprep.subr.bf16.mxu0 0
    %1862 = vmatpush1.bf16.msra.mxu0 0
    %1863 = vmatprep.subr.bf16.mxu0 0
    %1864 = vmatpush1.bf16.msra.mxu0 0
    %1865 = vmatprep.subr.bf16.mxu0 0
    %1866 = vmatpush1.bf16.msra.mxu0 0
    %1867 = vmatprep.subr.bf16.mxu0 0
    %1868 = vmatpush1.bf16.msra.mxu0 0
    %1869 = vmatprep.mubr.bf16.mxu0 0
    %1870 = vmatmul.mubr.bf16.gmra.mrb[0].mxu0 %v1835
    %v1871 = vpop.f32.mrb[0].mxu0
    %v1872 = vadd.f32 0.0, %v1871
    %v1873 = vpop.f32.mrb[0].mxu0
    %v1874 = vpop.f32.mrb[0].mxu0
    %v1875 = vpop.f32.mrb[0].mxu0
    %1876 = vdwg.mxu0
    %v1877 = vadd.f32 %v1825, %v1872
    %1878 = vmatprep.subr.bf16.mxu0 0
    %1879 = vmatpush1.bf16.msra.mxu0 %v249
    %1880 = vmatprep.subr.bf16.mxu0 0
    %1881 = vmatpush1.bf16.msra.mxu0 0
    %1882 = vmatprep.subr.bf16.mxu0 0
    %1883 = vmatpush1.bf16.msra.mxu0 0
    %1884 = vmatprep.subr.bf16.mxu0 0
    %1885 = vmatpush1.bf16.msra.mxu0 0
    %1886 = vmatprep.subr.bf16.mxu0 0
    %1887 = vmatpush1.bf16.msra.mxu0 0
    %1888 = vmatprep.subr.bf16.mxu0 0
    %1889 = vmatpush1.bf16.msra.mxu0 0
    %1890 = vmatprep.subr.bf16.mxu0 0
    %1891 = vmatpush1.bf16.msra.mxu0 0
    %1892 = vmatprep.subr.bf16.mxu0 0
    %1893 = vmatpush1.bf16.msra.mxu0 0
    %1894 = vmatprep.subr.bf16.mxu0 0
    %1895 = vmatpush1.bf16.msra.mxu0 0
    %1896 = vmatprep.subr.bf16.mxu0 0
    %1897 = vmatpush1.bf16.msra.mxu0 0
    %1898 = vmatprep.subr.bf16.mxu0 0
    %1899 = vmatpush1.bf16.msra.mxu0 0
    %1900 = vmatprep.subr.bf16.mxu0 0
    %1901 = vmatpush1.bf16.msra.mxu0 0
    %1902 = vmatprep.subr.bf16.mxu0 0
    %1903 = vmatpush1.bf16.msra.mxu0 0
    %1904 = vmatprep.subr.bf16.mxu0 0
    %1905 = vmatpush1.bf16.msra.mxu0 0
    %1906 = vmatprep.subr.bf16.mxu0 0
    %1907 = vmatpush1.bf16.msra.mxu0 0
    %1908 = vmatprep.subr.bf16.mxu0 0
    %1909 = vmatpush1.bf16.msra.mxu0 0
    %1910 = vmatprep.mubr.bf16.mxu0 0
    %1911 = vmatmul.mubr.bf16.gmra.mrb[0].mxu0 %v140
    %v1912 = vpop.f32.mrb[0].mxu0
    %v1913 = vadd.f32 %v243, %v1912
    %v1914 = vpop.f32.mrb[0].mxu0
    %v1915 = vpop.f32.mrb[0].mxu0
    %v1916 = vpop.f32.mrb[0].mxu0
    %1917 = vdwg.mxu0
    %v1918 = vpack.c.bf16 %v1782, %v1782
    %1920 = vrot.lane.b32.xlu0 %v1918, 32
    %v1921 = vpop.permute.xlu0 %1920
    %v1923 = vsel %vm194, %v1921, 0
    %1925 = vmatprep.subr.bf16.mxu0 0
    %1926 = vmatpush1.bf16.msra.mxu0 %v302
    %1927 = vmatprep.subr.bf16.mxu0 0
    %1928 = vmatpush1.bf16.msra.mxu0 %v303
    %1929 = vmatprep.subr.bf16.mxu0 0
    %1930 = vmatpush1.bf16.msra.mxu0 0
    %1931 = vmatprep.subr.bf16.mxu0 0
    %1932 = vmatpush1.bf16.msra.mxu0 0
    %1933 = vmatprep.subr.bf16.mxu0 0
    %1934 = vmatpush1.bf16.msra.mxu0 0
    %1935 = vmatprep.subr.bf16.mxu0 0
    %1936 = vmatpush1.bf16.msra.mxu0 0
    %1937 = vmatprep.subr.bf16.mxu0 0
    %1938 = vmatpush1.bf16.msra.mxu0 0
    %1939 = vmatprep.subr.bf16.mxu0 0
    %1940 = vmatpush1.bf16.msra.mxu0 0
    %1941 = vmatprep.subr.bf16.mxu0 0
    %1942 = vmatpush1.bf16.msra.mxu0 0
    %1943 = vmatprep.subr.bf16.mxu0 0
    %1944 = vmatpush1.bf16.msra.mxu0 0
    %1945 = vmatprep.subr.bf16.mxu0 0
    %1946 = vmatpush1.bf16.msra.mxu0 0
    %1947 = vmatprep.subr.bf16.mxu0 0
    %1948 = vmatpush1.bf16.msra.mxu0 0
    %1949 = vmatprep.subr.bf16.mxu0 0
    %1950 = vmatpush1.bf16.msra.mxu0 0
    %1951 = vmatprep.subr.bf16.mxu0 0
    %1952 = vmatpush1.bf16.msra.mxu0 0
    %1953 = vmatprep.subr.bf16.mxu0 0
    %1954 = vmatpush1.bf16.msra.mxu0 0
    %1955 = vmatprep.subr.bf16.mxu0 0
    %1956 = vmatpush1.bf16.msra.mxu0 0
    %1957 = vmatprep.mubr.bf16.mxu0 0
    %1958 = vmatmul.mubr.bf16.gmra.mrb[0].mxu0 %v1923
    %v1959 = vpop.f32.mrb[0].mxu0
    %v1960 = vadd.f32 0.0, %v1959
    %v1961 = vpop.f32.mrb[0].mxu0
    %v1962 = vpop.f32.mrb[0].mxu0
    %v1963 = vpop.f32.mrb[0].mxu0
    %1964 = vdwg.mxu0
    %v1965 = vadd.f32 %v1913, %v1960
    %v1966 = vmul.f32 %v1877, 0.5
    %v1967 = vtanh.pop %v1966
    %v1968 = vmul.f32 %v1967, 0.5
    %v1969 = vadd.f32 %v1968, 0.5
    %v1970 = vtanh.pop %v1877
    %v1971 = vmul.f32 %v1969, %v1754
    %1973 = vrot.lane.b32.xlu0 %v1970, 64
    %v1974 = vpop.permute.xlu0 %1973
    %v1976 = vmul.f32 %v1969, %v1974
    %1978 = vrot.lane.b32.xlu0 %v1976, 32
    %v1979 = vpop.permute.xlu0 %1978
    %v1981 = vadd.f32 %v1971, %v1979
    %v1982 = vtanh.pop %v1981
    %1984 = vrot.lane.b32.xlu0 %v1982, 64
    %v1985 = vpop.permute.xlu0 %1984
    %v1987 = vmul.f32 %v1969, %v1985
    %v1988 = vmul.f32 %v1965, 0.5
    %v1989 = vtanh.pop %v1988
    %v1990 = vmul.f32 %v1989, 0.5
    %v1991 = vadd.f32 %v1990, 0.5
    %v1992 = vtanh.pop %v1965
    %v1993 = vmul.f32 %v1991, %v1776
    %1995 = vrot.lane.b32.xlu0 %v1992, 64
    %v1996 = vpop.permute.xlu0 %1995
    %v1998 = vmul.f32 %v1991, %v1996
    %2000 = vrot.lane.b32.xlu0 %v1998, 32
    %v2001 = vpop.permute.xlu0 %2000
    %v2003 = vadd.f32 %v1993, %v2001
    %v2004 = vtanh.pop %v2003
    %2006 = vrot.lane.b32.xlu0 %v2004, 64
    %v2007 = vpop.permute.xlu0 %2006
    %v2009 = vmul.f32 %v1991, %v2007
    %vm2010 = vcmp.eq.s32.totalorder %v122, 8
    %v2011 = vsel %vm2010, 1, 0
    %2012 = vset.pattern.permute.xlu0 0
    %2013 = vperm.xlu0 %2012, %v2011
    %v2014 = vpop.permute.xlu0 %2013
    %vm2015 = vcmp.eq.s32.totalorder %v2014, 1
    %v2016 = vsel %vm2015, %v1987, %v1789
    %v2017 = vpack.c.bf16 %v2016, %v2016
    %v2018 = vld [vmem:[%s8] sm:$0xf]
    %v2019 = vld [vmem:[%s8 + $0x4] sm:$0xf]
    %v2020 = vld [vmem:[%s8 + $0x8] sm:$0xf]
    %v2021 = vld [vmem:[%s8 + $0xc] sm:$0xf]
    %v2022 = vpack.c.bf16 %v2009, %v2009
    %v2023 = vld [vmem:[#allocation10] sm:$0xf]
    %v2024 = vld [vmem:[#allocation10 + $0x4] sm:$0xf]
    %v2025 = vld [vmem:[#allocation10 + $0x8] sm:$0xf]
    %v2026 = vld [vmem:[#allocation10 + $0xc] sm:$0xf]
    %2028 = vrot.lane.b32.xlu0 %v2022, 32
    %v2029 = vpop.permute.xlu0 %2028
    %v2034 = vunpack.c.l.b16 %v2023
    %v2035 = vunpack.c.l.b16 %v2024
    %v2036 = vunpack.c.l.b16 %v2025
    %v2037 = vunpack.c.l.b16 %v2026
    %v2038 = vpack.c.b16 %v2035, %v2034
    %v2039 = vpack.c.b16 %v2037, %v2036
    %v2043 = vsel %vm194, %v2029, 0
    %2045 = vmatprep.subr.bf16.mxu0 0
    %2046 = vmatpush1.bf16.msra.mxu0 %v2038
    %2047 = vmatprep.subr.bf16.mxu0 0
    %2048 = vmatpush1.bf16.msra.mxu0 %v2039
    %2049 = vmatprep.subr.bf16.mxu0 0
    %2050 = vmatpush1.bf16.msra.mxu0 0
    %2051 = vmatprep.subr.bf16.mxu0 0
    %2052 = vmatpush1.bf16.msra.mxu0 0
    %2053 = vmatprep.subr.bf16.mxu0 0
    %2054 = vmatpush1.bf16.msra.mxu0 0
    %2055 = vmatprep.subr.bf16.mxu0 0
    %2056 = vmatpush1.bf16.msra.mxu0 0
    %2057 = vmatprep.subr.bf16.mxu0 0
    %2058 = vmatpush1.bf16.msra.mxu0 0
    %2059 = vmatprep.subr.bf16.mxu0 0
    %2060 = vmatpush1.bf16.msra.mxu0 0
    %2061 = vmatprep.subr.bf16.mxu0 0
    %2062 = vmatpush1.bf16.msra.mxu0 0
    %2063 = vmatprep.subr.bf16.mxu0 0
    %2064 = vmatpush1.bf16.msra.mxu0 0
    %2065 = vmatprep.subr.bf16.mxu0 0
    %2066 = vmatpush1.bf16.msra.mxu0 0
    %2067 = vmatprep.subr.bf16.mxu0 0
    %2068 = vmatpush1.bf16.msra.mxu0 0
    %2069 = vmatprep.subr.bf16.mxu0 0
    %2070 = vmatpush1.bf16.msra.mxu0 0
    %2071 = vmatprep.subr.bf16.mxu0 0
    %2072 = vmatpush1.bf16.msra.mxu0 0
    %2073 = vmatprep.subr.bf16.mxu0 0
    %2074 = vmatpush1.bf16.msra.mxu0 0
    %2075 = vmatprep.subr.bf16.mxu0 0
    %2076 = vmatpush1.bf16.msra.mxu0 0
    %2077 = vmatprep.mubr.bf16.mxu0 0
    %2078 = vmatmul.mubr.bf16.gmra.mrb[0].mxu0 %v2043
    %v2079 = vpop.f32.mrb[0].mxu0
    %v2080 = vadd.f32 0.0, %v2079
    %v2081 = vpop.f32.mrb[0].mxu0
    %v2082 = vpop.f32.mrb[0].mxu0
    %v2083 = vpop.f32.mrb[0].mxu0
    %2084 = vdwg.mxu0
    %2086 = vrot.lane.b32.xlu0 %v2017, 32
    %v2087 = vpop.permute.xlu0 %2086
    %v2092 = vunpack.c.l.b16 %v2018
    %v2093 = vunpack.c.l.b16 %v2019
    %v2094 = vunpack.c.l.b16 %v2020
    %v2095 = vunpack.c.l.b16 %v2021
    %v2096 = vpack.c.b16 %v2093, %v2092
    %v2097 = vpack.c.b16 %v2095, %v2094
    %v2101 = vsel %vm194, %v2087, 0
    %2103 = vmatprep.subr.bf16.mxu0 0
    %2104 = vmatpush1.bf16.msra.mxu0 %v2096
    %2105 = vmatprep.subr.bf16.mxu0 0
    %2106 = vmatpush1.bf16.msra.mxu0 %v2097
    %2107 = vmatprep.subr.bf16.mxu0 0
    %2108 = vmatpush1.bf16.msra.mxu0 0
    %2109 = vmatprep.subr.bf16.mxu0 0
    %2110 = vmatpush1.bf16.msra.mxu0 0
    %2111 = vmatprep.subr.bf16.mxu0 0
    %2112 = vmatpush1.bf16.msra.mxu0 0
    %2113 = vmatprep.subr.bf16.mxu0 0
    %2114 = vmatpush1.bf16.msra.mxu0 0
    %2115 = vmatprep.subr.bf16.mxu0 0
    %2116 = vmatpush1.bf16.msra.mxu0 0
    %2117 = vmatprep.subr.bf16.mxu0 0
    %2118 = vmatpush1.bf16.msra.mxu0 0
    %2119 = vmatprep.subr.bf16.mxu0 0
    %2120 = vmatpush1.bf16.msra.mxu0 0
    %2121 = vmatprep.subr.bf16.mxu0 0
    %2122 = vmatpush1.bf16.msra.mxu0 0
    %2123 = vmatprep.subr.bf16.mxu0 0
    %2124 = vmatpush1.bf16.msra.mxu0 0
    %2125 = vmatprep.subr.bf16.mxu0 0
    %2126 = vmatpush1.bf16.msra.mxu0 0
    %2127 = vmatprep.subr.bf16.mxu0 0
    %2128 = vmatpush1.bf16.msra.mxu0 0
    %2129 = vmatprep.subr.bf16.mxu0 0
    %2130 = vmatpush1.bf16.msra.mxu0 0
    %2131 = vmatprep.subr.bf16.mxu0 0
    %2132 = vmatpush1.bf16.msra.mxu0 0
    %2133 = vmatprep.subr.bf16.mxu0 0
    %2134 = vmatpush1.bf16.msra.mxu0 0
    %2135 = vmatprep.mubr.bf16.mxu0 0
    %2136 = vmatmul.mubr.bf16.gmra.mrb[0].mxu0 %v2101
    %v2137 = vpop.f32.mrb[0].mxu0
    %v2138 = vadd.f32 %v2080, %v2137
    %v2139 = vpop.f32.mrb[0].mxu0
    %v2140 = vpop.f32.mrb[0].mxu0
    %v2141 = vpop.f32.mrb[0].mxu0
    %2142 = vdwg.mxu0
    %v2143 = vld [vmem:[%s10] sm:$0x1]
    %v2145 = vlaneseq
    %v2146 = vshrl.u32 %v2145, 7
    %v2147 = vsub.s32 0, %v2146
    %v2148 = vrot.slane %v2143, %v2147
    %v2150 = vadd.f32 %v2138, %v2148
    %2151 = vmax.xlane.f32.xlu0 %v2150
    %v2152 = vpop.xlane.xlu0 %2151
    %v2153 = vsub.f32 %v2150, %v2152
    %v2154 = vmul.f32 %v2153, 1.442695
    %v2155 = vpow.pop %v2154
    %2156 = vadd.xlane.f32.xlu0 %v2155
    %v2157 = vpop.xlane.xlu0 %2156
    %v2158 = vrcp.pop %v2157
    %v2159 = vmul.f32 %v2155, %v2158
    %2160 = vst [vmem:[#allocation11] sm:$0xff] %v2159
    // Predicated region
    $region66: #{tpu_custom_call.1} parent=1 // pred_check
      _
    $region67: #{tpu_custom_call.1} parent=1 // pred_check_branch
      %2162 = sbr.rel (0) target = $region69
    $region68: #{tpu_custom_call.1} parent=1 // pred_region
      %s2164 = ssub.s32 128, 128
      %2165 = vsyncadd [#allocation4], %s2164
      %s2167 = sshll.u32 [#allocation11], 4
      %s2168 = int_to_ptr.vmem [resolvable:$true] %s2167
      %2170 = dma.vmem_to_hbm [thread:$0]  %s2168, 128, %s11, [#allocation4]
    $region69: #{tpu_custom_call.1} parent=1 // pred_fallthru
      _
    // Predicated region
    $region70: #{tpu_custom_call.1} parent=1 // pred_check
      _
    $region71: #{tpu_custom_call.1} parent=1 // pred_check_branch
      %2172 = sbr.rel (0) target = $region73
    $region72: #{tpu_custom_call.1} parent=1 // pred_region
      %2173 = dma.done [#allocation4], 128
    $region73: #{tpu_custom_call.1} parent=1 // pred_fallthru
      _
    %2174 = vsyncpa [#allocation3], 1
    %2175 = vsyncpa [#allocation6], 1
    %2176 = vsyncpa [#allocation9], 1
    %2177 = vsyncpa [#allocation4], 1

</llo_original>
